<compile_context>
chip_gen: v6e
topology: v6e:2x2x1
jax: 0.10.0
libtpu: 0.0.40
codegen_flags: <defaults>
</compile_context>

<pallas_src>
import math

import jax
import jax.numpy as jnp
from jax.experimental import pallas as pl
from jax.experimental.pallas import tpu as pltpu

# ----------------------------- configuration --------------------------------
BATCH = 2
IN_CHANS = 3
IMG = 32
PATCH = 16
EMBED_DIM = 64
DEPTH = 2
NUM_HEADS = 4
HEAD_DIM = EMBED_DIM // NUM_HEADS
MLP_HIDDEN = 4 * EMBED_DIM
NUM_CLASSES = 10
LN_EPS = 1e-6

N_TOK = (IMG // PATCH) ** 2 + 1          # 5 real tokens (cls + 4 patches)
N_PAD = 8                                 # tokens per batch, sublane-padded
M_PAD = BATCH * N_PAD                     # 16 activation rows
R_ROWS = BATCH * NUM_HEADS * N_PAD        # 64 rows in head-replicated layout
PATCH_DIM = IN_CHANS * PATCH * PATCH      # 768
HEAD_PAD = 128                            # lane-dense head output width


# ------------------------------ fused kernel ---------------------------------
def _vit_fused_kernel(patches_ref, base_ref, patch_w_ref, rep_ref, rep_t_ref,
                      col_mask_ref, attn_bias_ref,
                      ln1_g_ref, ln1_b_ref, q_w_ref, q_b_ref, k_w_ref, k_b_ref,
                      v_w_ref, v_b_ref, proj_w_ref, proj_b_ref,
                      ln2_g_ref, ln2_b_ref, fc1_w_ref, fc1_b_ref,
                      fc2_w_ref, fc2_b_ref, ln_g_ref, ln_b_ref,
                      head_w_ref, head_b_ref, out_ref):
    f32 = jnp.float32
    bf16 = jnp.bfloat16

    def ln(x, g, b):
        # var = E[x^2] - mu^2: both reductions read x directly (overlap on XLU).
        mu = jnp.mean(x, axis=-1, keepdims=True)
        var = jnp.mean(x * x, axis=-1, keepdims=True) - mu * mu
        return (x - mu) * jax.lax.rsqrt(var + LN_EPS) * g + b

    def mm(a, w):
        # bf16 x bf16 MXU matmul with f32 accumulation; weights already bf16.
        return jnp.dot(a.astype(bf16), w, preferred_element_type=f32)

    def gelu(x):
        # TODO(synk): timm's ViT uses exact erf-GELU; tanh approximation kept
        # for guaranteed Mosaic lowering (no native erf on the EUP).
        return 0.5 * x * (1.0 + jnp.tanh(
            0.7978845608028654 * (x + 0.044715 * x * x * x)))

    # Patch embedding. `base` folds in cls token, positional embedding and the
    # patch-embed bias, so one matmul + add suffices.
    x = mm(patches_ref[...], patch_w_ref[...]) + base_ref[...]     # [M_PAD, D]

    rep = rep_ref[...]            # [R_ROWS, M_PAD] bf16 0/1 replication matrix
    rep_t = rep_t_ref[...]        # [M_PAD, R_ROWS] bf16 (head-sum reducer)
    col_mask = col_mask_ref[...]  # [R_ROWS, D] 1 on own-head columns else 0
    attn_bias = attn_bias_ref[...]  # [R_ROWS, R_ROWS] 0 / -1e30 block mask

    for d in range(DEPTH):
        # ---------------- block-diagonal multi-head attention ----------------
        hln = ln(x, ln1_g_ref[d], ln1_b_ref[d])                     # [M, D]
        # Replicate each (batch, token) row once per head: [R_ROWS, D].
        x_rep = jnp.dot(rep, hln.astype(bf16), preferred_element_type=f32)

        q = mm(x_rep, q_w_ref[d]) + q_b_ref[d]          # scale folded in q_w/q_b
        k = (mm(x_rep, k_w_ref[d]) + k_b_ref[d]) * col_mask
        v = (mm(x_rep, v_w_ref[d]) + v_b_ref[d]) * col_mask

        # One full-slab score matmul; additive mask kills cross-head,
        # cross-batch and padded-key entries.
        s = jax.lax.dot_general(q.astype(bf16), k.astype(bf16),
                                (((1,), (1,)), ((), ())),
                                preferred_element_type=f32) + attn_bias
        m = jnp.max(s, axis=-1, keepdims=True)
        p = jnp.exp(s - m)
        p = p * pl.reciprocal(jnp.sum(p, axis=-1, keepdims=True), approx=True)

        # P @ V: each row keeps its own head's columns (others exactly 0).
        o_blk = jnp.dot(p.astype(bf16), v.astype(bf16),
                        preferred_element_type=f32)                 # [R_ROWS, D]
        # Sum the 4 disjoint head blocks per (batch, token) == concat heads.
        o_wide = jnp.dot(rep_t, o_blk.astype(bf16),
                         preferred_element_type=f32)                # [M, D]
        x = x + mm(o_wide, proj_w_ref[d]) + proj_b_ref[d]

        # ------------------------------- MLP ---------------------------------
        hln = ln(x, ln2_g_ref[d], ln2_b_ref[d])
        h1 = gelu(mm(hln, fc1_w_ref[d]) + fc1_b_ref[d])
        x = x + mm(h1, fc2_w_ref[d]) + fc2_b_ref[d]

    # Final LN + classification head; lane-dense [M_PAD, 128] output slab.
    x = ln(x, ln_g_ref[...], ln_b_ref[...])
    logits = mm(x, head_w_ref[...]) + head_b_ref[...]
    out_ref[...] = logits.astype(out_ref.dtype)


# --------------------------- parameter creation ------------------------------
def init_params(key):
    def nrm(key, shape, std=0.02):
        return (std * jax.random.normal(key, shape)).astype(jnp.float32)

    n_patches = N_TOK - 1
    keys = jax.random.split(key, 8 + DEPTH)
    params = {
        "patch_w": nrm(keys[0], (PATCH_DIM, EMBED_DIM)),
        "patch_b": jnp.zeros((EMBED_DIM,), jnp.float32),
        "cls_token": nrm(keys[1], (1, 1, EMBED_DIM)),
        "pos_embed": nrm(keys[2], (1, n_patches + 1, EMBED_DIM)),
        "ln_g": jnp.ones((EMBED_DIM,), jnp.float32),
        "ln_b": jnp.zeros((EMBED_DIM,), jnp.float32),
        "head_w": nrm(keys[3], (EMBED_DIM, NUM_CLASSES)),
        "head_b": jnp.zeros((NUM_CLASSES,), jnp.float32),
        "blocks": [],
    }
    for d in range(DEPTH):
        bkeys = jax.random.split(keys[8 + d], 4)
        params["blocks"].append({
            "ln1_g": jnp.ones((EMBED_DIM,), jnp.float32),
            "ln1_b": jnp.zeros((EMBED_DIM,), jnp.float32),
            "qkv_w": nrm(bkeys[0], (EMBED_DIM, 3 * EMBED_DIM)),
            "qkv_b": jnp.zeros((3 * EMBED_DIM,), jnp.float32),
            "proj_w": nrm(bkeys[1], (EMBED_DIM, EMBED_DIM)),
            "proj_b": jnp.zeros((EMBED_DIM,), jnp.float32),
            "ln2_g": jnp.ones((EMBED_DIM,), jnp.float32),
            "ln2_b": jnp.zeros((EMBED_DIM,), jnp.float32),
            "fc1_w": nrm(bkeys[2], (EMBED_DIM, MLP_HIDDEN)),
            "fc1_b": jnp.zeros((MLP_HIDDEN,), jnp.float32),
            "fc2_w": nrm(bkeys[3], (MLP_HIDDEN, EMBED_DIM)),
            "fc2_b": jnp.zeros((EMBED_DIM,), jnp.float32),
        })
    return params


def pack_params(params):
    """One-time packing into kernel-ready, padded, head-blocked, bf16 weights."""
    f32, bf16 = jnp.float32, jnp.bfloat16
    pos = params["pos_embed"][0]                                  # [N_TOK, D]

    # base: cls_token + pos[0] at row b*N_PAD; patch_bias + pos[t] at patch
    # rows; zeros on padding rows.
    base = jnp.zeros((BATCH, N_PAD, EMBED_DIM), f32)
    base = base.at[:, 0, :].set(params["cls_token"][0, 0] + pos[0])
    base = base.at[:, 1:N_TOK, :].set(pos[1:] + params["patch_b"][None, :])
    base = base.reshape(M_PAD, EMBED_DIM)

    # Head-replicated row layout: row r = (b*NUM_HEADS + h)*N_PAD + t.
    r = jnp.arange(R_ROWS)
    b_r = r // (NUM_HEADS * N_PAD)
    h_r = (r // N_PAD) % NUM_HEADS
    t_r = r % N_PAD
    rep = (b_r[:, None] * N_PAD + t_r[:, None]
           == jnp.arange(M_PAD)[None, :]).astype(bf16)            # [64, 16]
    rep_t = rep.T                                                  # [16, 64]
    col_mask = (jnp.arange(EMBED_DIM)[None, :] // HEAD_DIM
                == h_r[:, None]).astype(f32)                       # [64, 64]
    same_block = ((b_r[:, None] == b_r[None, :]) &
                  (h_r[:, None] == h_r[None, :]) &
                  (t_r[None, :] < N_TOK))
    attn_bias = jnp.where(same_block, 0.0, -1e30).astype(f32)      # [64, 64]

    scale = 1.0 / math.sqrt(HEAD_DIM)

    def stk(fn):
        return jnp.stack([fn(blk) for blk in params["blocks"]])

    head_w = jnp.zeros((EMBED_DIM, HEAD_PAD), f32)
    head_w = head_w.at[:, :NUM_CLASSES].set(params["head_w"])
    head_b = jnp.zeros((1, HEAD_PAD), f32)
    head_b = head_b.at[0, :NUM_CLASSES].set(params["head_b"])

    D = EMBED_DIM
    return {
        "base": base,
        "patch_w": params["patch_w"].astype(bf16),
        "rep": rep,
        "rep_t": rep_t,
        "col_mask": col_mask,
        "attn_bias": attn_bias,
        "ln1_g": stk(lambda b: b["ln1_g"].reshape(1, D)),
        "ln1_b": stk(lambda b: b["ln1_b"].reshape(1, D)),
        "q_w": stk(lambda b: (b["qkv_w"][:, :D] * scale).astype(bf16)),
        "q_b": stk(lambda b: (b["qkv_b"][:D] * scale).reshape(1, D)),
        "k_w": stk(lambda b: b["qkv_w"][:, D:2 * D].astype(bf16)),
        "k_b": stk(lambda b: b["qkv_b"][D:2 * D].reshape(1, D)),
        "v_w": stk(lambda b: b["qkv_w"][:, 2 * D:].astype(bf16)),
        "v_b": stk(lambda b: b["qkv_b"][2 * D:].reshape(1, D)),
        "proj_w": stk(lambda b: b["proj_w"].astype(bf16)),
        "proj_b": stk(lambda b: b["proj_b"].reshape(1, D)),
        "ln2_g": stk(lambda b: b["ln2_g"].reshape(1, D)),
        "ln2_b": stk(lambda b: b["ln2_b"].reshape(1, D)),
        "fc1_w": stk(lambda b: b["fc1_w"].astype(bf16)),
        "fc1_b": stk(lambda b: b["fc1_b"].reshape(1, MLP_HIDDEN)),
        "fc2_w": stk(lambda b: b["fc2_w"].astype(bf16)),
        "fc2_b": stk(lambda b: b["fc2_b"].reshape(1, D)),
        "ln_g": params["ln_g"].reshape(1, D),
        "ln_b": params["ln_b"].reshape(1, D),
        "head_w": head_w.astype(bf16),
        "head_b": head_b,
    }


_PACKED_ORDER = ("base", "patch_w", "rep", "rep_t", "col_mask", "attn_bias",
                 "ln1_g", "ln1_b", "q_w", "q_b", "k_w", "k_b", "v_w", "v_b",
                 "proj_w", "proj_b", "ln2_g", "ln2_b", "fc1_w", "fc1_b",
                 "fc2_w", "fc2_b", "ln_g", "ln_b", "head_w", "head_b")


def _full_spec(shape):
    nd = len(shape)

    def idx(i):
        return (0,) * nd

    return pl.BlockSpec(shape, idx)


# -------------------------------- forward ------------------------------------
def vit_forward(packed, image):
    """image: [B, C, H, W] (NCHW, like PyTorch) -> logits [B, num_classes]."""
    B, C, H, W = image.shape
    nh, nw = H // PATCH, W // PATCH
    n_patches = nh * nw

    # Patch extraction arranged directly into the padded token-row layout.
    p = image.reshape(B, C, nh, PATCH, nw, PATCH)
    p = p.transpose(0, 2, 4, 1, 3, 5).reshape(B, n_patches, C * PATCH * PATCH)
    patches = jnp.zeros((B, N_PAD, C * PATCH * PATCH), jnp.float32)
    patches = patches.at[:, 1:1 + n_patches, :].set(p)
    patches = patches.reshape(B * N_PAD, C * PATCH * PATCH)

    args = (patches,) + tuple(packed[k] for k in _PACKED_ORDER)

    # Advisory cost estimate so XLA doesn't treat the fused call as zero-cost.
    D = EMBED_DIM
    per_layer = (2 * R_ROWS * M_PAD * D                 # head replication
                 + 3 * 2 * R_ROWS * D * D               # q / k / v
                 + 2 * R_ROWS * D * R_ROWS              # scores
                 + 2 * R_ROWS * R_ROWS * D              # p @ v
                 + 2 * M_PAD * R_ROWS * D               # head-block reduce
                 + 2 * M_PAD * D * D                    # output projection
                 + 2 * 2 * M_PAD * D * MLP_HIDDEN)      # fc1 + fc2
    flops = (2 * M_PAD * PATCH_DIM * D + DEPTH * per_layer
             + 2 * M_PAD * D * HEAD_PAD)
    transcendentals = DEPTH * (R_ROWS * R_ROWS + M_PAD * MLP_HIDDEN)
    bytes_accessed = sum(int(a.size) * a.dtype.itemsize for a in args) \
        + M_PAD * HEAD_PAD * 4

    out = pl.pallas_call(
        _vit_fused_kernel,
        grid=(1,),
        in_specs=[_full_spec(a.shape) for a in args],
        out_specs=pl.BlockSpec((M_PAD, HEAD_PAD), lambda i: (0, 0)),
        out_shape=jax.ShapeDtypeStruct((M_PAD, HEAD_PAD), jnp.float32),
        compiler_params=pltpu.CompilerParams(
            dimension_semantics=("arbitrary",)),
        cost_estimate=pl.CostEstimate(
            flops=int(flops),
            transcendentals=int(transcendentals),
            bytes_accessed=int(bytes_accessed)),
    )(*args)

    # cls token of each batch (row b*N_PAD), real classes only.
    logits = out.reshape(B, N_PAD, HEAD_PAD)[:, 0, :NUM_CLASSES]
    return logits


# --------------------------------- main ---------------------------------------
if __name__ == "__main__":
    key = jax.random.PRNGKey(0)
    pkey, ikey = jax.random.split(key)
    params = init_params(pkey)
    packed = pack_params(params)
    image = jax.random.normal(ikey, (BATCH, IN_CHANS, IMG, IMG), jnp.float32)

    fwd = jax.jit(vit_forward)
    logits = fwd(packed, image)
    jax.block_until_ready(logits)
    assert logits.shape == (BATCH, NUM_CLASSES)
    assert bool(jnp.all(jnp.isfinite(logits)))
    print("KERNEL_OK")
</pallas_src>

<mosaic_0001>
module attributes {stable_mosaic.version = 11 : i64} {
  func.func @_vit_fused_kernel(%arg0: i32, %arg1: memref<16x768xf32, #tpu.memory_space<vmem>>, %arg2: memref<16x64xf32, #tpu.memory_space<vmem>>, %arg3: memref<768x64xbf16, #tpu.memory_space<vmem>>, %arg4: memref<64x16xbf16, #tpu.memory_space<vmem>>, %arg5: memref<16x64xbf16, #tpu.memory_space<vmem>>, %arg6: memref<64x64xf32, #tpu.memory_space<vmem>>, %arg7: memref<64x64xf32, #tpu.memory_space<vmem>>, %arg8: memref<2x1x64xf32, #tpu.memory_space<vmem>>, %arg9: memref<2x1x64xf32, #tpu.memory_space<vmem>>, %arg10: memref<2x64x64xbf16, #tpu.memory_space<vmem>>, %arg11: memref<2x1x64xf32, #tpu.memory_space<vmem>>, %arg12: memref<2x64x64xbf16, #tpu.memory_space<vmem>>, %arg13: memref<2x1x64xf32, #tpu.memory_space<vmem>>, %arg14: memref<2x64x64xbf16, #tpu.memory_space<vmem>>, %arg15: memref<2x1x64xf32, #tpu.memory_space<vmem>>, %arg16: memref<2x64x64xbf16, #tpu.memory_space<vmem>>, %arg17: memref<2x1x64xf32, #tpu.memory_space<vmem>>, %arg18: memref<2x1x64xf32, #tpu.memory_space<vmem>>, %arg19: memref<2x1x64xf32, #tpu.memory_space<vmem>>, %arg20: memref<2x64x256xbf16, #tpu.memory_space<vmem>>, %arg21: memref<2x1x256xf32, #tpu.memory_space<vmem>>, %arg22: memref<2x256x64xbf16, #tpu.memory_space<vmem>>, %arg23: memref<2x1x64xf32, #tpu.memory_space<vmem>>, %arg24: memref<1x64xf32, #tpu.memory_space<vmem>>, %arg25: memref<1x64xf32, #tpu.memory_space<vmem>>, %arg26: memref<64x128xbf16, #tpu.memory_space<vmem>>, %arg27: memref<1x128xf32, #tpu.memory_space<vmem>>, %arg28: memref<16x128xf32, #tpu.memory_space<vmem>>) attributes {dimension_semantics = [#tpu.dimension_semantics<arbitrary>], iteration_bounds = array<i64: 1>, scalar_prefetch = 0 : i64, scratch_operands = 0 : i64, tpu.core_type = #tpu.core_type<tc>, window_params = [{pipeline_mode = #tpu.pipeline_mode<synchronous>, transform_indices = @transform_0, window_bounds = array<i64: 16, 768>}, {pipeline_mode = #tpu.pipeline_mode<synchronous>, transform_indices = @transform_1, window_bounds = array<i64: 16, 64>}, {pipeline_mode = #tpu.pipeline_mode<synchronous>, transform_indices = @transform_2, window_bounds = array<i64: 768, 64>}, {pipeline_mode = #tpu.pipeline_mode<synchronous>, transform_indices = @transform_3, window_bounds = array<i64: 64, 16>}, {pipeline_mode = #tpu.pipeline_mode<synchronous>, transform_indices = @transform_4, window_bounds = array<i64: 16, 64>}, {pipeline_mode = #tpu.pipeline_mode<synchronous>, transform_indices = @transform_5, window_bounds = array<i64: 64, 64>}, {pipeline_mode = #tpu.pipeline_mode<synchronous>, transform_indices = @transform_6, window_bounds = array<i64: 64, 64>}, {pipeline_mode = #tpu.pipeline_mode<synchronous>, transform_indices = @transform_7, window_bounds = array<i64: 2, 1, 64>}, {pipeline_mode = #tpu.pipeline_mode<synchronous>, transform_indices = @transform_8, window_bounds = array<i64: 2, 1, 64>}, {pipeline_mode = #tpu.pipeline_mode<synchronous>, transform_indices = @transform_9, window_bounds = array<i64: 2, 64, 64>}, {pipeline_mode = #tpu.pipeline_mode<synchronous>, transform_indices = @transform_10, window_bounds = array<i64: 2, 1, 64>}, {pipeline_mode = #tpu.pipeline_mode<synchronous>, transform_indices = @transform_11, window_bounds = array<i64: 2, 64, 64>}, {pipeline_mode = #tpu.pipeline_mode<synchronous>, transform_indices = @transform_12, window_bounds = array<i64: 2, 1, 64>}, {pipeline_mode = #tpu.pipeline_mode<synchronous>, transform_indices = @transform_13, window_bounds = array<i64: 2, 64, 64>}, {pipeline_mode = #tpu.pipeline_mode<synchronous>, transform_indices = @transform_14, window_bounds = array<i64: 2, 1, 64>}, {pipeline_mode = #tpu.pipeline_mode<synchronous>, transform_indices = @transform_15, window_bounds = array<i64: 2, 64, 64>}, {pipeline_mode = #tpu.pipeline_mode<synchronous>, transform_indices = @transform_16, window_bounds = array<i64: 2, 1, 64>}, {pipeline_mode = #tpu.pipeline_mode<synchronous>, transform_indices = @transform_17, window_bounds = array<i64: 2, 1, 64>}, {pipeline_mode = #tpu.pipeline_mode<synchronous>, transform_indices = @transform_18, window_bounds = array<i64: 2, 1, 64>}, {pipeline_mode = #tpu.pipeline_mode<synchronous>, transform_indices = @transform_19, window_bounds = array<i64: 2, 64, 256>}, {pipeline_mode = #tpu.pipeline_mode<synchronous>, transform_indices = @transform_20, window_bounds = array<i64: 2, 1, 256>}, {pipeline_mode = #tpu.pipeline_mode<synchronous>, transform_indices = @transform_21, window_bounds = array<i64: 2, 256, 64>}, {pipeline_mode = #tpu.pipeline_mode<synchronous>, transform_indices = @transform_22, window_bounds = array<i64: 2, 1, 64>}, {pipeline_mode = #tpu.pipeline_mode<synchronous>, transform_indices = @transform_23, window_bounds = array<i64: 1, 64>}, {pipeline_mode = #tpu.pipeline_mode<synchronous>, transform_indices = @transform_24, window_bounds = array<i64: 1, 64>}, {pipeline_mode = #tpu.pipeline_mode<synchronous>, transform_indices = @transform_25, window_bounds = array<i64: 64, 128>}, {pipeline_mode = #tpu.pipeline_mode<synchronous>, transform_indices = @transform_26, window_bounds = array<i64: 1, 128>}, {pipeline_mode = #tpu.pipeline_mode<synchronous>, transform_indices = @transform_27, window_bounds = array<i64: 16, 128>}]} {
    %c0 = arith.constant 0 : index
    %c0_0 = arith.constant 0 : index
    %0 = vector.load %arg1[%c0, %c0_0] : memref<16x768xf32, #tpu.memory_space<vmem>>, vector<16x768xf32>
    %c0_1 = arith.constant 0 : index
    %c0_2 = arith.constant 0 : index
    %1 = vector.load %arg3[%c0_1, %c0_2] : memref<768x64xbf16, #tpu.memory_space<vmem>>, vector<768x64xbf16>
    %2 = arith.truncf %0 : vector<16x768xf32> to vector<16x768xbf16>
    %cst = arith.constant dense<0.000000e+00> : vector<16x64xf32>
    %3 = tpu.matmul %2, %1, %cst {dimension_numbers = #tpu.dot_dimension_numbers<[1], [0], [0], [1], [0, 0, 1, 1], [], []>} : vector<16x768xbf16>, vector<768x64xbf16>, vector<16x64xf32> -> vector<16x64xf32>
    %c0_3 = arith.constant 0 : index
    %c0_4 = arith.constant 0 : index
    %4 = vector.load %arg2[%c0_3, %c0_4] : memref<16x64xf32, #tpu.memory_space<vmem>>, vector<16x64xf32>
    %5 = arith.addf %3, %4 : vector<16x64xf32>
    %c0_5 = arith.constant 0 : index
    %c0_6 = arith.constant 0 : index
    %6 = vector.load %arg4[%c0_5, %c0_6] : memref<64x16xbf16, #tpu.memory_space<vmem>>, vector<64x16xbf16>
    %c0_7 = arith.constant 0 : index
    %c0_8 = arith.constant 0 : index
    %7 = vector.load %arg5[%c0_7, %c0_8] : memref<16x64xbf16, #tpu.memory_space<vmem>>, vector<16x64xbf16>
    %c0_9 = arith.constant 0 : index
    %c0_10 = arith.constant 0 : index
    %8 = vector.load %arg6[%c0_9, %c0_10] : memref<64x64xf32, #tpu.memory_space<vmem>>, vector<64x64xf32>
    %c0_11 = arith.constant 0 : index
    %c0_12 = arith.constant 0 : index
    %9 = vector.load %arg7[%c0_11, %c0_12] : memref<64x64xf32, #tpu.memory_space<vmem>>, vector<64x64xf32>
    %c0_13 = arith.constant 0 : index
    %c0_14 = arith.constant 0 : index
    %c0_15 = arith.constant 0 : index
    %10 = vector.load %arg8[%c0_13, %c0_14, %c0_15] : memref<2x1x64xf32, #tpu.memory_space<vmem>>, vector<1x1x64xf32>
    %11 = vector.shape_cast %10 : vector<1x1x64xf32> to vector<1x64xf32>
    %c0_16 = arith.constant 0 : index
    %c0_17 = arith.constant 0 : index
    %c0_18 = arith.constant 0 : index
    %12 = vector.load %arg9[%c0_16, %c0_17, %c0_18] : memref<2x1x64xf32, #tpu.memory_space<vmem>>, vector<1x1x64xf32>
    %13 = vector.shape_cast %12 : vector<1x1x64xf32> to vector<1x64xf32>
    %cst_19 = arith.constant dense<0.000000e+00> : vector<16xf32>
    %14 = vector.multi_reduction <add>, %5, %cst_19 [1] : vector<16x64xf32> to vector<16xf32>
    %15 = vector.shape_cast %14 : vector<16xf32> to vector<16x1xf32>
    %cst_20 = arith.constant 6.400000e+01 : f32
    %16 = vector.broadcast %cst_20 : f32 to vector<16x1xf32>
    %17 = arith.divf %15, %16 : vector<16x1xf32>
    %18 = arith.mulf %5, %5 : vector<16x64xf32>
    %cst_21 = arith.constant dense<0.000000e+00> : vector<16xf32>
    %19 = vector.multi_reduction <add>, %18, %cst_21 [1] : vector<16x64xf32> to vector<16xf32>
    %20 = vector.shape_cast %19 : vector<16xf32> to vector<16x1xf32>
    %cst_22 = arith.constant 6.400000e+01 : f32
    %21 = vector.broadcast %cst_22 : f32 to vector<16x1xf32>
    %22 = arith.divf %20, %21 : vector<16x1xf32>
    %23 = arith.mulf %17, %17 : vector<16x1xf32>
    %24 = arith.subf %22, %23 : vector<16x1xf32>
    %25 = vector.broadcast %17 : vector<16x1xf32> to vector<16x64xf32>
    %26 = arith.subf %5, %25 : vector<16x64xf32>
    %cst_23 = arith.constant 9.99999997E-7 : f32
    %27 = vector.broadcast %cst_23 : f32 to vector<16x1xf32>
    %28 = arith.addf %24, %27 : vector<16x1xf32>
    %29 = math.rsqrt %28 : vector<16x1xf32>
    %30 = vector.broadcast %29 : vector<16x1xf32> to vector<16x64xf32>
    %31 = arith.mulf %26, %30 : vector<16x64xf32>
    %32 = vector.broadcast %11 : vector<1x64xf32> to vector<16x64xf32>
    %33 = arith.mulf %31, %32 : vector<16x64xf32>
    %34 = vector.broadcast %13 : vector<1x64xf32> to vector<16x64xf32>
    %35 = arith.addf %33, %34 : vector<16x64xf32>
    %36 = arith.truncf %35 : vector<16x64xf32> to vector<16x64xbf16>
    %cst_24 = arith.constant dense<0.000000e+00> : vector<64x64xf32>
    %37 = tpu.matmul %6, %36, %cst_24 {dimension_numbers = #tpu.dot_dimension_numbers<[1], [0], [0], [1], [0, 0, 1, 1], [], []>} : vector<64x16xbf16>, vector<16x64xbf16>, vector<64x64xf32> -> vector<64x64xf32>
    %c0_25 = arith.constant 0 : index
    %c0_26 = arith.constant 0 : index
    %c0_27 = arith.constant 0 : index
    %38 = vector.load %arg10[%c0_25, %c0_26, %c0_27] : memref<2x64x64xbf16, #tpu.memory_space<vmem>>, vector<1x64x64xbf16>
    %39 = vector.shape_cast %38 : vector<1x64x64xbf16> to vector<64x64xbf16>
    %40 = arith.truncf %37 : vector<64x64xf32> to vector<64x64xbf16>
    %cst_28 = arith.constant dense<0.000000e+00> : vector<64x64xf32>
    %41 = tpu.matmul %40, %39, %cst_28 {dimension_numbers = #tpu.dot_dimension_numbers<[1], [0], [0], [1], [0, 0, 1, 1], [], []>} : vector<64x64xbf16>, vector<64x64xbf16>, vector<64x64xf32> -> vector<64x64xf32>
    %c0_29 = arith.constant 0 : index
    %c0_30 = arith.constant 0 : index
    %c0_31 = arith.constant 0 : index
    %42 = vector.load %arg11[%c0_29, %c0_30, %c0_31] : memref<2x1x64xf32, #tpu.memory_space<vmem>>, vector<1x1x64xf32>
    %43 = vector.shape_cast %42 : vector<1x1x64xf32> to vector<1x64xf32>
    %44 = vector.broadcast %43 : vector<1x64xf32> to vector<64x64xf32>
    %45 = arith.addf %41, %44 : vector<64x64xf32>
    %c0_32 = arith.constant 0 : index
    %c0_33 = arith.constant 0 : index
    %c0_34 = arith.constant 0 : index
    %46 = vector.load %arg12[%c0_32, %c0_33, %c0_34] : memref<2x64x64xbf16, #tpu.memory_space<vmem>>, vector<1x64x64xbf16>
    %47 = vector.shape_cast %46 : vector<1x64x64xbf16> to vector<64x64xbf16>
    %48 = arith.truncf %37 : vector<64x64xf32> to vector<64x64xbf16>
    %cst_35 = arith.constant dense<0.000000e+00> : vector<64x64xf32>
    %49 = tpu.matmul %48, %47, %cst_35 {dimension_numbers = #tpu.dot_dimension_numbers<[1], [0], [0], [1], [0, 0, 1, 1], [], []>} : vector<64x64xbf16>, vector<64x64xbf16>, vector<64x64xf32> -> vector<64x64xf32>
    %c0_36 = arith.constant 0 : index
    %c0_37 = arith.constant 0 : index
    %c0_38 = arith.constant 0 : index
    %50 = vector.load %arg13[%c0_36, %c0_37, %c0_38] : memref<2x1x64xf32, #tpu.memory_space<vmem>>, vector<1x1x64xf32>
    %51 = vector.shape_cast %50 : vector<1x1x64xf32> to vector<1x64xf32>
    %52 = vector.broadcast %51 : vector<1x64xf32> to vector<64x64xf32>
    %53 = arith.addf %49, %52 : vector<64x64xf32>
    %54 = arith.mulf %53, %8 : vector<64x64xf32>
    %c0_39 = arith.constant 0 : index
    %c0_40 = arith.constant 0 : index
    %c0_41 = arith.constant 0 : index
    %55 = vector.load %arg14[%c0_39, %c0_40, %c0_41] : memref<2x64x64xbf16, #tpu.memory_space<vmem>>, vector<1x64x64xbf16>
    %56 = vector.shape_cast %55 : vector<1x64x64xbf16> to vector<64x64xbf16>
    %57 = arith.truncf %37 : vector<64x64xf32> to vector<64x64xbf16>
    %cst_42 = arith.constant dense<0.000000e+00> : vector<64x64xf32>
    %58 = tpu.matmul %57, %56, %cst_42 {dimension_numbers = #tpu.dot_dimension_numbers<[1], [0], [0], [1], [0, 0, 1, 1], [], []>} : vector<64x64xbf16>, vector<64x64xbf16>, vector<64x64xf32> -> vector<64x64xf32>
    %c0_43 = arith.constant 0 : index
    %c0_44 = arith.constant 0 : index
    %c0_45 = arith.constant 0 : index
    %59 = vector.load %arg15[%c0_43, %c0_44, %c0_45] : memref<2x1x64xf32, #tpu.memory_space<vmem>>, vector<1x1x64xf32>
    %60 = vector.shape_cast %59 : vector<1x1x64xf32> to vector<1x64xf32>
    %61 = vector.broadcast %60 : vector<1x64xf32> to vector<64x64xf32>
    %62 = arith.addf %58, %61 : vector<64x64xf32>
    %63 = arith.mulf %62, %8 : vector<64x64xf32>
    %64 = arith.truncf %45 : vector<64x64xf32> to vector<64x64xbf16>
    %65 = arith.truncf %54 : vector<64x64xf32> to vector<64x64xbf16>
    %cst_46 = arith.constant dense<0.000000e+00> : vector<64x64xf32>
    %66 = tpu.matmul %64, %65, %cst_46 {dimension_numbers = #tpu.dot_dimension_numbers<[1], [1], [0], [0], [0, 0, 1, 0], [], []>} : vector<64x64xbf16>, vector<64x64xbf16>, vector<64x64xf32> -> vector<64x64xf32>
    %67 = arith.addf %66, %9 : vector<64x64xf32>
    %cst_47 = arith.constant dense<0xFF800000> : vector<64xf32>
    %68 = vector.multi_reduction <maximumf>, %67, %cst_47 [1] : vector<64x64xf32> to vector<64xf32>
    %69 = vector.shape_cast %68 : vector<64xf32> to vector<64x1xf32>
    %70 = vector.broadcast %69 : vector<64x1xf32> to vector<64x64xf32>
    %71 = arith.subf %67, %70 : vector<64x64xf32>
    %72 = math.exp %71 : vector<64x64xf32>
    %cst_48 = arith.constant dense<0.000000e+00> : vector<64xf32>
    %73 = vector.multi_reduction <add>, %72, %cst_48 [1] : vector<64x64xf32> to vector<64xf32>
    %74 = vector.shape_cast %73 : vector<64xf32> to vector<64x1xf32>
    %75 = tpu.reciprocal %74 {approx = true} : vector<64x1xf32> -> vector<64x1xf32>
    %76 = vector.broadcast %75 : vector<64x1xf32> to vector<64x64xf32>
    %77 = arith.mulf %72, %76 : vector<64x64xf32>
    %78 = arith.truncf %77 : vector<64x64xf32> to vector<64x64xbf16>
    %79 = arith.truncf %63 : vector<64x64xf32> to vector<64x64xbf16>
    %cst_49 = arith.constant dense<0.000000e+00> : vector<64x64xf32>
    %80 = tpu.matmul %78, %79, %cst_49 {dimension_numbers = #tpu.dot_dimension_numbers<[1], [0], [0], [1], [0, 0, 1, 1], [], []>} : vector<64x64xbf16>, vector<64x64xbf16>, vector<64x64xf32> -> vector<64x64xf32>
    %81 = arith.truncf %80 : vector<64x64xf32> to vector<64x64xbf16>
    %cst_50 = arith.constant dense<0.000000e+00> : vector<16x64xf32>
    %82 = tpu.matmul %7, %81, %cst_50 {dimension_numbers = #tpu.dot_dimension_numbers<[1], [0], [0], [1], [0, 0, 1, 1], [], []>} : vector<16x64xbf16>, vector<64x64xbf16>, vector<16x64xf32> -> vector<16x64xf32>
    %c0_51 = arith.constant 0 : index
    %c0_52 = arith.constant 0 : index
    %c0_53 = arith.constant 0 : index
    %83 = vector.load %arg16[%c0_51, %c0_52, %c0_53] : memref<2x64x64xbf16, #tpu.memory_space<vmem>>, vector<1x64x64xbf16>
    %84 = vector.shape_cast %83 : vector<1x64x64xbf16> to vector<64x64xbf16>
    %85 = arith.truncf %82 : vector<16x64xf32> to vector<16x64xbf16>
    %cst_54 = arith.constant dense<0.000000e+00> : vector<16x64xf32>
    %86 = tpu.matmul %85, %84, %cst_54 {dimension_numbers = #tpu.dot_dimension_numbers<[1], [0], [0], [1], [0, 0, 1, 1], [], []>} : vector<16x64xbf16>, vector<64x64xbf16>, vector<16x64xf32> -> vector<16x64xf32>
    %87 = arith.addf %5, %86 : vector<16x64xf32>
    %c0_55 = arith.constant 0 : index
    %c0_56 = arith.constant 0 : index
    %c0_57 = arith.constant 0 : index
    %88 = vector.load %arg17[%c0_55, %c0_56, %c0_57] : memref<2x1x64xf32, #tpu.memory_space<vmem>>, vector<1x1x64xf32>
    %89 = vector.shape_cast %88 : vector<1x1x64xf32> to vector<1x64xf32>
    %90 = vector.broadcast %89 : vector<1x64xf32> to vector<16x64xf32>
    %91 = arith.addf %87, %90 : vector<16x64xf32>
    %c0_58 = arith.constant 0 : index
    %c0_59 = arith.constant 0 : index
    %c0_60 = arith.constant 0 : index
    %92 = vector.load %arg18[%c0_58, %c0_59, %c0_60] : memref<2x1x64xf32, #tpu.memory_space<vmem>>, vector<1x1x64xf32>
    %93 = vector.shape_cast %92 : vector<1x1x64xf32> to vector<1x64xf32>
    %c0_61 = arith.constant 0 : index
    %c0_62 = arith.constant 0 : index
    %c0_63 = arith.constant 0 : index
    %94 = vector.load %arg19[%c0_61, %c0_62, %c0_63] : memref<2x1x64xf32, #tpu.memory_space<vmem>>, vector<1x1x64xf32>
    %95 = vector.shape_cast %94 : vector<1x1x64xf32> to vector<1x64xf32>
    %cst_64 = arith.constant dense<0.000000e+00> : vector<16xf32>
    %96 = vector.multi_reduction <add>, %91, %cst_64 [1] : vector<16x64xf32> to vector<16xf32>
    %97 = vector.shape_cast %96 : vector<16xf32> to vector<16x1xf32>
    %cst_65 = arith.constant 6.400000e+01 : f32
    %98 = vector.broadcast %cst_65 : f32 to vector<16x1xf32>
    %99 = arith.divf %97, %98 : vector<16x1xf32>
    %100 = arith.mulf %91, %91 : vector<16x64xf32>
    %cst_66 = arith.constant dense<0.000000e+00> : vector<16xf32>
    %101 = vector.multi_reduction <add>, %100, %cst_66 [1] : vector<16x64xf32> to vector<16xf32>
    %102 = vector.shape_cast %101 : vector<16xf32> to vector<16x1xf32>
    %cst_67 = arith.constant 6.400000e+01 : f32
    %103 = vector.broadcast %cst_67 : f32 to vector<16x1xf32>
    %104 = arith.divf %102, %103 : vector<16x1xf32>
    %105 = arith.mulf %99, %99 : vector<16x1xf32>
    %106 = arith.subf %104, %105 : vector<16x1xf32>
    %107 = vector.broadcast %99 : vector<16x1xf32> to vector<16x64xf32>
    %108 = arith.subf %91, %107 : vector<16x64xf32>
    %cst_68 = arith.constant 9.99999997E-7 : f32
    %109 = vector.broadcast %cst_68 : f32 to vector<16x1xf32>
    %110 = arith.addf %106, %109 : vector<16x1xf32>
    %111 = math.rsqrt %110 : vector<16x1xf32>
    %112 = vector.broadcast %111 : vector<16x1xf32> to vector<16x64xf32>
    %113 = arith.mulf %108, %112 : vector<16x64xf32>
    %114 = vector.broadcast %93 : vector<1x64xf32> to vector<16x64xf32>
    %115 = arith.mulf %113, %114 : vector<16x64xf32>
    %116 = vector.broadcast %95 : vector<1x64xf32> to vector<16x64xf32>
    %117 = arith.addf %115, %116 : vector<16x64xf32>
    %c0_69 = arith.constant 0 : index
    %c0_70 = arith.constant 0 : index
    %c0_71 = arith.constant 0 : index
    %118 = vector.load %arg20[%c0_69, %c0_70, %c0_71] : memref<2x64x256xbf16, #tpu.memory_space<vmem>>, vector<1x64x256xbf16>
    %119 = vector.shape_cast %118 : vector<1x64x256xbf16> to vector<64x256xbf16>
    %120 = arith.truncf %117 : vector<16x64xf32> to vector<16x64xbf16>
    %cst_72 = arith.constant dense<0.000000e+00> : vector<16x256xf32>
    %121 = tpu.matmul %120, %119, %cst_72 {dimension_numbers = #tpu.dot_dimension_numbers<[1], [0], [0], [1], [0, 0, 1, 1], [], []>} : vector<16x64xbf16>, vector<64x256xbf16>, vector<16x256xf32> -> vector<16x256xf32>
    %c0_73 = arith.constant 0 : index
    %c0_74 = arith.constant 0 : index
    %c0_75 = arith.constant 0 : index
    %122 = vector.load %arg21[%c0_73, %c0_74, %c0_75] : memref<2x1x256xf32, #tpu.memory_space<vmem>>, vector<1x1x256xf32>
    %123 = vector.shape_cast %122 : vector<1x1x256xf32> to vector<1x256xf32>
    %124 = vector.broadcast %123 : vector<1x256xf32> to vector<16x256xf32>
    %125 = arith.addf %121, %124 : vector<16x256xf32>
    %cst_76 = arith.constant 5.000000e-01 : f32
    %126 = vector.broadcast %cst_76 : f32 to vector<16x256xf32>
    %127 = arith.mulf %126, %125 : vector<16x256xf32>
    %cst_77 = arith.constant 4.471500e-02 : f32
    %128 = vector.broadcast %cst_77 : f32 to vector<16x256xf32>
    %129 = arith.mulf %128, %125 : vector<16x256xf32>
    %130 = arith.mulf %129, %125 : vector<16x256xf32>
    %131 = arith.mulf %130, %125 : vector<16x256xf32>
    %132 = arith.addf %125, %131 : vector<16x256xf32>
    %cst_78 = arith.constant 0.797884583 : f32
    %133 = vector.broadcast %cst_78 : f32 to vector<16x256xf32>
    %134 = arith.mulf %133, %132 : vector<16x256xf32>
    %135 = math.tanh %134 : vector<16x256xf32>
    %cst_79 = arith.constant 1.000000e+00 : f32
    %136 = vector.broadcast %cst_79 : f32 to vector<16x256xf32>
    %137 = arith.addf %136, %135 : vector<16x256xf32>
    %138 = arith.mulf %127, %137 : vector<16x256xf32>
    %c0_80 = arith.constant 0 : index
    %c0_81 = arith.constant 0 : index
    %c0_82 = arith.constant 0 : index
    %139 = vector.load %arg22[%c0_80, %c0_81, %c0_82] : memref<2x256x64xbf16, #tpu.memory_space<vmem>>, vector<1x256x64xbf16>
    %140 = vector.shape_cast %139 : vector<1x256x64xbf16> to vector<256x64xbf16>
    %141 = arith.truncf %138 : vector<16x256xf32> to vector<16x256xbf16>
    %cst_83 = arith.constant dense<0.000000e+00> : vector<16x64xf32>
    %142 = tpu.matmul %141, %140, %cst_83 {dimension_numbers = #tpu.dot_dimension_numbers<[1], [0], [0], [1], [0, 0, 1, 1], [], []>} : vector<16x256xbf16>, vector<256x64xbf16>, vector<16x64xf32> -> vector<16x64xf32>
    %143 = arith.addf %91, %142 : vector<16x64xf32>
    %c0_84 = arith.constant 0 : index
    %c0_85 = arith.constant 0 : index
    %c0_86 = arith.constant 0 : index
    %144 = vector.load %arg23[%c0_84, %c0_85, %c0_86] : memref<2x1x64xf32, #tpu.memory_space<vmem>>, vector<1x1x64xf32>
    %145 = vector.shape_cast %144 : vector<1x1x64xf32> to vector<1x64xf32>
    %146 = vector.broadcast %145 : vector<1x64xf32> to vector<16x64xf32>
    %147 = arith.addf %143, %146 : vector<16x64xf32>
    %c1 = arith.constant 1 : index
    %c0_87 = arith.constant 0 : index
    %c0_88 = arith.constant 0 : index
    %148 = vector.load %arg8[%c1, %c0_87, %c0_88] : memref<2x1x64xf32, #tpu.memory_space<vmem>>, vector<1x1x64xf32>
    %149 = vector.shape_cast %148 : vector<1x1x64xf32> to vector<1x64xf32>
    %c1_89 = arith.constant 1 : index
    %c0_90 = arith.constant 0 : index
    %c0_91 = arith.constant 0 : index
    %150 = vector.load %arg9[%c1_89, %c0_90, %c0_91] : memref<2x1x64xf32, #tpu.memory_space<vmem>>, vector<1x1x64xf32>
    %151 = vector.shape_cast %150 : vector<1x1x64xf32> to vector<1x64xf32>
    %cst_92 = arith.constant dense<0.000000e+00> : vector<16xf32>
    %152 = vector.multi_reduction <add>, %147, %cst_92 [1] : vector<16x64xf32> to vector<16xf32>
    %153 = vector.shape_cast %152 : vector<16xf32> to vector<16x1xf32>
    %cst_93 = arith.constant 6.400000e+01 : f32
    %154 = vector.broadcast %cst_93 : f32 to vector<16x1xf32>
    %155 = arith.divf %153, %154 : vector<16x1xf32>
    %156 = arith.mulf %147, %147 : vector<16x64xf32>
    %cst_94 = arith.constant dense<0.000000e+00> : vector<16xf32>
    %157 = vector.multi_reduction <add>, %156, %cst_94 [1] : vector<16x64xf32> to vector<16xf32>
    %158 = vector.shape_cast %157 : vector<16xf32> to vector<16x1xf32>
    %cst_95 = arith.constant 6.400000e+01 : f32
    %159 = vector.broadcast %cst_95 : f32 to vector<16x1xf32>
    %160 = arith.divf %158, %159 : vector<16x1xf32>
    %161 = arith.mulf %155, %155 : vector<16x1xf32>
    %162 = arith.subf %160, %161 : vector<16x1xf32>
    %163 = vector.broadcast %155 : vector<16x1xf32> to vector<16x64xf32>
    %164 = arith.subf %147, %163 : vector<16x64xf32>
    %cst_96 = arith.constant 9.99999997E-7 : f32
    %165 = vector.broadcast %cst_96 : f32 to vector<16x1xf32>
    %166 = arith.addf %162, %165 : vector<16x1xf32>
    %167 = math.rsqrt %166 : vector<16x1xf32>
    %168 = vector.broadcast %167 : vector<16x1xf32> to vector<16x64xf32>
    %169 = arith.mulf %164, %168 : vector<16x64xf32>
    %170 = vector.broadcast %149 : vector<1x64xf32> to vector<16x64xf32>
    %171 = arith.mulf %169, %170 : vector<16x64xf32>
    %172 = vector.broadcast %151 : vector<1x64xf32> to vector<16x64xf32>
    %173 = arith.addf %171, %172 : vector<16x64xf32>
    %174 = arith.truncf %173 : vector<16x64xf32> to vector<16x64xbf16>
    %cst_97 = arith.constant dense<0.000000e+00> : vector<64x64xf32>
    %175 = tpu.matmul %6, %174, %cst_97 {dimension_numbers = #tpu.dot_dimension_numbers<[1], [0], [0], [1], [0, 0, 1, 1], [], []>} : vector<64x16xbf16>, vector<16x64xbf16>, vector<64x64xf32> -> vector<64x64xf32>
    %c1_98 = arith.constant 1 : index
    %c0_99 = arith.constant 0 : index
    %c0_100 = arith.constant 0 : index
    %176 = vector.load %arg10[%c1_98, %c0_99, %c0_100] : memref<2x64x64xbf16, #tpu.memory_space<vmem>>, vector<1x64x64xbf16>
    %177 = vector.shape_cast %176 : vector<1x64x64xbf16> to vector<64x64xbf16>
    %178 = arith.truncf %175 : vector<64x64xf32> to vector<64x64xbf16>
    %cst_101 = arith.constant dense<0.000000e+00> : vector<64x64xf32>
    %179 = tpu.matmul %178, %177, %cst_101 {dimension_numbers = #tpu.dot_dimension_numbers<[1], [0], [0], [1], [0, 0, 1, 1], [], []>} : vector<64x64xbf16>, vector<64x64xbf16>, vector<64x64xf32> -> vector<64x64xf32>
    %c1_102 = arith.constant 1 : index
    %c0_103 = arith.constant 0 : index
    %c0_104 = arith.constant 0 : index
    %180 = vector.load %arg11[%c1_102, %c0_103, %c0_104] : memref<2x1x64xf32, #tpu.memory_space<vmem>>, vector<1x1x64xf32>
    %181 = vector.shape_cast %180 : vector<1x1x64xf32> to vector<1x64xf32>
    %182 = vector.broadcast %181 : vector<1x64xf32> to vector<64x64xf32>
    %183 = arith.addf %179, %182 : vector<64x64xf32>
    %c1_105 = arith.constant 1 : index
    %c0_106 = arith.constant 0 : index
    %c0_107 = arith.constant 0 : index
    %184 = vector.load %arg12[%c1_105, %c0_106, %c0_107] : memref<2x64x64xbf16, #tpu.memory_space<vmem>>, vector<1x64x64xbf16>
    %185 = vector.shape_cast %184 : vector<1x64x64xbf16> to vector<64x64xbf16>
    %186 = arith.truncf %175 : vector<64x64xf32> to vector<64x64xbf16>
    %cst_108 = arith.constant dense<0.000000e+00> : vector<64x64xf32>
    %187 = tpu.matmul %186, %185, %cst_108 {dimension_numbers = #tpu.dot_dimension_numbers<[1], [0], [0], [1], [0, 0, 1, 1], [], []>} : vector<64x64xbf16>, vector<64x64xbf16>, vector<64x64xf32> -> vector<64x64xf32>
    %c1_109 = arith.constant 1 : index
    %c0_110 = arith.constant 0 : index
    %c0_111 = arith.constant 0 : index
    %188 = vector.load %arg13[%c1_109, %c0_110, %c0_111] : memref<2x1x64xf32, #tpu.memory_space<vmem>>, vector<1x1x64xf32>
    %189 = vector.shape_cast %188 : vector<1x1x64xf32> to vector<1x64xf32>
    %190 = vector.broadcast %189 : vector<1x64xf32> to vector<64x64xf32>
    %191 = arith.addf %187, %190 : vector<64x64xf32>
    %192 = arith.mulf %191, %8 : vector<64x64xf32>
    %c1_112 = arith.constant 1 : index
    %c0_113 = arith.constant 0 : index
    %c0_114 = arith.constant 0 : index
    %193 = vector.load %arg14[%c1_112, %c0_113, %c0_114] : memref<2x64x64xbf16, #tpu.memory_space<vmem>>, vector<1x64x64xbf16>
    %194 = vector.shape_cast %193 : vector<1x64x64xbf16> to vector<64x64xbf16>
    %195 = arith.truncf %175 : vector<64x64xf32> to vector<64x64xbf16>
    %cst_115 = arith.constant dense<0.000000e+00> : vector<64x64xf32>
    %196 = tpu.matmul %195, %194, %cst_115 {dimension_numbers = #tpu.dot_dimension_numbers<[1], [0], [0], [1], [0, 0, 1, 1], [], []>} : vector<64x64xbf16>, vector<64x64xbf16>, vector<64x64xf32> -> vector<64x64xf32>
    %c1_116 = arith.constant 1 : index
    %c0_117 = arith.constant 0 : index
    %c0_118 = arith.constant 0 : index
    %197 = vector.load %arg15[%c1_116, %c0_117, %c0_118] : memref<2x1x64xf32, #tpu.memory_space<vmem>>, vector<1x1x64xf32>
    %198 = vector.shape_cast %197 : vector<1x1x64xf32> to vector<1x64xf32>
    %199 = vector.broadcast %198 : vector<1x64xf32> to vector<64x64xf32>
    %200 = arith.addf %196, %199 : vector<64x64xf32>
    %201 = arith.mulf %200, %8 : vector<64x64xf32>
    %202 = arith.truncf %183 : vector<64x64xf32> to vector<64x64xbf16>
    %203 = arith.truncf %192 : vector<64x64xf32> to vector<64x64xbf16>
    %cst_119 = arith.constant dense<0.000000e+00> : vector<64x64xf32>
    %204 = tpu.matmul %202, %203, %cst_119 {dimension_numbers = #tpu.dot_dimension_numbers<[1], [1], [0], [0], [0, 0, 1, 0], [], []>} : vector<64x64xbf16>, vector<64x64xbf16>, vector<64x64xf32> -> vector<64x64xf32>
    %205 = arith.addf %204, %9 : vector<64x64xf32>
    %cst_120 = arith.constant dense<0xFF800000> : vector<64xf32>
    %206 = vector.multi_reduction <maximumf>, %205, %cst_120 [1] : vector<64x64xf32> to vector<64xf32>
    %207 = vector.shape_cast %206 : vector<64xf32> to vector<64x1xf32>
    %208 = vector.broadcast %207 : vector<64x1xf32> to vector<64x64xf32>
    %209 = arith.subf %205, %208 : vector<64x64xf32>
    %210 = math.exp %209 : vector<64x64xf32>
    %cst_121 = arith.constant dense<0.000000e+00> : vector<64xf32>
    %211 = vector.multi_reduction <add>, %210, %cst_121 [1] : vector<64x64xf32> to vector<64xf32>
    %212 = vector.shape_cast %211 : vector<64xf32> to vector<64x1xf32>
    %213 = tpu.reciprocal %212 {approx = true} : vector<64x1xf32> -> vector<64x1xf32>
    %214 = vector.broadcast %213 : vector<64x1xf32> to vector<64x64xf32>
    %215 = arith.mulf %210, %214 : vector<64x64xf32>
    %216 = arith.truncf %215 : vector<64x64xf32> to vector<64x64xbf16>
    %217 = arith.truncf %201 : vector<64x64xf32> to vector<64x64xbf16>
    %cst_122 = arith.constant dense<0.000000e+00> : vector<64x64xf32>
    %218 = tpu.matmul %216, %217, %cst_122 {dimension_numbers = #tpu.dot_dimension_numbers<[1], [0], [0], [1], [0, 0, 1, 1], [], []>} : vector<64x64xbf16>, vector<64x64xbf16>, vector<64x64xf32> -> vector<64x64xf32>
    %219 = arith.truncf %218 : vector<64x64xf32> to vector<64x64xbf16>
    %cst_123 = arith.constant dense<0.000000e+00> : vector<16x64xf32>
    %220 = tpu.matmul %7, %219, %cst_123 {dimension_numbers = #tpu.dot_dimension_numbers<[1], [0], [0], [1], [0, 0, 1, 1], [], []>} : vector<16x64xbf16>, vector<64x64xbf16>, vector<16x64xf32> -> vector<16x64xf32>
    %c1_124 = arith.constant 1 : index
    %c0_125 = arith.constant 0 : index
    %c0_126 = arith.constant 0 : index
    %221 = vector.load %arg16[%c1_124, %c0_125, %c0_126] : memref<2x64x64xbf16, #tpu.memory_space<vmem>>, vector<1x64x64xbf16>
    %222 = vector.shape_cast %221 : vector<1x64x64xbf16> to vector<64x64xbf16>
    %223 = arith.truncf %220 : vector<16x64xf32> to vector<16x64xbf16>
    %cst_127 = arith.constant dense<0.000000e+00> : vector<16x64xf32>
    %224 = tpu.matmul %223, %222, %cst_127 {dimension_numbers = #tpu.dot_dimension_numbers<[1], [0], [0], [1], [0, 0, 1, 1], [], []>} : vector<16x64xbf16>, vector<64x64xbf16>, vector<16x64xf32> -> vector<16x64xf32>
    %225 = arith.addf %147, %224 : vector<16x64xf32>
    %c1_128 = arith.constant 1 : index
    %c0_129 = arith.constant 0 : index
    %c0_130 = arith.constant 0 : index
    %226 = vector.load %arg17[%c1_128, %c0_129, %c0_130] : memref<2x1x64xf32, #tpu.memory_space<vmem>>, vector<1x1x64xf32>
    %227 = vector.shape_cast %226 : vector<1x1x64xf32> to vector<1x64xf32>
    %228 = vector.broadcast %227 : vector<1x64xf32> to vector<16x64xf32>
    %229 = arith.addf %225, %228 : vector<16x64xf32>
    %c1_131 = arith.constant 1 : index
    %c0_132 = arith.constant 0 : index
    %c0_133 = arith.constant 0 : index
    %230 = vector.load %arg18[%c1_131, %c0_132, %c0_133] : memref<2x1x64xf32, #tpu.memory_space<vmem>>, vector<1x1x64xf32>
    %231 = vector.shape_cast %230 : vector<1x1x64xf32> to vector<1x64xf32>
    %c1_134 = arith.constant 1 : index
    %c0_135 = arith.constant 0 : index
    %c0_136 = arith.constant 0 : index
    %232 = vector.load %arg19[%c1_134, %c0_135, %c0_136] : memref<2x1x64xf32, #tpu.memory_space<vmem>>, vector<1x1x64xf32>
    %233 = vector.shape_cast %232 : vector<1x1x64xf32> to vector<1x64xf32>
    %cst_137 = arith.constant dense<0.000000e+00> : vector<16xf32>
    %234 = vector.multi_reduction <add>, %229, %cst_137 [1] : vector<16x64xf32> to vector<16xf32>
    %235 = vector.shape_cast %234 : vector<16xf32> to vector<16x1xf32>
    %cst_138 = arith.constant 6.400000e+01 : f32
    %236 = vector.broadcast %cst_138 : f32 to vector<16x1xf32>
    %237 = arith.divf %235, %236 : vector<16x1xf32>
    %238 = arith.mulf %229, %229 : vector<16x64xf32>
    %cst_139 = arith.constant dense<0.000000e+00> : vector<16xf32>
    %239 = vector.multi_reduction <add>, %238, %cst_139 [1] : vector<16x64xf32> to vector<16xf32>
    %240 = vector.shape_cast %239 : vector<16xf32> to vector<16x1xf32>
    %cst_140 = arith.constant 6.400000e+01 : f32
    %241 = vector.broadcast %cst_140 : f32 to vector<16x1xf32>
    %242 = arith.divf %240, %241 : vector<16x1xf32>
    %243 = arith.mulf %237, %237 : vector<16x1xf32>
    %244 = arith.subf %242, %243 : vector<16x1xf32>
    %245 = vector.broadcast %237 : vector<16x1xf32> to vector<16x64xf32>
    %246 = arith.subf %229, %245 : vector<16x64xf32>
    %cst_141 = arith.constant 9.99999997E-7 : f32
    %247 = vector.broadcast %cst_141 : f32 to vector<16x1xf32>
    %248 = arith.addf %244, %247 : vector<16x1xf32>
    %249 = math.rsqrt %248 : vector<16x1xf32>
    %250 = vector.broadcast %249 : vector<16x1xf32> to vector<16x64xf32>
    %251 = arith.mulf %246, %250 : vector<16x64xf32>
    %252 = vector.broadcast %231 : vector<1x64xf32> to vector<16x64xf32>
    %253 = arith.mulf %251, %252 : vector<16x64xf32>
    %254 = vector.broadcast %233 : vector<1x64xf32> to vector<16x64xf32>
    %255 = arith.addf %253, %254 : vector<16x64xf32>
    %c1_142 = arith.constant 1 : index
    %c0_143 = arith.constant 0 : index
    %c0_144 = arith.constant 0 : index
    %256 = vector.load %arg20[%c1_142, %c0_143, %c0_144] : memref<2x64x256xbf16, #tpu.memory_space<vmem>>, vector<1x64x256xbf16>
    %257 = vector.shape_cast %256 : vector<1x64x256xbf16> to vector<64x256xbf16>
    %258 = arith.truncf %255 : vector<16x64xf32> to vector<16x64xbf16>
    %cst_145 = arith.constant dense<0.000000e+00> : vector<16x256xf32>
    %259 = tpu.matmul %258, %257, %cst_145 {dimension_numbers = #tpu.dot_dimension_numbers<[1], [0], [0], [1], [0, 0, 1, 1], [], []>} : vector<16x64xbf16>, vector<64x256xbf16>, vector<16x256xf32> -> vector<16x256xf32>
    %c1_146 = arith.constant 1 : index
    %c0_147 = arith.constant 0 : index
    %c0_148 = arith.constant 0 : index
    %260 = vector.load %arg21[%c1_146, %c0_147, %c0_148] : memref<2x1x256xf32, #tpu.memory_space<vmem>>, vector<1x1x256xf32>
    %261 = vector.shape_cast %260 : vector<1x1x256xf32> to vector<1x256xf32>
    %262 = vector.broadcast %261 : vector<1x256xf32> to vector<16x256xf32>
    %263 = arith.addf %259, %262 : vector<16x256xf32>
    %cst_149 = arith.constant 5.000000e-01 : f32
    %264 = vector.broadcast %cst_149 : f32 to vector<16x256xf32>
    %265 = arith.mulf %264, %263 : vector<16x256xf32>
    %cst_150 = arith.constant 4.471500e-02 : f32
    %266 = vector.broadcast %cst_150 : f32 to vector<16x256xf32>
    %267 = arith.mulf %266, %263 : vector<16x256xf32>
    %268 = arith.mulf %267, %263 : vector<16x256xf32>
    %269 = arith.mulf %268, %263 : vector<16x256xf32>
    %270 = arith.addf %263, %269 : vector<16x256xf32>
    %cst_151 = arith.constant 0.797884583 : f32
    %271 = vector.broadcast %cst_151 : f32 to vector<16x256xf32>
    %272 = arith.mulf %271, %270 : vector<16x256xf32>
    %273 = math.tanh %272 : vector<16x256xf32>
    %cst_152 = arith.constant 1.000000e+00 : f32
    %274 = vector.broadcast %cst_152 : f32 to vector<16x256xf32>
    %275 = arith.addf %274, %273 : vector<16x256xf32>
    %276 = arith.mulf %265, %275 : vector<16x256xf32>
    %c1_153 = arith.constant 1 : index
    %c0_154 = arith.constant 0 : index
    %c0_155 = arith.constant 0 : index
    %277 = vector.load %arg22[%c1_153, %c0_154, %c0_155] : memref<2x256x64xbf16, #tpu.memory_space<vmem>>, vector<1x256x64xbf16>
    %278 = vector.shape_cast %277 : vector<1x256x64xbf16> to vector<256x64xbf16>
    %279 = arith.truncf %276 : vector<16x256xf32> to vector<16x256xbf16>
    %cst_156 = arith.constant dense<0.000000e+00> : vector<16x64xf32>
    %280 = tpu.matmul %279, %278, %cst_156 {dimension_numbers = #tpu.dot_dimension_numbers<[1], [0], [0], [1], [0, 0, 1, 1], [], []>} : vector<16x256xbf16>, vector<256x64xbf16>, vector<16x64xf32> -> vector<16x64xf32>
    %281 = arith.addf %229, %280 : vector<16x64xf32>
    %c1_157 = arith.constant 1 : index
    %c0_158 = arith.constant 0 : index
    %c0_159 = arith.constant 0 : index
    %282 = vector.load %arg23[%c1_157, %c0_158, %c0_159] : memref<2x1x64xf32, #tpu.memory_space<vmem>>, vector<1x1x64xf32>
    %283 = vector.shape_cast %282 : vector<1x1x64xf32> to vector<1x64xf32>
    %284 = vector.broadcast %283 : vector<1x64xf32> to vector<16x64xf32>
    %285 = arith.addf %281, %284 : vector<16x64xf32>
    %c0_160 = arith.constant 0 : index
    %c0_161 = arith.constant 0 : index
    %286 = vector.load %arg24[%c0_160, %c0_161] : memref<1x64xf32, #tpu.memory_space<vmem>>, vector<1x64xf32>
    %c0_162 = arith.constant 0 : index
    %c0_163 = arith.constant 0 : index
    %287 = vector.load %arg25[%c0_162, %c0_163] : memref<1x64xf32, #tpu.memory_space<vmem>>, vector<1x64xf32>
    %cst_164 = arith.constant dense<0.000000e+00> : vector<16xf32>
    %288 = vector.multi_reduction <add>, %285, %cst_164 [1] : vector<16x64xf32> to vector<16xf32>
    %289 = vector.shape_cast %288 : vector<16xf32> to vector<16x1xf32>
    %cst_165 = arith.constant 6.400000e+01 : f32
    %290 = vector.broadcast %cst_165 : f32 to vector<16x1xf32>
    %291 = arith.divf %289, %290 : vector<16x1xf32>
    %292 = arith.mulf %285, %285 : vector<16x64xf32>
    %cst_166 = arith.constant dense<0.000000e+00> : vector<16xf32>
    %293 = vector.multi_reduction <add>, %292, %cst_166 [1] : vector<16x64xf32> to vector<16xf32>
    %294 = vector.shape_cast %293 : vector<16xf32> to vector<16x1xf32>
    %cst_167 = arith.constant 6.400000e+01 : f32
    %295 = vector.broadcast %cst_167 : f32 to vector<16x1xf32>
    %296 = arith.divf %294, %295 : vector<16x1xf32>
    %297 = arith.mulf %291, %291 : vector<16x1xf32>
    %298 = arith.subf %296, %297 : vector<16x1xf32>
    %299 = vector.broadcast %291 : vector<16x1xf32> to vector<16x64xf32>
    %300 = arith.subf %285, %299 : vector<16x64xf32>
    %cst_168 = arith.constant 9.99999997E-7 : f32
    %301 = vector.broadcast %cst_168 : f32 to vector<16x1xf32>
    %302 = arith.addf %298, %301 : vector<16x1xf32>
    %303 = math.rsqrt %302 : vector<16x1xf32>
    %304 = vector.broadcast %303 : vector<16x1xf32> to vector<16x64xf32>
    %305 = arith.mulf %300, %304 : vector<16x64xf32>
    %306 = vector.broadcast %286 : vector<1x64xf32> to vector<16x64xf32>
    %307 = arith.mulf %305, %306 : vector<16x64xf32>
    %308 = vector.broadcast %287 : vector<1x64xf32> to vector<16x64xf32>
    %309 = arith.addf %307, %308 : vector<16x64xf32>
    %c0_169 = arith.constant 0 : index
    %c0_170 = arith.constant 0 : index
    %310 = vector.load %arg26[%c0_169, %c0_170] : memref<64x128xbf16, #tpu.memory_space<vmem>>, vector<64x128xbf16>
    %311 = arith.truncf %309 : vector<16x64xf32> to vector<16x64xbf16>
    %cst_171 = arith.constant dense<0.000000e+00> : vector<16x128xf32>
    %312 = tpu.matmul %311, %310, %cst_171 {dimension_numbers = #tpu.dot_dimension_numbers<[1], [0], [0], [1], [0, 0, 1, 1], [], []>} : vector<16x64xbf16>, vector<64x128xbf16>, vector<16x128xf32> -> vector<16x128xf32>
    %c0_172 = arith.constant 0 : index
    %c0_173 = arith.constant 0 : index
    %313 = vector.load %arg27[%c0_172, %c0_173] : memref<1x128xf32, #tpu.memory_space<vmem>>, vector<1x128xf32>
    %314 = vector.broadcast %313 : vector<1x128xf32> to vector<16x128xf32>
    %315 = arith.addf %312, %314 : vector<16x128xf32>
    %c0_174 = arith.constant 0 : index
    %c0_175 = arith.constant 0 : index
    %316 = vector.load %arg28[%c0_174, %c0_175] : memref<16x128xf32, #tpu.memory_space<vmem>>, vector<16x128xf32>
    tpu.vector_store %arg28[%c0_174, %c0_175], %315 {strides = array<i32>} : memref<16x128xf32, #tpu.memory_space<vmem>>, vector<16x128xf32>,
    return
  }
  func.func @transform_0(%arg0: i32) -> (i32, i32) {
    %c0_i32 = arith.constant 0 : i32
    %c0_i32_0 = arith.constant 0 : i32
    %c0_i32_1 = arith.constant 0 : i32
    return %c0_i32, %c0_i32_0 : i32, i32
  }
  func.func @transform_1(%arg0: i32) -> (i32, i32) {
    %c0_i32 = arith.constant 0 : i32
    %c0_i32_0 = arith.constant 0 : i32
    %c0_i32_1 = arith.constant 0 : i32
    return %c0_i32, %c0_i32_0 : i32, i32
  }
  func.func @transform_2(%arg0: i32) -> (i32, i32) {
    %c0_i32 = arith.constant 0 : i32
    %c0_i32_0 = arith.constant 0 : i32
    %c0_i32_1 = arith.constant 0 : i32
    return %c0_i32, %c0_i32_0 : i32, i32
  }
  func.func @transform_3(%arg0: i32) -> (i32, i32) {
    %c0_i32 = arith.constant 0 : i32
    %c0_i32_0 = arith.constant 0 : i32
    %c0_i32_1 = arith.constant 0 : i32
    return %c0_i32, %c0_i32_0 : i32, i32
  }
  func.func @transform_4(%arg0: i32) -> (i32, i32) {
    %c0_i32 = arith.constant 0 : i32
    %c0_i32_0 = arith.constant 0 : i32
    %c0_i32_1 = arith.constant 0 : i32
    return %c0_i32, %c0_i32_0 : i32, i32
  }
  func.func @transform_5(%arg0: i32) -> (i32, i32) {
    %c0_i32 = arith.constant 0 : i32
    %c0_i32_0 = arith.constant 0 : i32
    %c0_i32_1 = arith.constant 0 : i32
    return %c0_i32, %c0_i32_0 : i32, i32
  }
  func.func @transform_6(%arg0: i32) -> (i32, i32) {
    %c0_i32 = arith.constant 0 : i32
    %c0_i32_0 = arith.constant 0 : i32
    %c0_i32_1 = arith.constant 0 : i32
    return %c0_i32, %c0_i32_0 : i32, i32
  }
  func.func @transform_7(%arg0: i32) -> (i32, i32, i32) {
    %c0_i32 = arith.constant 0 : i32
    %c0_i32_0 = arith.constant 0 : i32
    %c0_i32_1 = arith.constant 0 : i32
    %c0_i32_2 = arith.constant 0 : i32
    return %c0_i32, %c0_i32_0, %c0_i32_1 : i32, i32, i32
  }
  func.func @transform_8(%arg0: i32) -> (i32, i32, i32) {
    %c0_i32 = arith.constant 0 : i32
    %c0_i32_0 = arith.constant 0 : i32
    %c0_i32_1 = arith.constant 0 : i32
    %c0_i32_2 = arith.constant 0 : i32
    return %c0_i32, %c0_i32_0, %c0_i32_1 : i32, i32, i32
  }
  func.func @transform_9(%arg0: i32) -> (i32, i32, i32) {
    %c0_i32 = arith.constant 0 : i32
    %c0_i32_0 = arith.constant 0 : i32
    %c0_i32_1 = arith.constant 0 : i32
    %c0_i32_2 = arith.constant 0 : i32
    return %c0_i32, %c0_i32_0, %c0_i32_1 : i32, i32, i32
  }
  func.func @transform_10(%arg0: i32) -> (i32, i32, i32) {
    %c0_i32 = arith.constant 0 : i32
    %c0_i32_0 = arith.constant 0 : i32
    %c0_i32_1 = arith.constant 0 : i32
    %c0_i32_2 = arith.constant 0 : i32
    return %c0_i32, %c0_i32_0, %c0_i32_1 : i32, i32, i32
  }
  func.func @transform_11(%arg0: i32) -> (i32, i32, i32) {
    %c0_i32 = arith.constant 0 : i32
    %c0_i32_0 = arith.constant 0 : i32
    %c0_i32_1 = arith.constant 0 : i32
    %c0_i32_2 = arith.constant 0 : i32
    return %c0_i32, %c0_i32_0, %c0_i32_1 : i32, i32, i32
  }
  func.func @transform_12(%arg0: i32) -> (i32, i32, i32) {
    %c0_i32 = arith.constant 0 : i32
    %c0_i32_0 = arith.constant 0 : i32
    %c0_i32_1 = arith.constant 0 : i32
    %c0_i32_2 = arith.constant 0 : i32
    return %c0_i32, %c0_i32_0, %c0_i32_1 : i32, i32, i32
  }
  func.func @transform_13(%arg0: i32) -> (i32, i32, i32) {
    %c0_i32 = arith.constant 0 : i32
    %c0_i32_0 = arith.constant 0 : i32
    %c0_i32_1 = arith.constant 0 : i32
    %c0_i32_2 = arith.constant 0 : i32
    return %c0_i32, %c0_i32_0, %c0_i32_1 : i32, i32, i32
  }
  func.func @transform_14(%arg0: i32) -> (i32, i32, i32) {
    %c0_i32 = arith.constant 0 : i32
    %c0_i32_0 = arith.constant 0 : i32
    %c0_i32_1 = arith.constant 0 : i32
    %c0_i32_2 = arith.constant 0 : i32
    return %c0_i32, %c0_i32_0, %c0_i32_1 : i32, i32, i32
  }
  func.func @transform_15(%arg0: i32) -> (i32, i32, i32) {
    %c0_i32 = arith.constant 0 : i32
    %c0_i32_0 = arith.constant 0 : i32
    %c0_i32_1 = arith.constant 0 : i32
    %c0_i32_2 = arith.constant 0 : i32
    return %c0_i32, %c0_i32_0, %c0_i32_1 : i32, i32, i32
  }
  func.func @transform_16(%arg0: i32) -> (i32, i32, i32) {
    %c0_i32 = arith.constant 0 : i32
    %c0_i32_0 = arith.constant 0 : i32
    %c0_i32_1 = arith.constant 0 : i32
    %c0_i32_2 = arith.constant 0 : i32
    return %c0_i32, %c0_i32_0, %c0_i32_1 : i32, i32, i32
  }
  func.func @transform_17(%arg0: i32) -> (i32, i32, i32) {
    %c0_i32 = arith.constant 0 : i32
    %c0_i32_0 = arith.constant 0 : i32
    %c0_i32_1 = arith.constant 0 : i32
    %c0_i32_2 = arith.constant 0 : i32
    return %c0_i32, %c0_i32_0, %c0_i32_1 : i32, i32, i32
  }
  func.func @transform_18(%arg0: i32) -> (i32, i32, i32) {
    %c0_i32 = arith.constant 0 : i32
    %c0_i32_0 = arith.constant 0 : i32
    %c0_i32_1 = arith.constant 0 : i32
    %c0_i32_2 = arith.constant 0 : i32
    return %c0_i32, %c0_i32_0, %c0_i32_1 : i32, i32, i32
  }
  func.func @transform_19(%arg0: i32) -> (i32, i32, i32) {
    %c0_i32 = arith.constant 0 : i32
    %c0_i32_0 = arith.constant 0 : i32
    %c0_i32_1 = arith.constant 0 : i32
    %c0_i32_2 = arith.constant 0 : i32
    return %c0_i32, %c0_i32_0, %c0_i32_1 : i32, i32, i32
  }
  func.func @transform_20(%arg0: i32) -> (i32, i32, i32) {
    %c0_i32 = arith.constant 0 : i32
    %c0_i32_0 = arith.constant 0 : i32
    %c0_i32_1 = arith.constant 0 : i32
    %c0_i32_2 = arith.constant 0 : i32
    return %c0_i32, %c0_i32_0, %c0_i32_1 : i32, i32, i32
  }
  func.func @transform_21(%arg0: i32) -> (i32, i32, i32) {
    %c0_i32 = arith.constant 0 : i32
    %c0_i32_0 = arith.constant 0 : i32
    %c0_i32_1 = arith.constant 0 : i32
    %c0_i32_2 = arith.constant 0 : i32
    return %c0_i32, %c0_i32_0, %c0_i32_1 : i32, i32, i32
  }
  func.func @transform_22(%arg0: i32) -> (i32, i32, i32) {
    %c0_i32 = arith.constant 0 : i32
    %c0_i32_0 = arith.constant 0 : i32
    %c0_i32_1 = arith.constant 0 : i32
    %c0_i32_2 = arith.constant 0 : i32
    return %c0_i32, %c0_i32_0, %c0_i32_1 : i32, i32, i32
  }
  func.func @transform_23(%arg0: i32) -> (i32, i32) {
    %c0_i32 = arith.constant 0 : i32
    %c0_i32_0 = arith.constant 0 : i32
    %c0_i32_1 = arith.constant 0 : i32
    return %c0_i32, %c0_i32_0 : i32, i32
  }
  func.func @transform_24(%arg0: i32) -> (i32, i32) {
    %c0_i32 = arith.constant 0 : i32
    %c0_i32_0 = arith.constant 0 : i32
    %c0_i32_1 = arith.constant 0 : i32
    return %c0_i32, %c0_i32_0 : i32, i32
  }
  func.func @transform_25(%arg0: i32) -> (i32, i32) {
    %c0_i32 = arith.constant 0 : i32
    %c0_i32_0 = arith.constant 0 : i32
    %c0_i32_1 = arith.constant 0 : i32
    return %c0_i32, %c0_i32_0 : i32, i32
  }
  func.func @transform_26(%arg0: i32) -> (i32, i32) {
    %c0_i32 = arith.constant 0 : i32
    %c0_i32_0 = arith.constant 0 : i32
    %c0_i32_1 = arith.constant 0 : i32
    return %c0_i32, %c0_i32_0 : i32, i32
  }
  func.func @transform_27(%arg0: i32) -> (i32, i32) {
    %c0_i32 = arith.constant 0 : i32
    %c0_i32_0 = arith.constant 0 : i32
    %c0_i32_1 = arith.constant 0 : i32
    return %c0_i32, %c0_i32_0 : i32, i32
  }
}

</mosaic_0001>

<llo_original>
// kernel: vit_forward.1
$region0: #{vit_forward.1}
  #allocation0 [shape = 'u32[]', space=smem, size = 0x4, offset = 0x4, fixed_abs, tag = 'smem constant byte address 0x4 - core index']
  #allocation1 [shape = 'u32[144,128]{1,0:T(1,128)}', space=vmem, size = 0x12000, scoped, tag = 'internal scratch']
  %s0 = inlined_call_operand.vmem [shape: f32[16,768], index: 0, kind: input, shape index: {}]
  %s1 = inlined_call_operand.vmem [shape: f32[16,64], index: 1, kind: input, shape index: {}]
  %s2 = inlined_call_operand.vmem [shape: bf16[768,64], index: 2, kind: input, shape index: {}]
  %s3 = inlined_call_operand.vmem [shape: bf16[64,16], index: 3, kind: input, shape index: {}]
  %s4 = inlined_call_operand.vmem [shape: bf16[16,64], index: 4, kind: input, shape index: {}]
  %s5 = inlined_call_operand.vmem [shape: f32[64,64], index: 5, kind: input, shape index: {}]
  %s6 = inlined_call_operand.vmem [shape: f32[64,64], index: 6, kind: input, shape index: {}]
  %s7 = inlined_call_operand.vmem [shape: f32[2,1,64], index: 7, kind: input, shape index: {}]
  %s8 = inlined_call_operand.vmem [shape: f32[2,1,64], index: 8, kind: input, shape index: {}]
  %s9 = inlined_call_operand.vmem [shape: bf16[2,64,64], index: 9, kind: input, shape index: {}]
  %s10 = inlined_call_operand.vmem [shape: f32[2,1,64], index: 10, kind: input, shape index: {}]
  %s11 = inlined_call_operand.vmem [shape: bf16[2,64,64], index: 11, kind: input, shape index: {}]
  %s12 = inlined_call_operand.vmem [shape: f32[2,1,64], index: 12, kind: input, shape index: {}]
  %s13 = inlined_call_operand.vmem [shape: bf16[2,64,64], index: 13, kind: input, shape index: {}]
  %s14 = inlined_call_operand.vmem [shape: f32[2,1,64], index: 14, kind: input, shape index: {}]
  %s15 = inlined_call_operand.vmem [shape: bf16[2,64,64], index: 15, kind: input, shape index: {}]
  %s16 = inlined_call_operand.vmem [shape: f32[2,1,64], index: 16, kind: input, shape index: {}]
  %s17 = inlined_call_operand.vmem [shape: f32[2,1,64], index: 17, kind: input, shape index: {}]
  %s18 = inlined_call_operand.vmem [shape: f32[2,1,64], index: 18, kind: input, shape index: {}]
  %s19 = inlined_call_operand.vmem [shape: bf16[2,64,256], index: 19, kind: input, shape index: {}]
  %s20 = inlined_call_operand.vmem [shape: f32[2,1,256], index: 20, kind: input, shape index: {}]
  %s21 = inlined_call_operand.vmem [shape: bf16[2,256,64], index: 21, kind: input, shape index: {}]
  %s22 = inlined_call_operand.vmem [shape: f32[2,1,64], index: 22, kind: input, shape index: {}]
  %s23 = inlined_call_operand.vmem [shape: f32[1,64], index: 23, kind: input, shape index: {}]
  %s24 = inlined_call_operand.vmem [shape: f32[1,64], index: 24, kind: input, shape index: {}]
  %s25 = inlined_call_operand.vmem [shape: bf16[64,128], index: 25, kind: input, shape index: {}]
  %s26 = inlined_call_operand.vmem [shape: f32[1,128], index: 26, kind: input, shape index: {}]
  %s27 = inlined_call_operand.vmem [shape: f32[16,128], index: 27, kind: output, shape index: {}]
  %s28 = sld [smem:[#allocation0]]
  $region118: #{vit_forward.1} parent=0
    _
  %s30 = ssub.s32 1, %s28
  %s31 = scalar_select 0, %s30, %s28
  // Predicated region
  $region2: #{vit_forward.1} parent=0 // pred_check
    _
  $region3: #{vit_forward.1} parent=0 // pred_check_branch
    %33 = sbr.rel (0) target = $region5
  $region4: #{vit_forward.1} parent=0 // pred_region
    _
  $region5: #{vit_forward.1} parent=0 // pred_fallthru
    _
  // Predicated region
  $region6: #{vit_forward.1} parent=0 // pred_check
    _
  $region7: #{vit_forward.1} parent=0 // pred_check_branch
    %35 = sbr.rel (0) target = $region9
  $region8: #{vit_forward.1} parent=0 // pred_region
    _
  $region9: #{vit_forward.1} parent=0 // pred_fallthru
    _
  // Predicated region
  $region10: #{vit_forward.1} parent=0 // pred_check
    _
  $region11: #{vit_forward.1} parent=0 // pred_check_branch
    %37 = sbr.rel (0) target = $region13
  $region12: #{vit_forward.1} parent=0 // pred_region
    _
  $region13: #{vit_forward.1} parent=0 // pred_fallthru
    _
  // Predicated region
  $region14: #{vit_forward.1} parent=0 // pred_check
    _
  $region15: #{vit_forward.1} parent=0 // pred_check_branch
    %39 = sbr.rel (0) target = $region17
  $region16: #{vit_forward.1} parent=0 // pred_region
    _
  $region17: #{vit_forward.1} parent=0 // pred_fallthru
    _
  // Predicated region
  $region18: #{vit_forward.1} parent=0 // pred_check
    _
  $region19: #{vit_forward.1} parent=0 // pred_check_branch
    %41 = sbr.rel (0) target = $region21
  $region20: #{vit_forward.1} parent=0 // pred_region
    _
  $region21: #{vit_forward.1} parent=0 // pred_fallthru
    _
  // Predicated region
  $region22: #{vit_forward.1} parent=0 // pred_check
    _
  $region23: #{vit_forward.1} parent=0 // pred_check_branch
    %43 = sbr.rel (0) target = $region25
  $region24: #{vit_forward.1} parent=0 // pred_region
    _
  $region25: #{vit_forward.1} parent=0 // pred_fallthru
    _
  // Predicated region
  $region26: #{vit_forward.1} parent=0 // pred_check
    _
  $region27: #{vit_forward.1} parent=0 // pred_check_branch
    %45 = sbr.rel (0) target = $region29
  $region28: #{vit_forward.1} parent=0 // pred_region
    _
  $region29: #{vit_forward.1} parent=0 // pred_fallthru
    _
  // Predicated region
  $region30: #{vit_forward.1} parent=0 // pred_check
    _
  $region31: #{vit_forward.1} parent=0 // pred_check_branch
    %47 = sbr.rel (0) target = $region33
  $region32: #{vit_forward.1} parent=0 // pred_region
    _
  $region33: #{vit_forward.1} parent=0 // pred_fallthru
    _
  // Predicated region
  $region34: #{vit_forward.1} parent=0 // pred_check
    _
  $region35: #{vit_forward.1} parent=0 // pred_check_branch
    %49 = sbr.rel (0) target = $region37
  $region36: #{vit_forward.1} parent=0 // pred_region
    _
  $region37: #{vit_forward.1} parent=0 // pred_fallthru
    _
  // Predicated region
  $region38: #{vit_forward.1} parent=0 // pred_check
    _
  $region39: #{vit_forward.1} parent=0 // pred_check_branch
    %51 = sbr.rel (0) target = $region41
  $region40: #{vit_forward.1} parent=0 // pred_region
    _
  $region41: #{vit_forward.1} parent=0 // pred_fallthru
    _
  // Predicated region
  $region42: #{vit_forward.1} parent=0 // pred_check
    _
  $region43: #{vit_forward.1} parent=0 // pred_check_branch
    %53 = sbr.rel (0) target = $region45
  $region44: #{vit_forward.1} parent=0 // pred_region
    _
  $region45: #{vit_forward.1} parent=0 // pred_fallthru
    _
  // Predicated region
  $region46: #{vit_forward.1} parent=0 // pred_check
    _
  $region47: #{vit_forward.1} parent=0 // pred_check_branch
    %55 = sbr.rel (0) target = $region49
  $region48: #{vit_forward.1} parent=0 // pred_region
    _
  $region49: #{vit_forward.1} parent=0 // pred_fallthru
    _
  // Predicated region
  $region50: #{vit_forward.1} parent=0 // pred_check
    _
  $region51: #{vit_forward.1} parent=0 // pred_check_branch
    %57 = sbr.rel (0) target = $region53
  $region52: #{vit_forward.1} parent=0 // pred_region
    _
  $region53: #{vit_forward.1} parent=0 // pred_fallthru
    _
  // Predicated region
  $region54: #{vit_forward.1} parent=0 // pred_check
    _
  $region55: #{vit_forward.1} parent=0 // pred_check_branch
    %59 = sbr.rel (0) target = $region57
  $region56: #{vit_forward.1} parent=0 // pred_region
    _
  $region57: #{vit_forward.1} parent=0 // pred_fallthru
    _
  // Predicated region
  $region58: #{vit_forward.1} parent=0 // pred_check
    _
  $region59: #{vit_forward.1} parent=0 // pred_check_branch
    %61 = sbr.rel (0) target = $region61
  $region60: #{vit_forward.1} parent=0 // pred_region
    _
  $region61: #{vit_forward.1} parent=0 // pred_fallthru
    _
  // Predicated region
  $region62: #{vit_forward.1} parent=0 // pred_check
    _
  $region63: #{vit_forward.1} parent=0 // pred_check_branch
    %63 = sbr.rel (0) target = $region65
  $region64: #{vit_forward.1} parent=0 // pred_region
    _
  $region65: #{vit_forward.1} parent=0 // pred_fallthru
    _
  // Predicated region
  $region66: #{vit_forward.1} parent=0 // pred_check
    _
  $region67: #{vit_forward.1} parent=0 // pred_check_branch
    %65 = sbr.rel (0) target = $region69
  $region68: #{vit_forward.1} parent=0 // pred_region
    _
  $region69: #{vit_forward.1} parent=0 // pred_fallthru
    _
  // Predicated region
  $region70: #{vit_forward.1} parent=0 // pred_check
    _
  $region71: #{vit_forward.1} parent=0 // pred_check_branch
    %67 = sbr.rel (0) target = $region73
  $region72: #{vit_forward.1} parent=0 // pred_region
    _
  $region73: #{vit_forward.1} parent=0 // pred_fallthru
    _
  // Predicated region
  $region74: #{vit_forward.1} parent=0 // pred_check
    _
  $region75: #{vit_forward.1} parent=0 // pred_check_branch
    %69 = sbr.rel (0) target = $region77
  $region76: #{vit_forward.1} parent=0 // pred_region
    _
  $region77: #{vit_forward.1} parent=0 // pred_fallthru
    _
  // Predicated region
  $region78: #{vit_forward.1} parent=0 // pred_check
    _
  $region79: #{vit_forward.1} parent=0 // pred_check_branch
    %71 = sbr.rel (0) target = $region81
  $region80: #{vit_forward.1} parent=0 // pred_region
    _
  $region81: #{vit_forward.1} parent=0 // pred_fallthru
    _
  // Predicated region
  $region82: #{vit_forward.1} parent=0 // pred_check
    _
  $region83: #{vit_forward.1} parent=0 // pred_check_branch
    %73 = sbr.rel (0) target = $region85
  $region84: #{vit_forward.1} parent=0 // pred_region
    _
  $region85: #{vit_forward.1} parent=0 // pred_fallthru
    _
  // Predicated region
  $region86: #{vit_forward.1} parent=0 // pred_check
    _
  $region87: #{vit_forward.1} parent=0 // pred_check_branch
    %75 = sbr.rel (0) target = $region89
  $region88: #{vit_forward.1} parent=0 // pred_region
    _
  $region89: #{vit_forward.1} parent=0 // pred_fallthru
    _
  // Predicated region
  $region90: #{vit_forward.1} parent=0 // pred_check
    _
  $region91: #{vit_forward.1} parent=0 // pred_check_branch
    %77 = sbr.rel (0) target = $region93
  $region92: #{vit_forward.1} parent=0 // pred_region
    _
  $region93: #{vit_forward.1} parent=0 // pred_fallthru
    _
  // Predicated region
  $region94: #{vit_forward.1} parent=0 // pred_check
    _
  $region95: #{vit_forward.1} parent=0 // pred_check_branch
    %79 = sbr.rel (0) target = $region97
  $region96: #{vit_forward.1} parent=0 // pred_region
    _
  $region97: #{vit_forward.1} parent=0 // pred_fallthru
    _
  // Predicated region
  $region98: #{vit_forward.1} parent=0 // pred_check
    _
  $region99: #{vit_forward.1} parent=0 // pred_check_branch
    %81 = sbr.rel (0) target = $region101
  $region100: #{vit_forward.1} parent=0 // pred_region
    _
  $region101: #{vit_forward.1} parent=0 // pred_fallthru
    _
  // Predicated region
  $region102: #{vit_forward.1} parent=0 // pred_check
    _
  $region103: #{vit_forward.1} parent=0 // pred_check_branch
    %83 = sbr.rel (0) target = $region105
  $region104: #{vit_forward.1} parent=0 // pred_region
    _
  $region105: #{vit_forward.1} parent=0 // pred_fallthru
    _
  // Predicated region
  $region106: #{vit_forward.1} parent=0 // pred_check
    _
  $region107: #{vit_forward.1} parent=0 // pred_check_branch
    %85 = sbr.rel (0) target = $region109
  $region108: #{vit_forward.1} parent=0 // pred_region
    _
  $region109: #{vit_forward.1} parent=0 // pred_fallthru
    _
  %v87 = vld [vmem:[%s0] sm:$0xff]
  %v88 = vld [vmem:[%s0 + $0x8] sm:$0xff]
  %v89 = vld [vmem:[%s0 + $0x10] sm:$0xff]
  %v90 = vld [vmem:[%s0 + $0x18] sm:$0xff]
  %v91 = vld [vmem:[%s0 + $0x20] sm:$0xff]
  %v92 = vld [vmem:[%s0 + $0x28] sm:$0xff]
  %v93 = vld [vmem:[%s0 + $0x30] sm:$0xff]
  %v94 = vld [vmem:[%s0 + $0x38] sm:$0xff]
  %v95 = vld [vmem:[%s0 + $0x40] sm:$0xff]
  %v96 = vld [vmem:[%s0 + $0x48] sm:$0xff]
  %v97 = vld [vmem:[%s0 + $0x50] sm:$0xff]
  %v98 = vld [vmem:[%s0 + $0x58] sm:$0xff]
  %v99 = vld [vmem:[%s2] sm:$0xf]
  %v100 = vld [vmem:[%s2 + $0x4] sm:$0xf]
  %v101 = vld [vmem:[%s2 + $0x8] sm:$0xf]
  %v102 = vld [vmem:[%s2 + $0xc] sm:$0xf]
  %v103 = vld [vmem:[%s2 + $0x10] sm:$0xf]
  %v104 = vld [vmem:[%s2 + $0x14] sm:$0xf]
  %v105 = vld [vmem:[%s2 + $0x18] sm:$0xf]
  %v106 = vld [vmem:[%s2 + $0x1c] sm:$0xf]
  %v107 = vld [vmem:[%s2 + $0x20] sm:$0xf]
  %v108 = vld [vmem:[%s2 + $0x24] sm:$0xf]
  %v109 = vld [vmem:[%s2 + $0x28] sm:$0xf]
  %v110 = vld [vmem:[%s2 + $0x2c] sm:$0xf]
  %v111 = vld [vmem:[%s2 + $0x30] sm:$0xf]
  %v112 = vld [vmem:[%s2 + $0x34] sm:$0xf]
  %v113 = vld [vmem:[%s2 + $0x38] sm:$0xf]
  %v114 = vld [vmem:[%s2 + $0x3c] sm:$0xf]
  %v115 = vld [vmem:[%s2 + $0x40] sm:$0xf]
  %v116 = vld [vmem:[%s2 + $0x44] sm:$0xf]
  %v117 = vld [vmem:[%s2 + $0x48] sm:$0xf]
  %v118 = vld [vmem:[%s2 + $0x4c] sm:$0xf]
  %v119 = vld [vmem:[%s2 + $0x50] sm:$0xf]
  %v120 = vld [vmem:[%s2 + $0x54] sm:$0xf]
  %v121 = vld [vmem:[%s2 + $0x58] sm:$0xf]
  %v122 = vld [vmem:[%s2 + $0x5c] sm:$0xf]
  %v123 = vld [vmem:[%s2 + $0x60] sm:$0xf]
  %v124 = vld [vmem:[%s2 + $0x64] sm:$0xf]
  %v125 = vld [vmem:[%s2 + $0x68] sm:$0xf]
  %v126 = vld [vmem:[%s2 + $0x6c] sm:$0xf]
  %v127 = vld [vmem:[%s2 + $0x70] sm:$0xf]
  %v128 = vld [vmem:[%s2 + $0x74] sm:$0xf]
  %v129 = vld [vmem:[%s2 + $0x78] sm:$0xf]
  %v130 = vld [vmem:[%s2 + $0x7c] sm:$0xf]
  %v131 = vld [vmem:[%s2 + $0x80] sm:$0xf]
  %v132 = vld [vmem:[%s2 + $0x84] sm:$0xf]
  %v133 = vld [vmem:[%s2 + $0x88] sm:$0xf]
  %v134 = vld [vmem:[%s2 + $0x8c] sm:$0xf]
  %v135 = vld [vmem:[%s2 + $0x90] sm:$0xf]
  %v136 = vld [vmem:[%s2 + $0x94] sm:$0xf]
  %v137 = vld [vmem:[%s2 + $0x98] sm:$0xf]
  %v138 = vld [vmem:[%s2 + $0x9c] sm:$0xf]
  %v139 = vld [vmem:[%s2 + $0xa0] sm:$0xf]
  %v140 = vld [vmem:[%s2 + $0xa4] sm:$0xf]
  %v141 = vld [vmem:[%s2 + $0xa8] sm:$0xf]
  %v142 = vld [vmem:[%s2 + $0xac] sm:$0xf]
  %v143 = vld [vmem:[%s2 + $0xb0] sm:$0xf]
  %v144 = vld [vmem:[%s2 + $0xb4] sm:$0xf]
  %v145 = vld [vmem:[%s2 + $0xb8] sm:$0xf]
  %v146 = vld [vmem:[%s2 + $0xbc] sm:$0xf]
  %v147 = vld [vmem:[%s2 + $0xc0] sm:$0xf]
  %v148 = vld [vmem:[%s2 + $0xc4] sm:$0xf]
  %v149 = vld [vmem:[%s2 + $0xc8] sm:$0xf]
  %v150 = vld [vmem:[%s2 + $0xcc] sm:$0xf]
  %v151 = vld [vmem:[%s2 + $0xd0] sm:$0xf]
  %v152 = vld [vmem:[%s2 + $0xd4] sm:$0xf]
  %v153 = vld [vmem:[%s2 + $0xd8] sm:$0xf]
  %v154 = vld [vmem:[%s2 + $0xdc] sm:$0xf]
  %v155 = vld [vmem:[%s2 + $0xe0] sm:$0xf]
  %v156 = vld [vmem:[%s2 + $0xe4] sm:$0xf]
  %v157 = vld [vmem:[%s2 + $0xe8] sm:$0xf]
  %v158 = vld [vmem:[%s2 + $0xec] sm:$0xf]
  %v159 = vld [vmem:[%s2 + $0xf0] sm:$0xf]
  %v160 = vld [vmem:[%s2 + $0xf4] sm:$0xf]
  %v161 = vld [vmem:[%s2 + $0xf8] sm:$0xf]
  %v162 = vld [vmem:[%s2 + $0xfc] sm:$0xf]
  %v163 = vld [vmem:[%s2 + $0x100] sm:$0xf]
  %v164 = vld [vmem:[%s2 + $0x104] sm:$0xf]
  %v165 = vld [vmem:[%s2 + $0x108] sm:$0xf]
  %v166 = vld [vmem:[%s2 + $0x10c] sm:$0xf]
  %v167 = vld [vmem:[%s2 + $0x110] sm:$0xf]
  %v168 = vld [vmem:[%s2 + $0x114] sm:$0xf]
  %v169 = vld [vmem:[%s2 + $0x118] sm:$0xf]
  %v170 = vld [vmem:[%s2 + $0x11c] sm:$0xf]
  %v171 = vld [vmem:[%s2 + $0x120] sm:$0xf]
  %v172 = vld [vmem:[%s2 + $0x124] sm:$0xf]
  %v173 = vld [vmem:[%s2 + $0x128] sm:$0xf]
  %v174 = vld [vmem:[%s2 + $0x12c] sm:$0xf]
  %v175 = vld [vmem:[%s2 + $0x130] sm:$0xf]
  %v176 = vld [vmem:[%s2 + $0x134] sm:$0xf]
  %v177 = vld [vmem:[%s2 + $0x138] sm:$0xf]
  %v178 = vld [vmem:[%s2 + $0x13c] sm:$0xf]
  %v179 = vld [vmem:[%s2 + $0x140] sm:$0xf]
  %v180 = vld [vmem:[%s2 + $0x144] sm:$0xf]
  %v181 = vld [vmem:[%s2 + $0x148] sm:$0xf]
  %v182 = vld [vmem:[%s2 + $0x14c] sm:$0xf]
  %v183 = vld [vmem:[%s2 + $0x150] sm:$0xf]
  %v184 = vld [vmem:[%s2 + $0x154] sm:$0xf]
  %v185 = vld [vmem:[%s2 + $0x158] sm:$0xf]
  %v186 = vld [vmem:[%s2 + $0x15c] sm:$0xf]
  %v187 = vld [vmem:[%s2 + $0x160] sm:$0xf]
  %v188 = vld [vmem:[%s2 + $0x164] sm:$0xf]
  %v189 = vld [vmem:[%s2 + $0x168] sm:$0xf]
  %v190 = vld [vmem:[%s2 + $0x16c] sm:$0xf]
  %v191 = vld [vmem:[%s2 + $0x170] sm:$0xf]
  %v192 = vld [vmem:[%s2 + $0x174] sm:$0xf]
  %v193 = vld [vmem:[%s2 + $0x178] sm:$0xf]
  %v194 = vld [vmem:[%s2 + $0x17c] sm:$0xf]
  %v195 = vpack.c.bf16 %v93, %v87
  %v196 = vpack.c.bf16 %v94, %v88
  %v197 = vpack.c.bf16 %v95, %v89
  %v198 = vpack.c.bf16 %v96, %v90
  %v199 = vpack.c.bf16 %v97, %v91
  %v200 = vpack.c.bf16 %v98, %v92
  %v201 = vld [vmem:[%s1] sm:$0xff]
  %v202 = vld [vmem:[%s1 + $0x8] sm:$0xff]
  %v299 = vunpack.c.l.b16 %v99
  %v300 = vunpack.c.l.b16 %v100
  %v301 = vunpack.c.l.b16 %v101
  %v302 = vunpack.c.l.b16 %v102
  %v303 = vunpack.c.l.b16 %v103
  %v304 = vunpack.c.l.b16 %v104
  %v305 = vunpack.c.l.b16 %v105
  %v306 = vunpack.c.l.b16 %v106
  %v307 = vunpack.c.l.b16 %v107
  %v308 = vunpack.c.l.b16 %v108
  %v309 = vunpack.c.l.b16 %v109
  %v310 = vunpack.c.l.b16 %v110
  %v311 = vunpack.c.l.b16 %v111
  %v312 = vunpack.c.l.b16 %v112
  %v313 = vunpack.c.l.b16 %v113
  %v314 = vunpack.c.l.b16 %v114
  %v315 = vunpack.c.l.b16 %v115
  %v316 = vunpack.c.l.b16 %v116
  %v317 = vunpack.c.l.b16 %v117
  %v318 = vunpack.c.l.b16 %v118
  %v319 = vunpack.c.l.b16 %v119
  %v320 = vunpack.c.l.b16 %v120
  %v321 = vunpack.c.l.b16 %v121
  %v322 = vunpack.c.l.b16 %v122
  %v323 = vunpack.c.l.b16 %v123
  %v324 = vunpack.c.l.b16 %v124
  %v325 = vunpack.c.l.b16 %v125
  %v326 = vunpack.c.l.b16 %v126
  %v327 = vunpack.c.l.b16 %v127
  %v328 = vunpack.c.l.b16 %v128
  %v329 = vunpack.c.l.b16 %v129
  %v330 = vunpack.c.l.b16 %v130
  %v331 = vunpack.c.l.b16 %v131
  %v332 = vunpack.c.l.b16 %v132
  %v333 = vunpack.c.l.b16 %v133
  %v334 = vunpack.c.l.b16 %v134
  %v335 = vunpack.c.l.b16 %v135
  %v336 = vunpack.c.l.b16 %v136
  %v337 = vunpack.c.l.b16 %v137
  %v338 = vunpack.c.l.b16 %v138
  %v339 = vunpack.c.l.b16 %v139
  %v340 = vunpack.c.l.b16 %v140
  %v341 = vunpack.c.l.b16 %v141
  %v342 = vunpack.c.l.b16 %v142
  %v343 = vunpack.c.l.b16 %v143
  %v344 = vunpack.c.l.b16 %v144
  %v345 = vunpack.c.l.b16 %v145
  %v346 = vunpack.c.l.b16 %v146
  %v347 = vunpack.c.l.b16 %v147
  %v348 = vunpack.c.l.b16 %v148
  %v349 = vunpack.c.l.b16 %v149
  %v350 = vunpack.c.l.b16 %v150
  %v351 = vunpack.c.l.b16 %v151
  %v352 = vunpack.c.l.b16 %v152
  %v353 = vunpack.c.l.b16 %v153
  %v354 = vunpack.c.l.b16 %v154
  %v355 = vunpack.c.l.b16 %v155
  %v356 = vunpack.c.l.b16 %v156
  %v357 = vunpack.c.l.b16 %v157
  %v358 = vunpack.c.l.b16 %v158
  %v359 = vunpack.c.l.b16 %v159
  %v360 = vunpack.c.l.b16 %v160
  %v361 = vunpack.c.l.b16 %v161
  %v362 = vunpack.c.l.b16 %v162
  %v363 = vunpack.c.l.b16 %v163
  %v364 = vunpack.c.l.b16 %v164
  %v365 = vunpack.c.l.b16 %v165
  %v366 = vunpack.c.l.b16 %v166
  %v367 = vunpack.c.l.b16 %v167
  %v368 = vunpack.c.l.b16 %v168
  %v369 = vunpack.c.l.b16 %v169
  %v370 = vunpack.c.l.b16 %v170
  %v371 = vunpack.c.l.b16 %v171
  %v372 = vunpack.c.l.b16 %v172
  %v373 = vunpack.c.l.b16 %v173
  %v374 = vunpack.c.l.b16 %v174
  %v375 = vunpack.c.l.b16 %v175
  %v376 = vunpack.c.l.b16 %v176
  %v377 = vunpack.c.l.b16 %v177
  %v378 = vunpack.c.l.b16 %v178
  %v379 = vunpack.c.l.b16 %v179
  %v380 = vunpack.c.l.b16 %v180
  %v381 = vunpack.c.l.b16 %v181
  %v382 = vunpack.c.l.b16 %v182
  %v383 = vunpack.c.l.b16 %v183
  %v384 = vunpack.c.l.b16 %v184
  %v385 = vunpack.c.l.b16 %v185
  %v386 = vunpack.c.l.b16 %v186
  %v387 = vunpack.c.l.b16 %v187
  %v388 = vunpack.c.l.b16 %v188
  %v389 = vunpack.c.l.b16 %v189
  %v390 = vunpack.c.l.b16 %v190
  %v391 = vunpack.c.l.b16 %v191
  %v392 = vunpack.c.l.b16 %v192
  %v393 = vunpack.c.l.b16 %v193
  %v394 = vunpack.c.l.b16 %v194
  %v395 = vpack.c.b16 %v300, %v299
  %v396 = vpack.c.b16 %v302, %v301
  %v397 = vpack.c.b16 %v304, %v303
  %v398 = vpack.c.b16 %v306, %v305
  %v399 = vpack.c.b16 %v308, %v307
  %v400 = vpack.c.b16 %v310, %v309
  %v401 = vpack.c.b16 %v312, %v311
  %v402 = vpack.c.b16 %v314, %v313
  %v403 = vpack.c.b16 %v316, %v315
  %v404 = vpack.c.b16 %v318, %v317
  %v405 = vpack.c.b16 %v320, %v319
  %v406 = vpack.c.b16 %v322, %v321
  %v407 = vpack.c.b16 %v324, %v323
  %v408 = vpack.c.b16 %v326, %v325
  %v409 = vpack.c.b16 %v328, %v327
  %v410 = vpack.c.b16 %v330, %v329
  %v411 = vpack.c.b16 %v332, %v331
  %v412 = vpack.c.b16 %v334, %v333
  %v413 = vpack.c.b16 %v336, %v335
  %v414 = vpack.c.b16 %v338, %v337
  %v415 = vpack.c.b16 %v340, %v339
  %v416 = vpack.c.b16 %v342, %v341
  %v417 = vpack.c.b16 %v344, %v343
  %v418 = vpack.c.b16 %v346, %v345
  %v419 = vpack.c.b16 %v348, %v347
  %v420 = vpack.c.b16 %v350, %v349
  %v421 = vpack.c.b16 %v352, %v351
  %v422 = vpack.c.b16 %v354, %v353
  %v423 = vpack.c.b16 %v356, %v355
  %v424 = vpack.c.b16 %v358, %v357
  %v425 = vpack.c.b16 %v360, %v359
  %v426 = vpack.c.b16 %v362, %v361
  %v427 = vpack.c.b16 %v364, %v363
  %v428 = vpack.c.b16 %v366, %v365
  %v429 = vpack.c.b16 %v368, %v367
  %v430 = vpack.c.b16 %v370, %v369
  %v431 = vpack.c.b16 %v372, %v371
  %v432 = vpack.c.b16 %v374, %v373
  %v433 = vpack.c.b16 %v376, %v375
  %v434 = vpack.c.b16 %v378, %v377
  %v435 = vpack.c.b16 %v380, %v379
  %v436 = vpack.c.b16 %v382, %v381
  %v437 = vpack.c.b16 %v384, %v383
  %v438 = vpack.c.b16 %v386, %v385
  %v439 = vpack.c.b16 %v388, %v387
  %v440 = vpack.c.b16 %v390, %v389
  %v441 = vpack.c.b16 %v392, %v391
  %v442 = vpack.c.b16 %v394, %v393
  %491 = vmatprep.subr.bf16.mxu0 0
  %492 = vmatpush1.bf16.msra.mxu0 %v402
  %493 = vmatprep.subr.bf16.mxu0 0
  %494 = vmatpush1.bf16.msra.mxu0 %v401
  %495 = vmatprep.subr.bf16.mxu0 0
  %496 = vmatpush1.bf16.msra.mxu0 %v400
  %497 = vmatprep.subr.bf16.mxu0 0
  %498 = vmatpush1.bf16.msra.mxu0 %v399
  %499 = vmatprep.subr.bf16.mxu0 0
  %500 = vmatpush1.bf16.msra.mxu0 %v398
  %501 = vmatprep.subr.bf16.mxu0 0
  %502 = vmatpush1.bf16.msra.mxu0 %v397
  %503 = vmatprep.subr.bf16.mxu0 0
  %504 = vmatpush1.bf16.msra.mxu0 %v396
  %505 = vmatprep.subr.bf16.mxu0 0
  %506 = vmatpush1.bf16.msra.mxu0 %v395
  %507 = vmatprep.subr.bf16.mxu0 0
  %508 = vmatpush2.bf16.msra.mxu0 %v410
  %509 = vmatprep.subr.bf16.mxu0 0
  %510 = vmatpush2.bf16.msra.mxu0 %v409
  %511 = vmatprep.subr.bf16.mxu0 0
  %512 = vmatpush2.bf16.msra.mxu0 %v408
  %513 = vmatprep.subr.bf16.mxu0 0
  %514 = vmatpush2.bf16.msra.mxu0 %v407
  %515 = vmatprep.subr.bf16.mxu0 0
  %516 = vmatpush2.bf16.msra.mxu0 %v406
  %517 = vmatprep.subr.bf16.mxu0 0
  %518 = vmatpush2.bf16.msra.mxu0 %v405
  %519 = vmatprep.subr.bf16.mxu0 0
  %520 = vmatpush2.bf16.msra.mxu0 %v404
  %521 = vmatprep.subr.bf16.mxu0 0
  %522 = vmatpush2.bf16.msra.mxu0 %v403
  %523 = vmatprep.mubr.bf16.mxu0 %v196
  %524 = vmatmul.mubr.bf16.gmra.mxu0 %v195
  %v525 = vpop.f32.mrf.mxu0
  %v526 = vadd.f32 %v201, %v525
  %v527 = vpop.f32.mrf.mxu0
  %v528 = vpop.f32.mrf.mxu0
  %v529 = vadd.f32 %v202, %v528
  %v530 = vpop.f32.mrf.mxu0
  %531 = vdwg.mxu0
  %532 = vmatprep.subr.bf16.mxu0 0
  %533 = vmatpush1.bf16.msra.mxu0 %v418
  %534 = vmatprep.subr.bf16.mxu0 0
  %535 = vmatpush1.bf16.msra.mxu0 %v417
  %536 = vmatprep.subr.bf16.mxu0 0
  %537 = vmatpush1.bf16.msra.mxu0 %v416
  %538 = vmatprep.subr.bf16.mxu0 0
  %539 = vmatpush1.bf16.msra.mxu0 %v415
  %540 = vmatprep.subr.bf16.mxu0 0
  %541 = vmatpush1.bf16.msra.mxu0 %v414
  %542 = vmatprep.subr.bf16.mxu0 0
  %543 = vmatpush1.bf16.msra.mxu0 %v413
  %544 = vmatprep.subr.bf16.mxu0 0
  %545 = vmatpush1.bf16.msra.mxu0 %v412
  %546 = vmatprep.subr.bf16.mxu0 0
  %547 = vmatpush1.bf16.msra.mxu0 %v411
  %548 = vmatprep.subr.bf16.mxu0 0
  %549 = vmatpush2.bf16.msra.mxu0 %v426
  %550 = vmatprep.subr.bf16.mxu0 0
  %551 = vmatpush2.bf16.msra.mxu0 %v425
  %552 = vmatprep.subr.bf16.mxu0 0
  %553 = vmatpush2.bf16.msra.mxu0 %v424
  %554 = vmatprep.subr.bf16.mxu0 0
  %555 = vmatpush2.bf16.msra.mxu0 %v423
  %556 = vmatprep.subr.bf16.mxu0 0
  %557 = vmatpush2.bf16.msra.mxu0 %v422
  %558 = vmatprep.subr.bf16.mxu0 0
  %559 = vmatpush2.bf16.msra.mxu0 %v421
  %560 = vmatprep.subr.bf16.mxu0 0
  %561 = vmatpush2.bf16.msra.mxu0 %v420
  %562 = vmatprep.subr.bf16.mxu0 0
  %563 = vmatpush2.bf16.msra.mxu0 %v419
  %564 = vmatprep.mubr.bf16.mxu0 %v198
  %565 = vmatmul.mubr.bf16.gmra.mxu0 %v197
  %v566 = vpop.f32.mrf.mxu0
  %v567 = vadd.f32 %v526, %v566
  %v568 = vpop.f32.mrf.mxu0
  %v569 = vpop.f32.mrf.mxu0
  %v570 = vadd.f32 %v529, %v569
  %v571 = vpop.f32.mrf.mxu0
  %572 = vdwg.mxu0
  %573 = vmatprep.subr.bf16.mxu0 0
  %574 = vmatpush1.bf16.msra.mxu0 %v434
  %575 = vmatprep.subr.bf16.mxu0 0
  %576 = vmatpush1.bf16.msra.mxu0 %v433
  %577 = vmatprep.subr.bf16.mxu0 0
  %578 = vmatpush1.bf16.msra.mxu0 %v432
  %579 = vmatprep.subr.bf16.mxu0 0
  %580 = vmatpush1.bf16.msra.mxu0 %v431
  %581 = vmatprep.subr.bf16.mxu0 0
  %582 = vmatpush1.bf16.msra.mxu0 %v430
  %583 = vmatprep.subr.bf16.mxu0 0
  %584 = vmatpush1.bf16.msra.mxu0 %v429
  %585 = vmatprep.subr.bf16.mxu0 0
  %586 = vmatpush1.bf16.msra.mxu0 %v428
  %587 = vmatprep.subr.bf16.mxu0 0
  %588 = vmatpush1.bf16.msra.mxu0 %v427
  %589 = vmatprep.subr.bf16.mxu0 0
  %590 = vmatpush2.bf16.msra.mxu0 %v442
  %591 = vmatprep.subr.bf16.mxu0 0
  %592 = vmatpush2.bf16.msra.mxu0 %v441
  %593 = vmatprep.subr.bf16.mxu0 0
  %594 = vmatpush2.bf16.msra.mxu0 %v440
  %595 = vmatprep.subr.bf16.mxu0 0
  %596 = vmatpush2.bf16.msra.mxu0 %v439
  %597 = vmatprep.subr.bf16.mxu0 0
  %598 = vmatpush2.bf16.msra.mxu0 %v438
  %599 = vmatprep.subr.bf16.mxu0 0
  %600 = vmatpush2.bf16.msra.mxu0 %v437
  %601 = vmatprep.subr.bf16.mxu0 0
  %602 = vmatpush2.bf16.msra.mxu0 %v436
  %603 = vmatprep.subr.bf16.mxu0 0
  %604 = vmatpush2.bf16.msra.mxu0 %v435
  %605 = vmatprep.mubr.bf16.mxu0 %v200
  %606 = vmatmul.mubr.bf16.gmra.mxu0 %v199
  %v607 = vpop.f32.mrf.mxu0
  %v608 = vadd.f32 %v567, %v607
  %v609 = vpop.f32.mrf.mxu0
  %v610 = vpop.f32.mrf.mxu0
  %v611 = vadd.f32 %v570, %v610
  %v612 = vpop.f32.mrf.mxu0
  %613 = vdwg.mxu0
  %v614 = vld [vmem:[%s3] sm:$0xf]
  %v615 = vld [vmem:[%s3 + $0x4] sm:$0xf]
  %v616 = vld [vmem:[%s3 + $0x8] sm:$0xf]
  %v617 = vld [vmem:[%s3 + $0xc] sm:$0xf]
  %v618 = vld [vmem:[%s3 + $0x10] sm:$0xf]
  %v619 = vld [vmem:[%s3 + $0x14] sm:$0xf]
  %v620 = vld [vmem:[%s3 + $0x18] sm:$0xf]
  %v621 = vld [vmem:[%s3 + $0x1c] sm:$0xf]
  %v622 = vld [vmem:[%s4] sm:$0xf]
  %v623 = vld [vmem:[%s4 + $0x4] sm:$0xf]
  %v624 = vld [vmem:[%s5] sm:$0xff]
  %v625 = vld [vmem:[%s5 + $0x8] sm:$0xff]
  %v626 = vld [vmem:[%s5 + $0x10] sm:$0xff]
  %v627 = vld [vmem:[%s5 + $0x18] sm:$0xff]
  %v628 = vld [vmem:[%s5 + $0x20] sm:$0xff]
  %v629 = vld [vmem:[%s5 + $0x28] sm:$0xff]
  %v630 = vld [vmem:[%s5 + $0x30] sm:$0xff]
  %v631 = vld [vmem:[%s5 + $0x38] sm:$0xff]
  %v632 = vld [vmem:[%s6] sm:$0xff]
  %v633 = vld [vmem:[%s6 + $0x8] sm:$0xff]
  %v634 = vld [vmem:[%s6 + $0x10] sm:$0xff]
  %v635 = vld [vmem:[%s6 + $0x18] sm:$0xff]
  %v636 = vld [vmem:[%s6 + $0x20] sm:$0xff]
  %v637 = vld [vmem:[%s6 + $0x28] sm:$0xff]
  %v638 = vld [vmem:[%s6 + $0x30] sm:$0xff]
  %v639 = vld [vmem:[%s6 + $0x38] sm:$0xff]
  %v640 = vld [vmem:[%s7] sm:$0x1]
  %v641 = vld [vmem:[%s8] sm:$0x1]
  %vm642 = vcmask 523264
  %v643 = vsel %vm642, %v608, 0.0
  %644 = vadd.xlane.f32.xlu0 %v643
  %v645 = vpop.xlane.xlu0 %644
  %v646 = vsel %vm642, %v611, 0.0
  %647 = vadd.xlane.f32.xlu0 %v646
  %v648 = vpop.xlane.xlu0 %647
  %v649 = vrcp.pop 64.0
  %v650 = vmul.f32 %v645, %v649
  %v651 = vmul.f32 %v648, %v649
  %v652 = vmul.f32 %v608, %v608
  %v653 = vmul.f32 %v611, %v611
  %v654 = vsel %vm642, %v652, 0.0
  %655 = vadd.xlane.f32.xlu0 %v654
  %v656 = vpop.xlane.xlu0 %655
  %v657 = vsel %vm642, %v653, 0.0
  %658 = vadd.xlane.f32.xlu0 %v657
  %v659 = vpop.xlane.xlu0 %658
  %v660 = vmul.f32 %v656, %v649
  %v661 = vmul.f32 %v659, %v649
  %v662 = vmul.f32 %v650, %v650
  %v663 = vmul.f32 %v651, %v651
  %v664 = vsub.f32 %v660, %v662
  %v665 = vsub.f32 %v661, %v663
  %v666 = vsub.f32 %v608, %v650
  %v667 = vsub.f32 %v611, %v651
  %v668 = vadd.f32 %v664, 1e-06
  %v669 = vadd.f32 %v665, 1e-06
  %v670 = vrsqrt.pop %v668
  %v671 = vrsqrt.pop %v669
  %v672 = vmul.f32 %v666, %v670
  %v673 = vmul.f32 %v667, %v671
  %v675 = vlaneseq
  %v676 = vshrl.u32 %v675, 7
  %v677 = vsub.s32 0, %v676
  %v678 = vrot.slane %v640, %v677
  %v680 = vmul.f32 %v672, %v678
  %v681 = vmul.f32 %v673, %v678
  %v683 = vlaneseq
  %v684 = vshrl.u32 %v683, 7
  %v685 = vsub.s32 0, %v684
  %v686 = vrot.slane %v641, %v685
  %v688 = vadd.f32 %v680, %v686
  %v689 = vadd.f32 %v681, %v686
  %v690 = vpack.c.bf16 %v689, %v688
  %v699 = vunpack.c.l.b16 %v614
  %v700 = vunpack.c.l.b16 %v615
  %v701 = vunpack.c.l.b16 %v616
  %v702 = vunpack.c.l.b16 %v617
  %v703 = vunpack.c.l.b16 %v618
  %v704 = vunpack.c.l.b16 %v619
  %v705 = vunpack.c.l.b16 %v620
  %v706 = vunpack.c.l.b16 %v621
  %v707 = vpack.c.b16 %v700, %v699
  %v708 = vpack.c.b16 %v702, %v701
  %v709 = vpack.c.b16 %v704, %v703
  %v710 = vpack.c.b16 %v706, %v705
  %vm711 = vcmask 130048
  %v713 = vsel %vm711, %v707, 0
  %v716 = vsel %vm711, %v708, 0
  %v719 = vsel %vm711, %v709, 0
  %v722 = vsel %vm711, %v710, 0
  %724 = vmatprep.subr.bf16.mxu0 0
  %725 = vmatpush1.bf16.msra.mxu0 0
  %726 = vmatprep.subr.bf16.mxu0 0
  %727 = vmatpush1.bf16.msra.mxu0 0
  %728 = vmatprep.subr.bf16.mxu0 0
  %729 = vmatpush1.bf16.msra.mxu0 0
  %730 = vmatprep.subr.bf16.mxu0 0
  %731 = vmatpush1.bf16.msra.mxu0 0
  %732 = vmatprep.subr.bf16.mxu0 0
  %733 = vmatpush1.bf16.msra.mxu0 0
  %734 = vmatprep.subr.bf16.mxu0 0
  %735 = vmatpush1.bf16.msra.mxu0 0
  %736 = vmatprep.subr.bf16.mxu0 0
  %737 = vmatpush1.bf16.msra.mxu0 0
  %738 = vmatprep.subr.bf16.mxu0 0
  %739 = vmatpush1.bf16.msra.mxu0 %v690
  %740 = vmatprep.subr.bf16.mxu0 0
  %741 = vmatpush2.bf16.msra.mxu0 0
  %742 = vmatprep.subr.bf16.mxu0 0
  %743 = vmatpush2.bf16.msra.mxu0 0
  %744 = vmatprep.subr.bf16.mxu0 0
  %745 = vmatpush2.bf16.msra.mxu0 0
  %746 = vmatprep.subr.bf16.mxu0 0
  %747 = vmatpush2.bf16.msra.mxu0 0
  %748 = vmatprep.subr.bf16.mxu0 0
  %749 = vmatpush2.bf16.msra.mxu0 0
  %750 = vmatprep.subr.bf16.mxu0 0
  %751 = vmatpush2.bf16.msra.mxu0 0
  %752 = vmatprep.subr.bf16.mxu0 0
  %753 = vmatpush2.bf16.msra.mxu0 0
  %754 = vmatprep.subr.bf16.mxu0 0
  %755 = vmatpush2.bf16.msra.mxu0 0
  %756 = vmatprep.mubr.bf16.mxu0 0
  %757 = vmatmul.mubr.bf16.gmra.mxu0 %v713
  %v758 = vpop.f32.mrf.mxu0
  %v759 = vadd.f32 0.0, %v758
  %v760 = vpop.f32.mrf.mxu0
  %v761 = vpop.f32.mrf.mxu0
  %v762 = vadd.f32 0.0, %v761
  %v763 = vpop.f32.mrf.mxu0
  %764 = vmatprep.mubr.bf16.mxu0 0
  %765 = vmatmul.mubr.bf16.gmra.mxu0 %v716
  %v766 = vpop.f32.mrf.mxu0
  %v767 = vadd.f32 0.0, %v766
  %v768 = vpop.f32.mrf.mxu0
  %v769 = vpop.f32.mrf.mxu0
  %v770 = vadd.f32 0.0, %v769
  %v771 = vpop.f32.mrf.mxu0
  %772 = vmatprep.mubr.bf16.mxu0 0
  %773 = vmatmul.mubr.bf16.gmra.mxu0 %v719
  %v774 = vpop.f32.mrf.mxu0
  %v775 = vadd.f32 0.0, %v774
  %v776 = vpop.f32.mrf.mxu0
  %v777 = vpop.f32.mrf.mxu0
  %v778 = vadd.f32 0.0, %v777
  %v779 = vpop.f32.mrf.mxu0
  %780 = vmatprep.mubr.bf16.mxu0 0
  %781 = vmatmul.mubr.bf16.gmra.mxu0 %v722
  %v782 = vpop.f32.mrf.mxu0
  %v783 = vadd.f32 0.0, %v782
  %v784 = vpop.f32.mrf.mxu0
  %v785 = vpop.f32.mrf.mxu0
  %v786 = vadd.f32 0.0, %v785
  %v787 = vpop.f32.mrf.mxu0
  %788 = vdwg.mxu0
  %v789 = vld [vmem:[%s9] sm:$0xf]
  %v790 = vld [vmem:[%s9 + $0x4] sm:$0xf]
  %v791 = vld [vmem:[%s9 + $0x8] sm:$0xf]
  %v792 = vld [vmem:[%s9 + $0xc] sm:$0xf]
  %v793 = vld [vmem:[%s9 + $0x10] sm:$0xf]
  %v794 = vld [vmem:[%s9 + $0x14] sm:$0xf]
  %v795 = vld [vmem:[%s9 + $0x18] sm:$0xf]
  %v796 = vld [vmem:[%s9 + $0x1c] sm:$0xf]
  %v797 = vpack.c.bf16 %v762, %v759
  %v798 = vpack.c.bf16 %v770, %v767
  %v799 = vpack.c.bf16 %v778, %v775
  %v800 = vpack.c.bf16 %v786, %v783
  %v801 = vld [vmem:[%s10] sm:$0x1]
  %v803 = vlaneseq
  %v804 = vshrl.u32 %v803, 7
  %v805 = vsub.s32 0, %v804
  %v806 = vrot.slane %v801, %v805
  %v816 = vunpack.c.l.b16 %v789
  %v817 = vunpack.c.l.b16 %v790
  %v818 = vunpack.c.l.b16 %v791
  %v819 = vunpack.c.l.b16 %v792
  %v820 = vunpack.c.l.b16 %v793
  %v821 = vunpack.c.l.b16 %v794
  %v822 = vunpack.c.l.b16 %v795
  %v823 = vunpack.c.l.b16 %v796
  %v824 = vpack.c.b16 %v817, %v816
  %v825 = vpack.c.b16 %v819, %v818
  %v826 = vpack.c.b16 %v821, %v820
  %v827 = vpack.c.b16 %v823, %v822
  %v833 = vsel %vm642, %v797, 0
  %v836 = vsel %vm642, %v798, 0
  %v839 = vsel %vm642, %v799, 0
  %v842 = vsel %vm642, %v800, 0
  %844 = vmatprep.subr.bf16.mxu0 0
  %845 = vmatpush1.bf16.msra.mxu0 0
  %846 = vmatprep.subr.bf16.mxu0 0
  %847 = vmatpush1.bf16.msra.mxu0 0
  %848 = vmatprep.subr.bf16.mxu0 0
  %849 = vmatpush1.bf16.msra.mxu0 0
  %850 = vmatprep.subr.bf16.mxu0 0
  %851 = vmatpush1.bf16.msra.mxu0 0
  %852 = vmatprep.subr.bf16.mxu0 0
  %853 = vmatpush1.bf16.msra.mxu0 %v827
  %854 = vmatprep.subr.bf16.mxu0 0
  %855 = vmatpush1.bf16.msra.mxu0 %v826
  %856 = vmatprep.subr.bf16.mxu0 0
  %857 = vmatpush1.bf16.msra.mxu0 %v825
  %858 = vmatprep.subr.bf16.mxu0 0
  %859 = vmatpush1.bf16.msra.mxu0 %v824
  %860 = vmatprep.subr.bf16.mxu0 0
  %861 = vmatpush2.bf16.msra.mxu0 0
  %862 = vmatprep.subr.bf16.mxu0 0
  %863 = vmatpush2.bf16.msra.mxu0 0
  %864 = vmatprep.subr.bf16.mxu0 0
  %865 = vmatpush2.bf16.msra.mxu0 0
  %866 = vmatprep.subr.bf16.mxu0 0
  %867 = vmatpush2.bf16.msra.mxu0 0
  %868 = vmatprep.subr.bf16.mxu0 0
  %869 = vmatpush2.bf16.msra.mxu0 0
  %870 = vmatprep.subr.bf16.mxu0 0
  %871 = vmatpush2.bf16.msra.mxu0 0
  %872 = vmatprep.subr.bf16.mxu0 0
  %873 = vmatpush2.bf16.msra.mxu0 0
  %874 = vmatprep.subr.bf16.mxu0 0
  %875 = vmatpush2.bf16.msra.mxu0 0
  %876 = vmatprep.mubr.bf16.mxu0 0
  %877 = vmatmul.mubr.bf16.gmra.mxu0 %v833
  %v878 = vpop.f32.mrf.mxu0
  %v879 = vadd.f32 %v806, %v878
  %v880 = vpop.f32.mrf.mxu0
  %v881 = vpop.f32.mrf.mxu0
  %v882 = vadd.f32 %v806, %v881
  %v883 = vpop.f32.mrf.mxu0
  %884 = vmatprep.mubr.bf16.mxu0 0
  %885 = vmatmul.mubr.bf16.gmra.mxu0 %v836
  %v886 = vpop.f32.mrf.mxu0
  %v887 = vadd.f32 %v806, %v886
  %v888 = vpop.f32.mrf.mxu0
  %v889 = vpop.f32.mrf.mxu0
  %v890 = vadd.f32 %v806, %v889
  %v891 = vpop.f32.mrf.mxu0
  %892 = vmatprep.mubr.bf16.mxu0 0
  %893 = vmatmul.mubr.bf16.gmra.mxu0 %v839
  %v894 = vpop.f32.mrf.mxu0
  %v895 = vadd.f32 %v806, %v894
  %v896 = vpop.f32.mrf.mxu0
  %v897 = vpop.f32.mrf.mxu0
  %v898 = vadd.f32 %v806, %v897
  %v899 = vpop.f32.mrf.mxu0
  %900 = vmatprep.mubr.bf16.mxu0 0
  %901 = vmatmul.mubr.bf16.gmra.mxu0 %v842
  %v902 = vpop.f32.mrf.mxu0
  %v903 = vadd.f32 %v806, %v902
  %v904 = vpop.f32.mrf.mxu0
  %v905 = vpop.f32.mrf.mxu0
  %v906 = vadd.f32 %v806, %v905
  %v907 = vpop.f32.mrf.mxu0
  %908 = vdwg.mxu0
  %v909 = vld [vmem:[%s11] sm:$0xf]
  %v910 = vld [vmem:[%s11 + $0x4] sm:$0xf]
  %v911 = vld [vmem:[%s11 + $0x8] sm:$0xf]
  %v912 = vld [vmem:[%s11 + $0xc] sm:$0xf]
  %v913 = vld [vmem:[%s11 + $0x10] sm:$0xf]
  %v914 = vld [vmem:[%s11 + $0x14] sm:$0xf]
  %v915 = vld [vmem:[%s11 + $0x18] sm:$0xf]
  %v916 = vld [vmem:[%s11 + $0x1c] sm:$0xf]
  %v917 = vld [vmem:[%s12] sm:$0x1]
  %v919 = vlaneseq
  %v920 = vshrl.u32 %v919, 7
  %v921 = vsub.s32 0, %v920
  %v922 = vrot.slane %v917, %v921
  %v932 = vunpack.c.l.b16 %v909
  %v933 = vunpack.c.l.b16 %v910
  %v934 = vunpack.c.l.b16 %v911
  %v935 = vunpack.c.l.b16 %v912
  %v936 = vunpack.c.l.b16 %v913
  %v937 = vunpack.c.l.b16 %v914
  %v938 = vunpack.c.l.b16 %v915
  %v939 = vunpack.c.l.b16 %v916
  %v940 = vpack.c.b16 %v933, %v932
  %v941 = vpack.c.b16 %v935, %v934
  %v942 = vpack.c.b16 %v937, %v936
  %v943 = vpack.c.b16 %v939, %v938
  %948 = vmatprep.subr.bf16.mxu0 0
  %949 = vmatpush1.bf16.msra.mxu0 0
  %950 = vmatprep.subr.bf16.mxu0 0
  %951 = vmatpush1.bf16.msra.mxu0 0
  %952 = vmatprep.subr.bf16.mxu0 0
  %953 = vmatpush1.bf16.msra.mxu0 0
  %954 = vmatprep.subr.bf16.mxu0 0
  %955 = vmatpush1.bf16.msra.mxu0 0
  %956 = vmatprep.subr.bf16.mxu0 0
  %957 = vmatpush1.bf16.msra.mxu0 %v943
  %958 = vmatprep.subr.bf16.mxu0 0
  %959 = vmatpush1.bf16.msra.mxu0 %v942
  %960 = vmatprep.subr.bf16.mxu0 0
  %961 = vmatpush1.bf16.msra.mxu0 %v941
  %962 = vmatprep.subr.bf16.mxu0 0
  %963 = vmatpush1.bf16.msra.mxu0 %v940
  %964 = vmatprep.subr.bf16.mxu0 0
  %965 = vmatpush2.bf16.msra.mxu0 0
  %966 = vmatprep.subr.bf16.mxu0 0
  %967 = vmatpush2.bf16.msra.mxu0 0
  %968 = vmatprep.subr.bf16.mxu0 0
  %969 = vmatpush2.bf16.msra.mxu0 0
  %970 = vmatprep.subr.bf16.mxu0 0
  %971 = vmatpush2.bf16.msra.mxu0 0
  %972 = vmatprep.subr.bf16.mxu0 0
  %973 = vmatpush2.bf16.msra.mxu0 0
  %974 = vmatprep.subr.bf16.mxu0 0
  %975 = vmatpush2.bf16.msra.mxu0 0
  %976 = vmatprep.subr.bf16.mxu0 0
  %977 = vmatpush2.bf16.msra.mxu0 0
  %978 = vmatprep.subr.bf16.mxu0 0
  %979 = vmatpush2.bf16.msra.mxu0 0
  %980 = vmatprep.mubr.bf16.mxu0 0
  %981 = vmatmul.mubr.bf16.gmra.mxu0 %v833
  %v982 = vpop.f32.mrf.mxu0
  %v983 = vadd.f32 %v922, %v982
  %v984 = vpop.f32.mrf.mxu0
  %v985 = vpop.f32.mrf.mxu0
  %v986 = vadd.f32 %v922, %v985
  %v987 = vpop.f32.mrf.mxu0
  %988 = vmatprep.mubr.bf16.mxu0 0
  %989 = vmatmul.mubr.bf16.gmra.mxu0 %v836
  %v990 = vpop.f32.mrf.mxu0
  %v991 = vadd.f32 %v922, %v990
  %v992 = vpop.f32.mrf.mxu0
  %v993 = vpop.f32.mrf.mxu0
  %v994 = vadd.f32 %v922, %v993
  %v995 = vpop.f32.mrf.mxu0
  %996 = vmatprep.mubr.bf16.mxu0 0
  %997 = vmatmul.mubr.bf16.gmra.mxu0 %v839
  %v998 = vpop.f32.mrf.mxu0
  %v999 = vadd.f32 %v922, %v998
  %v1000 = vpop.f32.mrf.mxu0
  %v1001 = vpop.f32.mrf.mxu0
  %v1002 = vadd.f32 %v922, %v1001
  %v1003 = vpop.f32.mrf.mxu0
  %1004 = vmatprep.mubr.bf16.mxu0 0
  %1005 = vmatmul.mubr.bf16.gmra.mxu0 %v842
  %v1006 = vpop.f32.mrf.mxu0
  %v1007 = vadd.f32 %v922, %v1006
  %v1008 = vpop.f32.mrf.mxu0
  %v1009 = vpop.f32.mrf.mxu0
  %v1010 = vadd.f32 %v922, %v1009
  %v1011 = vpop.f32.mrf.mxu0
  %1012 = vdwg.mxu0
  %v1013 = vmul.f32 %v983, %v624
  %v1014 = vmul.f32 %v986, %v625
  %v1015 = vmul.f32 %v991, %v626
  %v1016 = vmul.f32 %v994, %v627
  %v1017 = vmul.f32 %v999, %v628
  %v1018 = vmul.f32 %v1002, %v629
  %v1019 = vmul.f32 %v1007, %v630
  %v1020 = vmul.f32 %v1010, %v631
  %v1021 = vld [vmem:[%s13] sm:$0xf]
  %v1022 = vld [vmem:[%s13 + $0x4] sm:$0xf]
  %v1023 = vld [vmem:[%s13 + $0x8] sm:$0xf]
  %v1024 = vld [vmem:[%s13 + $0xc] sm:$0xf]
  %v1025 = vld [vmem:[%s13 + $0x10] sm:$0xf]
  %v1026 = vld [vmem:[%s13 + $0x14] sm:$0xf]
  %v1027 = vld [vmem:[%s13 + $0x18] sm:$0xf]
  %v1028 = vld [vmem:[%s13 + $0x1c] sm:$0xf]
  %v1029 = vld [vmem:[%s14] sm:$0x1]
  %v1031 = vlaneseq
  %v1032 = vshrl.u32 %v1031, 7
  %v1033 = vsub.s32 0, %v1032
  %v1034 = vrot.slane %v1029, %v1033
  %v1044 = vunpack.c.l.b16 %v1021
  %v1045 = vunpack.c.l.b16 %v1022
  %v1046 = vunpack.c.l.b16 %v1023
  %v1047 = vunpack.c.l.b16 %v1024
  %v1048 = vunpack.c.l.b16 %v1025
  %v1049 = vunpack.c.l.b16 %v1026
  %v1050 = vunpack.c.l.b16 %v1027
  %v1051 = vunpack.c.l.b16 %v1028
  %v1052 = vpack.c.b16 %v1045, %v1044
  %v1053 = vpack.c.b16 %v1047, %v1046
  %v1054 = vpack.c.b16 %v1049, %v1048
  %v1055 = vpack.c.b16 %v1051, %v1050
  %1060 = vmatprep.subr.bf16.mxu0 0
  %1061 = vmatpush1.bf16.msra.mxu0 0
  %1062 = vmatprep.subr.bf16.mxu0 0
  %1063 = vmatpush1.bf16.msra.mxu0 0
  %1064 = vmatprep.subr.bf16.mxu0 0
  %1065 = vmatpush1.bf16.msra.mxu0 0
  %1066 = vmatprep.subr.bf16.mxu0 0
  %1067 = vmatpush1.bf16.msra.mxu0 0
  %1068 = vmatprep.subr.bf16.mxu0 0
  %1069 = vmatpush1.bf16.msra.mxu0 %v1055
  %1070 = vmatprep.subr.bf16.mxu0 0
  %1071 = vmatpush1.bf16.msra.mxu0 %v1054
  %1072 = vmatprep.subr.bf16.mxu0 0
  %1073 = vmatpush1.bf16.msra.mxu0 %v1053
  %1074 = vmatprep.subr.bf16.mxu0 0
  %1075 = vmatpush1.bf16.msra.mxu0 %v1052
  %1076 = vmatprep.subr.bf16.mxu0 0
  %1077 = vmatpush2.bf16.msra.mxu0 0
  %1078 = vmatprep.subr.bf16.mxu0 0
  %1079 = vmatpush2.bf16.msra.mxu0 0
  %1080 = vmatprep.subr.bf16.mxu0 0
  %1081 = vmatpush2.bf16.msra.mxu0 0
  %1082 = vmatprep.subr.bf16.mxu0 0
  %1083 = vmatpush2.bf16.msra.mxu0 0
  %1084 = vmatprep.subr.bf16.mxu0 0
  %1085 = vmatpush2.bf16.msra.mxu0 0
  %1086 = vmatprep.subr.bf16.mxu0 0
  %1087 = vmatpush2.bf16.msra.mxu0 0
  %1088 = vmatprep.subr.bf16.mxu0 0
  %1089 = vmatpush2.bf16.msra.mxu0 0
  %1090 = vmatprep.subr.bf16.mxu0 0
  %1091 = vmatpush2.bf16.msra.mxu0 0
  %1092 = vmatprep.mubr.bf16.mxu0 0
  %1093 = vmatmul.mubr.bf16.gmra.mxu0 %v833
  %v1094 = vpop.f32.mrf.mxu0
  %v1095 = vadd.f32 %v1034, %v1094
  %v1096 = vpop.f32.mrf.mxu0
  %v1097 = vpop.f32.mrf.mxu0
  %v1098 = vadd.f32 %v1034, %v1097
  %v1099 = vpop.f32.mrf.mxu0
  %1100 = vmatprep.mubr.bf16.mxu0 0
  %1101 = vmatmul.mubr.bf16.gmra.mxu0 %v836
  %v1102 = vpop.f32.mrf.mxu0
  %v1103 = vadd.f32 %v1034, %v1102
  %v1104 = vpop.f32.mrf.mxu0
  %v1105 = vpop.f32.mrf.mxu0
  %v1106 = vadd.f32 %v1034, %v1105
  %v1107 = vpop.f32.mrf.mxu0
  %1108 = vmatprep.mubr.bf16.mxu0 0
  %1109 = vmatmul.mubr.bf16.gmra.mxu0 %v839
  %v1110 = vpop.f32.mrf.mxu0
  %v1111 = vadd.f32 %v1034, %v1110
  %v1112 = vpop.f32.mrf.mxu0
  %v1113 = vpop.f32.mrf.mxu0
  %v1114 = vadd.f32 %v1034, %v1113
  %v1115 = vpop.f32.mrf.mxu0
  %1116 = vmatprep.mubr.bf16.mxu0 0
  %1117 = vmatmul.mubr.bf16.gmra.mxu0 %v842
  %v1118 = vpop.f32.mrf.mxu0
  %v1119 = vadd.f32 %v1034, %v1118
  %v1120 = vpop.f32.mrf.mxu0
  %v1121 = vpop.f32.mrf.mxu0
  %v1122 = vadd.f32 %v1034, %v1121
  %v1123 = vpop.f32.mrf.mxu0
  %1124 = vdwg.mxu0
  %v1125 = vmul.f32 %v1095, %v624
  %v1126 = vmul.f32 %v1098, %v625
  %v1127 = vmul.f32 %v1103, %v626
  %v1128 = vmul.f32 %v1106, %v627
  %v1129 = vmul.f32 %v1111, %v628
  %v1130 = vmul.f32 %v1114, %v629
  %v1131 = vmul.f32 %v1119, %v630
  %v1132 = vmul.f32 %v1122, %v631
  %v1133 = vpack.c.bf16 %v882, %v879
  %v1134 = vpack.c.bf16 %v890, %v887
  %v1135 = vpack.c.bf16 %v898, %v895
  %v1136 = vpack.c.bf16 %v906, %v903
  %v1137 = vpack.c.bf16 %v1014, %v1013
  %v1138 = vpack.c.bf16 %v1016, %v1015
  %v1139 = vpack.c.bf16 %v1018, %v1017
  %v1140 = vpack.c.bf16 %v1020, %v1019
  %v1142 = vsel %vm642, %v1133, 0
  %v1145 = vsel %vm642, %v1134, 0
  %v1148 = vsel %vm642, %v1135, 0
  %v1151 = vsel %vm642, %v1136, 0
  %v1154 = vsel %vm642, %v1137, 0
  %v1157 = vsel %vm642, %v1138, 0
  %v1160 = vsel %vm642, %v1139, 0
  %v1163 = vsel %vm642, %v1140, 0
  %1165 = vmatprep.subr.bf16.mxu0 0
  %1166 = vmatpush1.bf16.xpose.msra.mxu0 0
  %1167 = vmatprep.subr.bf16.mxu0 0
  %1168 = vmatpush1.bf16.xpose.msra.mxu0 0
  %1169 = vmatprep.subr.bf16.mxu0 0
  %1170 = vmatpush1.bf16.xpose.msra.mxu0 0
  %1171 = vmatprep.subr.bf16.mxu0 0
  %1172 = vmatpush1.bf16.xpose.msra.mxu0 0
  %1173 = vmatprep.subr.bf16.mxu0 0
  %1174 = vmatpush1.bf16.xpose.msra.mxu0 %v1163
  %1175 = vmatprep.subr.bf16.mxu0 0
  %1176 = vmatpush1.bf16.xpose.msra.mxu0 %v1160
  %1177 = vmatprep.subr.bf16.mxu0 0
  %1178 = vmatpush1.bf16.xpose.msra.mxu0 %v1157
  %1179 = vmatprep.subr.bf16.mxu0 0
  %1180 = vmatpush1.bf16.xpose.msra.mxu0 %v1154
  %1181 = vmatprep.subr.bf16.mxu0 0
  %1182 = vmatpush2.bf16.xpose.msra.mxu0 0
  %1183 = vmatprep.subr.bf16.mxu0 0
  %1184 = vmatpush2.bf16.xpose.msra.mxu0 0
  %1185 = vmatprep.subr.bf16.mxu0 0
  %1186 = vmatpush2.bf16.xpose.msra.mxu0 0
  %1187 = vmatprep.subr.bf16.mxu0 0
  %1188 = vmatpush2.bf16.xpose.msra.mxu0 0
  %1189 = vmatprep.subr.bf16.mxu0 0
  %1190 = vmatpush2.bf16.xpose.msra.mxu0 0
  %1191 = vmatprep.subr.bf16.mxu0 0
  %1192 = vmatpush2.bf16.xpose.msra.mxu0 0
  %1193 = vmatprep.subr.bf16.mxu0 0
  %1194 = vmatpush2.bf16.xpose.msra.mxu0 0
  %1195 = vmatprep.subr.bf16.mxu0 0
  %1196 = vmatpush2.bf16.xpose.msra.mxu0 0
  %1197 = vmatprep.mubr.bf16.mxu0 0
  %1198 = vmatmul.mubr.bf16.gmra.mxu0 %v1142
  %v1199 = vpop.f32.mrf.mxu0
  %v1200 = vadd.f32 %v632, %v1199
  %v1201 = vpop.f32.mrf.mxu0
  %v1202 = vpop.f32.mrf.mxu0
  %v1203 = vadd.f32 %v633, %v1202
  %v1204 = vpop.f32.mrf.mxu0
  %1205 = vmatprep.mubr.bf16.mxu0 0
  %1206 = vmatmul.mubr.bf16.gmra.mxu0 %v1145
  %v1207 = vpop.f32.mrf.mxu0
  %v1208 = vadd.f32 %v634, %v1207
  %v1209 = vpop.f32.mrf.mxu0
  %v1210 = vpop.f32.mrf.mxu0
  %v1211 = vadd.f32 %v635, %v1210
  %v1212 = vpop.f32.mrf.mxu0
  %1213 = vmatprep.mubr.bf16.mxu0 0
  %1214 = vmatmul.mubr.bf16.gmra.mxu0 %v1148
  %v1215 = vpop.f32.mrf.mxu0
  %v1216 = vadd.f32 %v636, %v1215
  %v1217 = vpop.f32.mrf.mxu0
  %v1218 = vpop.f32.mrf.mxu0
  %v1219 = vadd.f32 %v637, %v1218
  %v1220 = vpop.f32.mrf.mxu0
  %1221 = vmatprep.mubr.bf16.mxu0 0
  %1222 = vmatmul.mubr.bf16.gmra.mxu0 %v1151
  %v1223 = vpop.f32.mrf.mxu0
  %v1224 = vadd.f32 %v638, %v1223
  %v1225 = vpop.f32.mrf.mxu0
  %v1226 = vpop.f32.mrf.mxu0
  %v1227 = vadd.f32 %v639, %v1226
  %v1228 = vpop.f32.mrf.mxu0
  %1229 = vdwg.mxu0
  %v1230 = vsel %vm642, %v1200, -inf
  %1231 = vmax.xlane.f32.xlu0 %v1230
  %v1232 = vpop.xlane.xlu0 %1231
  %v1233 = vsel %vm642, %v1203, -inf
  %1234 = vmax.xlane.f32.xlu0 %v1233
  %v1235 = vpop.xlane.xlu0 %1234
  %v1236 = vsel %vm642, %v1208, -inf
  %1237 = vmax.xlane.f32.xlu0 %v1236
  %v1238 = vpop.xlane.xlu0 %1237
  %v1239 = vsel %vm642, %v1211, -inf
  %1240 = vmax.xlane.f32.xlu0 %v1239
  %v1241 = vpop.xlane.xlu0 %1240
  %v1242 = vsel %vm642, %v1216, -inf
  %1243 = vmax.xlane.f32.xlu0 %v1242
  %v1244 = vpop.xlane.xlu0 %1243
  %v1245 = vsel %vm642, %v1219, -inf
  %1246 = vmax.xlane.f32.xlu0 %v1245
  %v1247 = vpop.xlane.xlu0 %1246
  %v1248 = vsel %vm642, %v1224, -inf
  %1249 = vmax.xlane.f32.xlu0 %v1248
  %v1250 = vpop.xlane.xlu0 %1249
  %v1251 = vsel %vm642, %v1227, -inf
  %1252 = vmax.xlane.f32.xlu0 %v1251
  %v1253 = vpop.xlane.xlu0 %1252
  %v1254 = vsub.f32 %v1200, %v1232
  %v1255 = vsub.f32 %v1203, %v1235
  %v1256 = vsub.f32 %v1208, %v1238
  %v1257 = vsub.f32 %v1211, %v1241
  %v1258 = vsub.f32 %v1216, %v1244
  %v1259 = vsub.f32 %v1219, %v1247
  %v1260 = vsub.f32 %v1224, %v1250
  %v1261 = vsub.f32 %v1227, %v1253
  %v1262 = vmul.f32 %v1254, 1.442695
  %v1263 = vpow.pop %v1262
  %v1264 = vmul.f32 %v1255, 1.442695
  %v1265 = vpow.pop %v1264
  %v1266 = vmul.f32 %v1256, 1.442695
  %v1267 = vpow.pop %v1266
  %v1268 = vmul.f32 %v1257, 1.442695
  %v1269 = vpow.pop %v1268
  %v1270 = vmul.f32 %v1258, 1.442695
  %v1271 = vpow.pop %v1270
  %v1272 = vmul.f32 %v1259, 1.442695
  %v1273 = vpow.pop %v1272
  %v1274 = vmul.f32 %v1260, 1.442695
  %v1275 = vpow.pop %v1274
  %v1276 = vmul.f32 %v1261, 1.442695
  %v1277 = vpow.pop %v1276
  %v1278 = vsel %vm642, %v1263, 0.0
  %1279 = vadd.xlane.f32.xlu0 %v1278
  %v1280 = vpop.xlane.xlu0 %1279
  %v1281 = vsel %vm642, %v1265, 0.0
  %1282 = vadd.xlane.f32.xlu0 %v1281
  %v1283 = vpop.xlane.xlu0 %1282
  %v1284 = vsel %vm642, %v1267, 0.0
  %1285 = vadd.xlane.f32.xlu0 %v1284
  %v1286 = vpop.xlane.xlu0 %1285
  %v1287 = vsel %vm642, %v1269, 0.0
  %1288 = vadd.xlane.f32.xlu0 %v1287
  %v1289 = vpop.xlane.xlu0 %1288
  %v1290 = vsel %vm642, %v1271, 0.0
  %1291 = vadd.xlane.f32.xlu0 %v1290
  %v1292 = vpop.xlane.xlu0 %1291
  %v1293 = vsel %vm642, %v1273, 0.0
  %1294 = vadd.xlane.f32.xlu0 %v1293
  %v1295 = vpop.xlane.xlu0 %1294
  %v1296 = vsel %vm642, %v1275, 0.0
  %1297 = vadd.xlane.f32.xlu0 %v1296
  %v1298 = vpop.xlane.xlu0 %1297
  %v1299 = vsel %vm642, %v1277, 0.0
  %1300 = vadd.xlane.f32.xlu0 %v1299
  %v1301 = vpop.xlane.xlu0 %1300
  %v1302 = vrcp.pop %v1280
  %v1303 = vrcp.pop %v1283
  %v1304 = vrcp.pop %v1286
  %v1305 = vrcp.pop %v1289
  %v1306 = vrcp.pop %v1292
  %v1307 = vrcp.pop %v1295
  %v1308 = vrcp.pop %v1298
  %v1309 = vrcp.pop %v1301
  %v1310 = vmul.f32 %v1263, %v1302
  %v1311 = vmul.f32 %v1265, %v1303
  %v1312 = vmul.f32 %v1267, %v1304
  %v1313 = vmul.f32 %v1269, %v1305
  %v1314 = vmul.f32 %v1271, %v1306
  %v1315 = vmul.f32 %v1273, %v1307
  %v1316 = vmul.f32 %v1275, %v1308
  %v1317 = vmul.f32 %v1277, %v1309
  %v1318 = vpack.c.bf16 %v1311, %v1310
  %v1319 = vpack.c.bf16 %v1313, %v1312
  %v1320 = vpack.c.bf16 %v1315, %v1314
  %v1321 = vpack.c.bf16 %v1317, %v1316
  %v1322 = vpack.c.bf16 %v1126, %v1125
  %v1323 = vpack.c.bf16 %v1128, %v1127
  %v1324 = vpack.c.bf16 %v1130, %v1129
  %v1325 = vpack.c.bf16 %v1132, %v1131
  %v1327 = vsel %vm642, %v1318, 0
  %v1330 = vsel %vm642, %v1319, 0
  %v1333 = vsel %vm642, %v1320, 0
  %v1336 = vsel %vm642, %v1321, 0
  %1338 = vmatprep.subr.bf16.mxu0 0
  %1339 = vmatpush1.bf16.msra.mxu0 0
  %1340 = vmatprep.subr.bf16.mxu0 0
  %1341 = vmatpush1.bf16.msra.mxu0 0
  %1342 = vmatprep.subr.bf16.mxu0 0
  %1343 = vmatpush1.bf16.msra.mxu0 0
  %1344 = vmatprep.subr.bf16.mxu0 0
  %1345 = vmatpush1.bf16.msra.mxu0 0
  %1346 = vmatprep.subr.bf16.mxu0 0
  %1347 = vmatpush1.bf16.msra.mxu0 %v1325
  %1348 = vmatprep.subr.bf16.mxu0 0
  %1349 = vmatpush1.bf16.msra.mxu0 %v1324
  %1350 = vmatprep.subr.bf16.mxu0 0
  %1351 = vmatpush1.bf16.msra.mxu0 %v1323
  %1352 = vmatprep.subr.bf16.mxu0 0
  %1353 = vmatpush1.bf16.msra.mxu0 %v1322
  %1354 = vmatprep.subr.bf16.mxu0 0
  %1355 = vmatpush2.bf16.msra.mxu0 0
  %1356 = vmatprep.subr.bf16.mxu0 0
  %1357 = vmatpush2.bf16.msra.mxu0 0
  %1358 = vmatprep.subr.bf16.mxu0 0
  %1359 = vmatpush2.bf16.msra.mxu0 0
  %1360 = vmatprep.subr.bf16.mxu0 0
  %1361 = vmatpush2.bf16.msra.mxu0 0
  %1362 = vmatprep.subr.bf16.mxu0 0
  %1363 = vmatpush2.bf16.msra.mxu0 0
  %1364 = vmatprep.subr.bf16.mxu0 0
  %1365 = vmatpush2.bf16.msra.mxu0 0
  %1366 = vmatprep.subr.bf16.mxu0 0
  %1367 = vmatpush2.bf16.msra.mxu0 0
  %1368 = vmatprep.subr.bf16.mxu0 0
  %1369 = vmatpush2.bf16.msra.mxu0 0
  %1370 = vmatprep.mubr.bf16.mxu0 0
  %1371 = vmatmul.mubr.bf16.gmra.mxu0 %v1327
  %v1372 = vpop.f32.mrf.mxu0
  %v1373 = vadd.f32 0.0, %v1372
  %v1374 = vpop.f32.mrf.mxu0
  %v1375 = vpop.f32.mrf.mxu0
  %v1376 = vadd.f32 0.0, %v1375
  %v1377 = vpop.f32.mrf.mxu0
  %1378 = vmatprep.mubr.bf16.mxu0 0
  %1379 = vmatmul.mubr.bf16.gmra.mxu0 %v1330
  %v1380 = vpop.f32.mrf.mxu0
  %v1381 = vadd.f32 0.0, %v1380
  %v1382 = vpop.f32.mrf.mxu0
  %v1383 = vpop.f32.mrf.mxu0
  %v1384 = vadd.f32 0.0, %v1383
  %v1385 = vpop.f32.mrf.mxu0
  %1386 = vmatprep.mubr.bf16.mxu0 0
  %1387 = vmatmul.mubr.bf16.gmra.mxu0 %v1333
  %v1388 = vpop.f32.mrf.mxu0
  %v1389 = vadd.f32 0.0, %v1388
  %v1390 = vpop.f32.mrf.mxu0
  %v1391 = vpop.f32.mrf.mxu0
  %v1392 = vadd.f32 0.0, %v1391
  %v1393 = vpop.f32.mrf.mxu0
  %1394 = vmatprep.mubr.bf16.mxu0 0
  %1395 = vmatmul.mubr.bf16.gmra.mxu0 %v1336
  %v1396 = vpop.f32.mrf.mxu0
  %v1397 = vadd.f32 0.0, %v1396
  %v1398 = vpop.f32.mrf.mxu0
  %v1399 = vpop.f32.mrf.mxu0
  %v1400 = vadd.f32 0.0, %v1399
  %v1401 = vpop.f32.mrf.mxu0
  %1402 = vdwg.mxu0
  %v1403 = vpack.c.bf16 %v1376, %v1373
  %v1404 = vpack.c.bf16 %v1384, %v1381
  %v1405 = vpack.c.bf16 %v1392, %v1389
  %v1406 = vpack.c.bf16 %v1400, %v1397
  %v1409 = vunpack.c.l.b16 %v622
  %v1410 = vunpack.c.l.b16 %v623
  %v1411 = vpack.c.b16 %v1410, %v1409
  %v1413 = vsel %vm642, %v1411, 0
  %1415 = vmatprep.subr.bf16.mxu0 0
  %1416 = vmatpush1.bf16.msra.mxu0 0
  %1417 = vmatprep.subr.bf16.mxu0 0
  %1418 = vmatpush1.bf16.msra.mxu0 0
  %1419 = vmatprep.subr.bf16.mxu0 0
  %1420 = vmatpush1.bf16.msra.mxu0 0
  %1421 = vmatprep.subr.bf16.mxu0 0
  %1422 = vmatpush1.bf16.msra.mxu0 0
  %1423 = vmatprep.subr.bf16.mxu0 0
  %1424 = vmatpush1.bf16.msra.mxu0 %v1406
  %1425 = vmatprep.subr.bf16.mxu0 0
  %1426 = vmatpush1.bf16.msra.mxu0 %v1405
  %1427 = vmatprep.subr.bf16.mxu0 0
  %1428 = vmatpush1.bf16.msra.mxu0 %v1404
  %1429 = vmatprep.subr.bf16.mxu0 0
  %1430 = vmatpush1.bf16.msra.mxu0 %v1403
  %1431 = vmatprep.subr.bf16.mxu0 0
  %1432 = vmatpush2.bf16.msra.mxu0 0
  %1433 = vmatprep.subr.bf16.mxu0 0
  %1434 = vmatpush2.bf16.msra.mxu0 0
  %1435 = vmatprep.subr.bf16.mxu0 0
  %1436 = vmatpush2.bf16.msra.mxu0 0
  %1437 = vmatprep.subr.bf16.mxu0 0
  %1438 = vmatpush2.bf16.msra.mxu0 0
  %1439 = vmatprep.subr.bf16.mxu0 0
  %1440 = vmatpush2.bf16.msra.mxu0 0
  %1441 = vmatprep.subr.bf16.mxu0 0
  %1442 = vmatpush2.bf16.msra.mxu0 0
  %1443 = vmatprep.subr.bf16.mxu0 0
  %1444 = vmatpush2.bf16.msra.mxu0 0
  %1445 = vmatprep.subr.bf16.mxu0 0
  %1446 = vmatpush2.bf16.msra.mxu0 0
  %1447 = vmatprep.mubr.bf16.mxu0 0
  %1448 = vmatmul.mubr.bf16.gmra.mxu0 %v1413
  %v1449 = vpop.f32.mrf.mxu0
  %v1450 = vadd.f32 0.0, %v1449
  %v1451 = vpop.f32.mrf.mxu0
  %v1452 = vpop.f32.mrf.mxu0
  %v1453 = vadd.f32 0.0, %v1452
  %v1454 = vpop.f32.mrf.mxu0
  %1455 = vdwg.mxu0
  %v1456 = vld [vmem:[%s15] sm:$0xf]
  %v1457 = vld [vmem:[%s15 + $0x4] sm:$0xf]
  %v1458 = vld [vmem:[%s15 + $0x8] sm:$0xf]
  %v1459 = vld [vmem:[%s15 + $0xc] sm:$0xf]
  %v1460 = vld [vmem:[%s15 + $0x10] sm:$0xf]
  %v1461 = vld [vmem:[%s15 + $0x14] sm:$0xf]
  %v1462 = vld [vmem:[%s15 + $0x18] sm:$0xf]
  %v1463 = vld [vmem:[%s15 + $0x1c] sm:$0xf]
  %v1464 = vpack.c.bf16 %v1453, %v1450
  %v1473 = vunpack.c.l.b16 %v1456
  %v1474 = vunpack.c.l.b16 %v1457
  %v1475 = vunpack.c.l.b16 %v1458
  %v1476 = vunpack.c.l.b16 %v1459
  %v1477 = vunpack.c.l.b16 %v1460
  %v1478 = vunpack.c.l.b16 %v1461
  %v1479 = vunpack.c.l.b16 %v1462
  %v1480 = vunpack.c.l.b16 %v1463
  %v1481 = vpack.c.b16 %v1474, %v1473
  %v1482 = vpack.c.b16 %v1476, %v1475
  %v1483 = vpack.c.b16 %v1478, %v1477
  %v1484 = vpack.c.b16 %v1480, %v1479
  %v1490 = vsel %vm642, %v1464, 0
  %1492 = vmatprep.subr.bf16.mxu0 0
  %1493 = vmatpush1.bf16.msra.mxu0 0
  %1494 = vmatprep.subr.bf16.mxu0 0
  %1495 = vmatpush1.bf16.msra.mxu0 0
  %1496 = vmatprep.subr.bf16.mxu0 0
  %1497 = vmatpush1.bf16.msra.mxu0 0
  %1498 = vmatprep.subr.bf16.mxu0 0
  %1499 = vmatpush1.bf16.msra.mxu0 0
  %1500 = vmatprep.subr.bf16.mxu0 0
  %1501 = vmatpush1.bf16.msra.mxu0 %v1484
  %1502 = vmatprep.subr.bf16.mxu0 0
  %1503 = vmatpush1.bf16.msra.mxu0 %v1483
  %1504 = vmatprep.subr.bf16.mxu0 0
  %1505 = vmatpush1.bf16.msra.mxu0 %v1482
  %1506 = vmatprep.subr.bf16.mxu0 0
  %1507 = vmatpush1.bf16.msra.mxu0 %v1481
  %1508 = vmatprep.subr.bf16.mxu0 0
  %1509 = vmatpush2.bf16.msra.mxu0 0
  %1510 = vmatprep.subr.bf16.mxu0 0
  %1511 = vmatpush2.bf16.msra.mxu0 0
  %1512 = vmatprep.subr.bf16.mxu0 0
  %1513 = vmatpush2.bf16.msra.mxu0 0
  %1514 = vmatprep.subr.bf16.mxu0 0
  %1515 = vmatpush2.bf16.msra.mxu0 0
  %1516 = vmatprep.subr.bf16.mxu0 0
  %1517 = vmatpush2.bf16.msra.mxu0 0
  %1518 = vmatprep.subr.bf16.mxu0 0
  %1519 = vmatpush2.bf16.msra.mxu0 0
  %1520 = vmatprep.subr.bf16.mxu0 0
  %1521 = vmatpush2.bf16.msra.mxu0 0
  %1522 = vmatprep.subr.bf16.mxu0 0
  %1523 = vmatpush2.bf16.msra.mxu0 0
  %1524 = vmatprep.mubr.bf16.mxu0 0
  %1525 = vmatmul.mubr.bf16.gmra.mxu0 %v1490
  %v1526 = vpop.f32.mrf.mxu0
  %v1527 = vadd.f32 0.0, %v1526
  %v1528 = vpop.f32.mrf.mxu0
  %v1529 = vpop.f32.mrf.mxu0
  %v1530 = vadd.f32 0.0, %v1529
  %v1531 = vpop.f32.mrf.mxu0
  %1532 = vdwg.mxu0
  %v1533 = vadd.f32 %v608, %v1527
  %v1534 = vadd.f32 %v611, %v1530
  %v1535 = vld [vmem:[%s16] sm:$0x1]
  %v1537 = vlaneseq
  %v1538 = vshrl.u32 %v1537, 7
  %v1539 = vsub.s32 0, %v1538
  %v1540 = vrot.slane %v1535, %v1539
  %v1542 = vadd.f32 %v1533, %v1540
  %v1543 = vadd.f32 %v1534, %v1540
  %v1544 = vld [vmem:[%s17] sm:$0x1]
  %v1545 = vld [vmem:[%s18] sm:$0x1]
  %v1546 = vsel %vm642, %v1542, 0.0
  %1547 = vadd.xlane.f32.xlu0 %v1546
  %v1548 = vpop.xlane.xlu0 %1547
  %v1549 = vsel %vm642, %v1543, 0.0
  %1550 = vadd.xlane.f32.xlu0 %v1549
  %v1551 = vpop.xlane.xlu0 %1550
  %v1552 = vmul.f32 %v1548, %v649
  %v1553 = vmul.f32 %v1551, %v649
  %v1554 = vmul.f32 %v1542, %v1542
  %v1555 = vmul.f32 %v1543, %v1543
  %v1556 = vsel %vm642, %v1554, 0.0
  %1557 = vadd.xlane.f32.xlu0 %v1556
  %v1558 = vpop.xlane.xlu0 %1557
  %v1559 = vsel %vm642, %v1555, 0.0
  %1560 = vadd.xlane.f32.xlu0 %v1559
  %v1561 = vpop.xlane.xlu0 %1560
  %v1562 = vmul.f32 %v1558, %v649
  %v1563 = vmul.f32 %v1561, %v649
  %v1564 = vmul.f32 %v1552, %v1552
  %v1565 = vmul.f32 %v1553, %v1553
  %v1566 = vsub.f32 %v1562, %v1564
  %v1567 = vsub.f32 %v1563, %v1565
  %v1568 = vsub.f32 %v1542, %v1552
  %v1569 = vsub.f32 %v1543, %v1553
  %v1570 = vadd.f32 %v1566, 1e-06
  %v1571 = vadd.f32 %v1567, 1e-06
  %v1572 = vrsqrt.pop %v1570
  %v1573 = vrsqrt.pop %v1571
  %v1574 = vmul.f32 %v1568, %v1572
  %v1575 = vmul.f32 %v1569, %v1573
  %v1577 = vlaneseq
  %v1578 = vshrl.u32 %v1577, 7
  %v1579 = vsub.s32 0, %v1578
  %v1580 = vrot.slane %v1544, %v1579
  %v1582 = vmul.f32 %v1574, %v1580
  %v1583 = vmul.f32 %v1575, %v1580
  %v1585 = vlaneseq
  %v1586 = vshrl.u32 %v1585, 7
  %v1587 = vsub.s32 0, %v1586
  %v1588 = vrot.slane %v1545, %v1587
  %v1590 = vadd.f32 %v1582, %v1588
  %v1591 = vadd.f32 %v1583, %v1588
  %v1592 = vld [vmem:[%s19] sm:$0xff]
  %v1593 = vld [vmem:[%s19 + $0x8] sm:$0xff]
  %v1594 = vld [vmem:[%s19 + $0x10] sm:$0xff]
  %v1595 = vld [vmem:[%s19 + $0x18] sm:$0xff]
  %v1596 = vld [vmem:[%s19 + $0x20] sm:$0xff]
  %v1597 = vld [vmem:[%s19 + $0x28] sm:$0xff]
  %v1598 = vld [vmem:[%s19 + $0x30] sm:$0xff]
  %v1599 = vld [vmem:[%s19 + $0x38] sm:$0xff]
  %v1600 = vpack.c.bf16 %v1591, %v1590
  %v1601 = vld [vmem:[%s20] sm:$0x3]
  %v1603 = vlaneseq
  %v1604 = vshrl.u32 %v1603, 7
  %v1605 = vsub.s32 0, %v1604
  %v1606 = vrot.slane %v1601, %v1605
  %v1607 = vlaneseq
  %v1608 = vshrl.u32 %v1607, 7
  %v1609 = vsub.s32 1, %v1608
  %v1610 = vrot.slane %v1601, %v1609
  %v1621 = vunpack.c.l.b16 %v1592
  %v1622 = vunpack.c.h.b16 %v1592
  %v1623 = vunpack.c.l.b16 %v1593
  %v1624 = vunpack.c.h.b16 %v1593
  %v1625 = vunpack.c.l.b16 %v1594
  %v1626 = vunpack.c.h.b16 %v1594
  %v1627 = vunpack.c.l.b16 %v1595
  %v1628 = vunpack.c.h.b16 %v1595
  %v1629 = vunpack.c.l.b16 %v1596
  %v1630 = vunpack.c.h.b16 %v1596
  %v1631 = vunpack.c.l.b16 %v1597
  %v1632 = vunpack.c.h.b16 %v1597
  %v1633 = vunpack.c.l.b16 %v1598
  %v1634 = vunpack.c.h.b16 %v1598
  %v1635 = vunpack.c.l.b16 %v1599
  %v1636 = vunpack.c.h.b16 %v1599
  %v1637 = vpack.c.b16 %v1623, %v1621
  %v1638 = vpack.c.b16 %v1624, %v1622
  %v1639 = vpack.c.b16 %v1627, %v1625
  %v1640 = vpack.c.b16 %v1628, %v1626
  %v1641 = vpack.c.b16 %v1631, %v1629
  %v1642 = vpack.c.b16 %v1632, %v1630
  %v1643 = vpack.c.b16 %v1635, %v1633
  %v1644 = vpack.c.b16 %v1636, %v1634
  %v1654 = vsel %vm642, %v1600, 0
  %1656 = vmatprep.subr.bf16.mxu0 0
  %1657 = vmatpush1.bf16.msra.mxu0 0
  %1658 = vmatprep.subr.bf16.mxu0 0
  %1659 = vmatpush1.bf16.msra.mxu0 0
  %1660 = vmatprep.subr.bf16.mxu0 0
  %1661 = vmatpush1.bf16.msra.mxu0 0
  %1662 = vmatprep.subr.bf16.mxu0 0
  %1663 = vmatpush1.bf16.msra.mxu0 0
  %1664 = vmatprep.subr.bf16.mxu0 %v1644
  %1665 = vmatpush1.bf16.msra.mxu0 %v1643
  %1666 = vmatprep.subr.bf16.mxu0 %v1642
  %1667 = vmatpush1.bf16.msra.mxu0 %v1641
  %1668 = vmatprep.subr.bf16.mxu0 %v1640
  %1669 = vmatpush1.bf16.msra.mxu0 %v1639
  %1670 = vmatprep.subr.bf16.mxu0 %v1638
  %1671 = vmatpush1.bf16.msra.mxu0 %v1637
  %1672 = vmatprep.subr.bf16.mxu0 0
  %1673 = vmatpush2.bf16.msra.mxu0 0
  %1674 = vmatprep.subr.bf16.mxu0 0
  %1675 = vmatpush2.bf16.msra.mxu0 0
  %1676 = vmatprep.subr.bf16.mxu0 0
  %1677 = vmatpush2.bf16.msra.mxu0 0
  %1678 = vmatprep.subr.bf16.mxu0 0
  %1679 = vmatpush2.bf16.msra.mxu0 0
  %1680 = vmatprep.subr.bf16.mxu0 0
  %1681 = vmatpush2.bf16.msra.mxu0 0
  %1682 = vmatprep.subr.bf16.mxu0 0
  %1683 = vmatpush2.bf16.msra.mxu0 0
  %1684 = vmatprep.subr.bf16.mxu0 0
  %1685 = vmatpush2.bf16.msra.mxu0 0
  %1686 = vmatprep.subr.bf16.mxu0 0
  %1687 = vmatpush2.bf16.msra.mxu0 0
  %1688 = vmatprep.mubr.bf16.mxu0 0
  %1689 = vmatmul.mubr.bf16.gmra.mxu0 %v1654
  %v1690 = vpop.f32.mrf.mxu0
  %v1691 = vadd.f32 %v1606, %v1690
  %v1692 = vpop.f32.mrf.mxu0
  %v1693 = vadd.f32 %v1610, %v1692
  %v1694 = vpop.f32.mrf.mxu0
  %v1695 = vadd.f32 %v1606, %v1694
  %v1696 = vpop.f32.mrf.mxu0
  %v1697 = vadd.f32 %v1610, %v1696
  %1698 = vdwg.mxu0
  %v1699 = vmul.f32 %v1691, 0.5
  %v1700 = vmul.f32 %v1693, 0.5
  %v1701 = vmul.f32 %v1695, 0.5
  %v1702 = vmul.f32 %v1697, 0.5
  %v1703 = vmul.f32 %v1691, 0.044715
  %v1704 = vmul.f32 %v1693, 0.044715
  %v1705 = vmul.f32 %v1695, 0.044715
  %v1706 = vmul.f32 %v1697, 0.044715
  %v1707 = vmul.f32 %v1703, %v1691
  %v1708 = vmul.f32 %v1704, %v1693
  %v1709 = vmul.f32 %v1705, %v1695
  %v1710 = vmul.f32 %v1706, %v1697
  %v1711 = vmul.f32 %v1707, %v1691
  %v1712 = vmul.f32 %v1708, %v1693
  %v1713 = vmul.f32 %v1709, %v1695
  %v1714 = vmul.f32 %v1710, %v1697
  %v1715 = vadd.f32 %v1691, %v1711
  %v1716 = vadd.f32 %v1693, %v1712
  %v1717 = vadd.f32 %v1695, %v1713
  %v1718 = vadd.f32 %v1697, %v1714
  %v1719 = vmul.f32 %v1715, 0.7978846
  %v1720 = vmul.f32 %v1716, 0.7978846
  %v1721 = vmul.f32 %v1717, 0.7978846
  %v1722 = vmul.f32 %v1718, 0.7978846
  %v1723 = vtanh.pop %v1719
  %v1724 = vtanh.pop %v1720
  %v1725 = vtanh.pop %v1721
  %v1726 = vtanh.pop %v1722
  %v1727 = vadd.f32 %v1723, 1.0
  %v1728 = vadd.f32 %v1724, 1.0
  %v1729 = vadd.f32 %v1725, 1.0
  %v1730 = vadd.f32 %v1726, 1.0
  %v1731 = vmul.f32 %v1699, %v1727
  %v1732 = vmul.f32 %v1700, %v1728
  %v1733 = vmul.f32 %v1701, %v1729
  %v1734 = vmul.f32 %v1702, %v1730
  %v1735 = vld [vmem:[%s21] sm:$0xf]
  %v1736 = vld [vmem:[%s21 + $0x4] sm:$0xf]
  %v1737 = vld [vmem:[%s21 + $0x8] sm:$0xf]
  %v1738 = vld [vmem:[%s21 + $0xc] sm:$0xf]
  %v1739 = vld [vmem:[%s21 + $0x10] sm:$0xf]
  %v1740 = vld [vmem:[%s21 + $0x14] sm:$0xf]
  %v1741 = vld [vmem:[%s21 + $0x18] sm:$0xf]
  %v1742 = vld [vmem:[%s21 + $0x1c] sm:$0xf]
  %v1743 = vld [vmem:[%s21 + $0x20] sm:$0xf]
  %v1744 = vld [vmem:[%s21 + $0x24] sm:$0xf]
  %v1745 = vld [vmem:[%s21 + $0x28] sm:$0xf]
  %v1746 = vld [vmem:[%s21 + $0x2c] sm:$0xf]
  %v1747 = vld [vmem:[%s21 + $0x30] sm:$0xf]
  %v1748 = vld [vmem:[%s21 + $0x34] sm:$0xf]
  %v1749 = vld [vmem:[%s21 + $0x38] sm:$0xf]
  %v1750 = vld [vmem:[%s21 + $0x3c] sm:$0xf]
  %v1751 = vld [vmem:[%s21 + $0x40] sm:$0xf]
  %v1752 = vld [vmem:[%s21 + $0x44] sm:$0xf]
  %v1753 = vld [vmem:[%s21 + $0x48] sm:$0xf]
  %v1754 = vld [vmem:[%s21 + $0x4c] sm:$0xf]
  %v1755 = vld [vmem:[%s21 + $0x50] sm:$0xf]
  %v1756 = vld [vmem:[%s21 + $0x54] sm:$0xf]
  %v1757 = vld [vmem:[%s21 + $0x58] sm:$0xf]
  %v1758 = vld [vmem:[%s21 + $0x5c] sm:$0xf]
  %v1759 = vld [vmem:[%s21 + $0x60] sm:$0xf]
  %v1760 = vld [vmem:[%s21 + $0x64] sm:$0xf]
  %v1761 = vld [vmem:[%s21 + $0x68] sm:$0xf]
  %v1762 = vld [vmem:[%s21 + $0x6c] sm:$0xf]
  %v1763 = vld [vmem:[%s21 + $0x70] sm:$0xf]
  %v1764 = vld [vmem:[%s21 + $0x74] sm:$0xf]
  %v1765 = vld [vmem:[%s21 + $0x78] sm:$0xf]
  %v1766 = vld [vmem:[%s21 + $0x7c] sm:$0xf]
  %v1767 = vpack.c.bf16 %v1733, %v1731
  %v1768 = vpack.c.bf16 %v1734, %v1732
  %v1801 = vunpack.c.l.b16 %v1735
  %v1802 = vunpack.c.l.b16 %v1736
  %v1803 = vunpack.c.l.b16 %v1737
  %v1804 = vunpack.c.l.b16 %v1738
  %v1805 = vunpack.c.l.b16 %v1739
  %v1806 = vunpack.c.l.b16 %v1740
  %v1807 = vunpack.c.l.b16 %v1741
  %v1808 = vunpack.c.l.b16 %v1742
  %v1809 = vunpack.c.l.b16 %v1743
  %v1810 = vunpack.c.l.b16 %v1744
  %v1811 = vunpack.c.l.b16 %v1745
  %v1812 = vunpack.c.l.b16 %v1746
  %v1813 = vunpack.c.l.b16 %v1747
  %v1814 = vunpack.c.l.b16 %v1748
  %v1815 = vunpack.c.l.b16 %v1749
  %v1816 = vunpack.c.l.b16 %v1750
  %v1817 = vunpack.c.l.b16 %v1751
  %v1818 = vunpack.c.l.b16 %v1752
  %v1819 = vunpack.c.l.b16 %v1753
  %v1820 = vunpack.c.l.b16 %v1754
  %v1821 = vunpack.c.l.b16 %v1755
  %v1822 = vunpack.c.l.b16 %v1756
  %v1823 = vunpack.c.l.b16 %v1757
  %v1824 = vunpack.c.l.b16 %v1758
  %v1825 = vunpack.c.l.b16 %v1759
  %v1826 = vunpack.c.l.b16 %v1760
  %v1827 = vunpack.c.l.b16 %v1761
  %v1828 = vunpack.c.l.b16 %v1762
  %v1829 = vunpack.c.l.b16 %v1763
  %v1830 = vunpack.c.l.b16 %v1764
  %v1831 = vunpack.c.l.b16 %v1765
  %v1832 = vunpack.c.l.b16 %v1766
  %v1833 = vpack.c.b16 %v1802, %v1801
  %v1834 = vpack.c.b16 %v1804, %v1803
  %v1835 = vpack.c.b16 %v1806, %v1805
  %v1836 = vpack.c.b16 %v1808, %v1807
  %v1837 = vpack.c.b16 %v1810, %v1809
  %v1838 = vpack.c.b16 %v1812, %v1811
  %v1839 = vpack.c.b16 %v1814, %v1813
  %v1840 = vpack.c.b16 %v1816, %v1815
  %v1841 = vpack.c.b16 %v1818, %v1817
  %v1842 = vpack.c.b16 %v1820, %v1819
  %v1843 = vpack.c.b16 %v1822, %v1821
  %v1844 = vpack.c.b16 %v1824, %v1823
  %v1845 = vpack.c.b16 %v1826, %v1825
  %v1846 = vpack.c.b16 %v1828, %v1827
  %v1847 = vpack.c.b16 %v1830, %v1829
  %v1848 = vpack.c.b16 %v1832, %v1831
  %1865 = vmatprep.subr.bf16.mxu0 0
  %1866 = vmatpush1.bf16.msra.mxu0 %v1840
  %1867 = vmatprep.subr.bf16.mxu0 0
  %1868 = vmatpush1.bf16.msra.mxu0 %v1839
  %1869 = vmatprep.subr.bf16.mxu0 0
  %1870 = vmatpush1.bf16.msra.mxu0 %v1838
  %1871 = vmatprep.subr.bf16.mxu0 0
  %1872 = vmatpush1.bf16.msra.mxu0 %v1837
  %1873 = vmatprep.subr.bf16.mxu0 0
  %1874 = vmatpush1.bf16.msra.mxu0 %v1836
  %1875 = vmatprep.subr.bf16.mxu0 0
  %1876 = vmatpush1.bf16.msra.mxu0 %v1835
  %1877 = vmatprep.subr.bf16.mxu0 0
  %1878 = vmatpush1.bf16.msra.mxu0 %v1834
  %1879 = vmatprep.subr.bf16.mxu0 0
  %1880 = vmatpush1.bf16.msra.mxu0 %v1833
  %1881 = vmatprep.subr.bf16.mxu0 0
  %1882 = vmatpush2.bf16.msra.mxu0 %v1848
  %1883 = vmatprep.subr.bf16.mxu0 0
  %1884 = vmatpush2.bf16.msra.mxu0 %v1847
  %1885 = vmatprep.subr.bf16.mxu0 0
  %1886 = vmatpush2.bf16.msra.mxu0 %v1846
  %1887 = vmatprep.subr.bf16.mxu0 0
  %1888 = vmatpush2.bf16.msra.mxu0 %v1845
  %1889 = vmatprep.subr.bf16.mxu0 0
  %1890 = vmatpush2.bf16.msra.mxu0 %v1844
  %1891 = vmatprep.subr.bf16.mxu0 0
  %1892 = vmatpush2.bf16.msra.mxu0 %v1843
  %1893 = vmatprep.subr.bf16.mxu0 0
  %1894 = vmatpush2.bf16.msra.mxu0 %v1842
  %1895 = vmatprep.subr.bf16.mxu0 0
  %1896 = vmatpush2.bf16.msra.mxu0 %v1841
  %1897 = vmatprep.mubr.bf16.mxu0 %v1768
  %1898 = vmatmul.mubr.bf16.gmra.mxu0 %v1767
  %v1899 = vpop.f32.mrf.mxu0
  %v1900 = vadd.f32 0.0, %v1899
  %v1901 = vpop.f32.mrf.mxu0
  %v1902 = vpop.f32.mrf.mxu0
  %v1903 = vadd.f32 0.0, %v1902
  %v1904 = vpop.f32.mrf.mxu0
  %1905 = vdwg.mxu0
  %v1906 = vadd.f32 %v1542, %v1900
  %v1907 = vadd.f32 %v1543, %v1903
  %v1908 = vld [vmem:[%s22] sm:$0x1]
  %v1910 = vlaneseq
  %v1911 = vshrl.u32 %v1910, 7
  %v1912 = vsub.s32 0, %v1911
  %v1913 = vrot.slane %v1908, %v1912
  %v1915 = vadd.f32 %v1906, %v1913
  %v1916 = vadd.f32 %v1907, %v1913
  %s1917 = scalar_lea.vmem %s7, 1
  %v1918 = vld [vmem:[%s1917] sm:$0x1]
  %s1919 = scalar_lea.vmem %s8, 1
  %v1920 = vld [vmem:[%s1919] sm:$0x1]
  %v1921 = vsel %vm642, %v1915, 0.0
  %1922 = vadd.xlane.f32.xlu0 %v1921
  %v1923 = vpop.xlane.xlu0 %1922
  %v1924 = vsel %vm642, %v1916, 0.0
  %1925 = vadd.xlane.f32.xlu0 %v1924
  %v1926 = vpop.xlane.xlu0 %1925
  %v1927 = vmul.f32 %v1923, %v649
  %v1928 = vmul.f32 %v1926, %v649
  %v1929 = vmul.f32 %v1915, %v1915
  %v1930 = vmul.f32 %v1916, %v1916
  %v1931 = vsel %vm642, %v1929, 0.0
  %1932 = vadd.xlane.f32.xlu0 %v1931
  %v1933 = vpop.xlane.xlu0 %1932
  %v1934 = vsel %vm642, %v1930, 0.0
  %1935 = vadd.xlane.f32.xlu0 %v1934
  %v1936 = vpop.xlane.xlu0 %1935
  %v1937 = vmul.f32 %v1933, %v649
  %v1938 = vmul.f32 %v1936, %v649
  %v1939 = vmul.f32 %v1927, %v1927
  %v1940 = vmul.f32 %v1928, %v1928
  %v1941 = vsub.f32 %v1937, %v1939
  %v1942 = vsub.f32 %v1938, %v1940
  %v1943 = vsub.f32 %v1915, %v1927
  %v1944 = vsub.f32 %v1916, %v1928
  %v1945 = vadd.f32 %v1941, 1e-06
  %v1946 = vadd.f32 %v1942, 1e-06
  %v1947 = vrsqrt.pop %v1945
  %v1948 = vrsqrt.pop %v1946
  %v1949 = vmul.f32 %v1943, %v1947
  %v1950 = vmul.f32 %v1944, %v1948
  %v1952 = vlaneseq
  %v1953 = vshrl.u32 %v1952, 7
  %v1954 = vsub.s32 0, %v1953
  %v1955 = vrot.slane %v1918, %v1954
  %v1957 = vmul.f32 %v1949, %v1955
  %v1958 = vmul.f32 %v1950, %v1955
  %v1960 = vlaneseq
  %v1961 = vshrl.u32 %v1960, 7
  %v1962 = vsub.s32 0, %v1961
  %v1963 = vrot.slane %v1920, %v1962
  %v1965 = vadd.f32 %v1957, %v1963
  %v1966 = vadd.f32 %v1958, %v1963
  %v1967 = vpack.c.bf16 %v1966, %v1965
  %1968 = vmatprep.subr.bf16.mxu0 0
  %1969 = vmatpush1.bf16.msra.mxu0 0
  %1970 = vmatprep.subr.bf16.mxu0 0
  %1971 = vmatpush1.bf16.msra.mxu0 0
  %1972 = vmatprep.subr.bf16.mxu0 0
  %1973 = vmatpush1.bf16.msra.mxu0 0
  %1974 = vmatprep.subr.bf16.mxu0 0
  %1975 = vmatpush1.bf16.msra.mxu0 0
  %1976 = vmatprep.subr.bf16.mxu0 0
  %1977 = vmatpush1.bf16.msra.mxu0 0
  %1978 = vmatprep.subr.bf16.mxu0 0
  %1979 = vmatpush1.bf16.msra.mxu0 0
  %1980 = vmatprep.subr.bf16.mxu0 0
  %1981 = vmatpush1.bf16.msra.mxu0 0
  %1982 = vmatprep.subr.bf16.mxu0 0
  %1983 = vmatpush1.bf16.msra.mxu0 %v1967
  %1984 = vmatprep.subr.bf16.mxu0 0
  %1985 = vmatpush2.bf16.msra.mxu0 0
  %1986 = vmatprep.subr.bf16.mxu0 0
  %1987 = vmatpush2.bf16.msra.mxu0 0
  %1988 = vmatprep.subr.bf16.mxu0 0
  %1989 = vmatpush2.bf16.msra.mxu0 0
  %1990 = vmatprep.subr.bf16.mxu0 0
  %1991 = vmatpush2.bf16.msra.mxu0 0
  %1992 = vmatprep.subr.bf16.mxu0 0
  %1993 = vmatpush2.bf16.msra.mxu0 0
  %1994 = vmatprep.subr.bf16.mxu0 0
  %1995 = vmatpush2.bf16.msra.mxu0 0
  %1996 = vmatprep.subr.bf16.mxu0 0
  %1997 = vmatpush2.bf16.msra.mxu0 0
  %1998 = vmatprep.subr.bf16.mxu0 0
  %1999 = vmatpush2.bf16.msra.mxu0 0
  %2000 = vmatprep.mubr.bf16.mxu0 0
  %2001 = vmatmul.mubr.bf16.gmra.mxu0 %v713
  %v2002 = vpop.f32.mrf.mxu0
  %v2003 = vadd.f32 0.0, %v2002
  %v2004 = vpop.f32.mrf.mxu0
  %v2005 = vpop.f32.mrf.mxu0
  %v2006 = vadd.f32 0.0, %v2005
  %v2007 = vpop.f32.mrf.mxu0
  %2008 = vmatprep.mubr.bf16.mxu0 0
  %2009 = vmatmul.mubr.bf16.gmra.mxu0 %v716
  %v2010 = vpop.f32.mrf.mxu0
  %v2011 = vadd.f32 0.0, %v2010
  %v2012 = vpop.f32.mrf.mxu0
  %v2013 = vpop.f32.mrf.mxu0
  %v2014 = vadd.f32 0.0, %v2013
  %v2015 = vpop.f32.mrf.mxu0
  %2016 = vmatprep.mubr.bf16.mxu0 0
  %2017 = vmatmul.mubr.bf16.gmra.mxu0 %v719
  %v2018 = vpop.f32.mrf.mxu0
  %v2019 = vadd.f32 0.0, %v2018
  %v2020 = vpop.f32.mrf.mxu0
  %v2021 = vpop.f32.mrf.mxu0
  %v2022 = vadd.f32 0.0, %v2021
  %v2023 = vpop.f32.mrf.mxu0
  %2024 = vmatprep.mubr.bf16.mxu0 0
  %2025 = vmatmul.mubr.bf16.gmra.mxu0 %v722
  %v2026 = vpop.f32.mrf.mxu0
  %v2027 = vadd.f32 0.0, %v2026
  %v2028 = vpop.f32.mrf.mxu0
  %v2029 = vpop.f32.mrf.mxu0
  %v2030 = vadd.f32 0.0, %v2029
  %v2031 = vpop.f32.mrf.mxu0
  %2032 = vdwg.mxu0
  %s2033 = scalar_lea.vmem %s9, 32
  %v2034 = vld [vmem:[%s2033] sm:$0xf]
  %v2035 = vld [vmem:[%s2033 + $0x4] sm:$0xf]
  %v2036 = vld [vmem:[%s2033 + $0x8] sm:$0xf]
  %v2037 = vld [vmem:[%s2033 + $0xc] sm:$0xf]
  %v2038 = vld [vmem:[%s2033 + $0x10] sm:$0xf]
  %v2039 = vld [vmem:[%s2033 + $0x14] sm:$0xf]
  %v2040 = vld [vmem:[%s2033 + $0x18] sm:$0xf]
  %v2041 = vld [vmem:[%s2033 + $0x1c] sm:$0xf]
  %v2042 = vpack.c.bf16 %v2006, %v2003
  %v2043 = vpack.c.bf16 %v2014, %v2011
  %v2044 = vpack.c.bf16 %v2022, %v2019
  %v2045 = vpack.c.bf16 %v2030, %v2027
  %s2046 = scalar_lea.vmem %s10, 1
  %v2047 = vld [vmem:[%s2046] sm:$0x1]
  %v2049 = vlaneseq
  %v2050 = vshrl.u32 %v2049, 7
  %v2051 = vsub.s32 0, %v2050
  %v2052 = vrot.slane %v2047, %v2051
  %v2062 = vunpack.c.l.b16 %v2034
  %v2063 = vunpack.c.l.b16 %v2035
  %v2064 = vunpack.c.l.b16 %v2036
  %v2065 = vunpack.c.l.b16 %v2037
  %v2066 = vunpack.c.l.b16 %v2038
  %v2067 = vunpack.c.l.b16 %v2039
  %v2068 = vunpack.c.l.b16 %v2040
  %v2069 = vunpack.c.l.b16 %v2041
  %v2070 = vpack.c.b16 %v2063, %v2062
  %v2071 = vpack.c.b16 %v2065, %v2064
  %v2072 = vpack.c.b16 %v2067, %v2066
  %v2073 = vpack.c.b16 %v2069, %v2068
  %v2079 = vsel %vm642, %v2042, 0
  %v2082 = vsel %vm642, %v2043, 0
  %v2085 = vsel %vm642, %v2044, 0
  %v2088 = vsel %vm642, %v2045, 0
  %2090 = vmatprep.subr.bf16.mxu0 0
  %2091 = vmatpush1.bf16.msra.mxu0 0
  %2092 = vmatprep.subr.bf16.mxu0 0
  %2093 = vmatpush1.bf16.msra.mxu0 0
  %2094 = vmatprep.subr.bf16.mxu0 0
  %2095 = vmatpush1.bf16.msra.mxu0 0
  %2096 = vmatprep.subr.bf16.mxu0 0
  %2097 = vmatpush1.bf16.msra.mxu0 0
  %2098 = vmatprep.subr.bf16.mxu0 0
  %2099 = vmatpush1.bf16.msra.mxu0 %v2073
  %2100 = vmatprep.subr.bf16.mxu0 0
  %2101 = vmatpush1.bf16.msra.mxu0 %v2072
  %2102 = vmatprep.subr.bf16.mxu0 0
  %2103 = vmatpush1.bf16.msra.mxu0 %v2071
  %2104 = vmatprep.subr.bf16.mxu0 0
  %2105 = vmatpush1.bf16.msra.mxu0 %v2070
  %2106 = vmatprep.subr.bf16.mxu0 0
  %2107 = vmatpush2.bf16.msra.mxu0 0
  %2108 = vmatprep.subr.bf16.mxu0 0
  %2109 = vmatpush2.bf16.msra.mxu0 0
  %2110 = vmatprep.subr.bf16.mxu0 0
  %2111 = vmatpush2.bf16.msra.mxu0 0
  %2112 = vmatprep.subr.bf16.mxu0 0
  %2113 = vmatpush2.bf16.msra.mxu0 0
  %2114 = vmatprep.subr.bf16.mxu0 0
  %2115 = vmatpush2.bf16.msra.mxu0 0
  %2116 = vmatprep.subr.bf16.mxu0 0
  %2117 = vmatpush2.bf16.msra.mxu0 0
  %2118 = vmatprep.subr.bf16.mxu0 0
  %2119 = vmatpush2.bf16.msra.mxu0 0
  %2120 = vmatprep.subr.bf16.mxu0 0
  %2121 = vmatpush2.bf16.msra.mxu0 0
  %2122 = vmatprep.mubr.bf16.mxu0 0
  %2123 = vmatmul.mubr.bf16.gmra.mxu0 %v2079
  %v2124 = vpop.f32.mrf.mxu0
  %v2125 = vadd.f32 %v2052, %v2124
  %v2126 = vpop.f32.mrf.mxu0
  %v2127 = vpop.f32.mrf.mxu0
  %v2128 = vadd.f32 %v2052, %v2127
  %v2129 = vpop.f32.mrf.mxu0
  %2130 = vmatprep.mubr.bf16.mxu0 0
  %2131 = vmatmul.mubr.bf16.gmra.mxu0 %v2082
  %v2132 = vpop.f32.mrf.mxu0
  %v2133 = vadd.f32 %v2052, %v2132
  %v2134 = vpop.f32.mrf.mxu0
  %v2135 = vpop.f32.mrf.mxu0
  %v2136 = vadd.f32 %v2052, %v2135
  %v2137 = vpop.f32.mrf.mxu0
  %2138 = vmatprep.mubr.bf16.mxu0 0
  %2139 = vmatmul.mubr.bf16.gmra.mxu0 %v2085
  %v2140 = vpop.f32.mrf.mxu0
  %v2141 = vadd.f32 %v2052, %v2140
  %v2142 = vpop.f32.mrf.mxu0
  %v2143 = vpop.f32.mrf.mxu0
  %v2144 = vadd.f32 %v2052, %v2143
  %v2145 = vpop.f32.mrf.mxu0
  %2146 = vmatprep.mubr.bf16.mxu0 0
  %2147 = vmatmul.mubr.bf16.gmra.mxu0 %v2088
  %v2148 = vpop.f32.mrf.mxu0
  %v2149 = vadd.f32 %v2052, %v2148
  %v2150 = vpop.f32.mrf.mxu0
  %v2151 = vpop.f32.mrf.mxu0
  %v2152 = vadd.f32 %v2052, %v2151
  %v2153 = vpop.f32.mrf.mxu0
  %2154 = vdwg.mxu0
  %s2155 = scalar_lea.vmem %s11, 32
  %v2156 = vld [vmem:[%s2155] sm:$0xf]
  %v2157 = vld [vmem:[%s2155 + $0x4] sm:$0xf]
  %v2158 = vld [vmem:[%s2155 + $0x8] sm:$0xf]
  %v2159 = vld [vmem:[%s2155 + $0xc] sm:$0xf]
  %v2160 = vld [vmem:[%s2155 + $0x10] sm:$0xf]
  %v2161 = vld [vmem:[%s2155 + $0x14] sm:$0xf]
  %v2162 = vld [vmem:[%s2155 + $0x18] sm:$0xf]
  %v2163 = vld [vmem:[%s2155 + $0x1c] sm:$0xf]
  %s2164 = scalar_lea.vmem %s12, 1
  %v2165 = vld [vmem:[%s2164] sm:$0x1]
  %v2167 = vlaneseq
  %v2168 = vshrl.u32 %v2167, 7
  %v2169 = vsub.s32 0, %v2168
  %v2170 = vrot.slane %v2165, %v2169
  %v2180 = vunpack.c.l.b16 %v2156
  %v2181 = vunpack.c.l.b16 %v2157
  %v2182 = vunpack.c.l.b16 %v2158
  %v2183 = vunpack.c.l.b16 %v2159
  %v2184 = vunpack.c.l.b16 %v2160
  %v2185 = vunpack.c.l.b16 %v2161
  %v2186 = vunpack.c.l.b16 %v2162
  %v2187 = vunpack.c.l.b16 %v2163
  %v2188 = vpack.c.b16 %v2181, %v2180
  %v2189 = vpack.c.b16 %v2183, %v2182
  %v2190 = vpack.c.b16 %v2185, %v2184
  %v2191 = vpack.c.b16 %v2187, %v2186
  %2196 = vmatprep.subr.bf16.mxu0 0
  %2197 = vmatpush1.bf16.msra.mxu0 0
  %2198 = vmatprep.subr.bf16.mxu0 0
  %2199 = vmatpush1.bf16.msra.mxu0 0
  %2200 = vmatprep.subr.bf16.mxu0 0
  %2201 = vmatpush1.bf16.msra.mxu0 0
  %2202 = vmatprep.subr.bf16.mxu0 0
  %2203 = vmatpush1.bf16.msra.mxu0 0
  %2204 = vmatprep.subr.bf16.mxu0 0
  %2205 = vmatpush1.bf16.msra.mxu0 %v2191
  %2206 = vmatprep.subr.bf16.mxu0 0
  %2207 = vmatpush1.bf16.msra.mxu0 %v2190
  %2208 = vmatprep.subr.bf16.mxu0 0
  %2209 = vmatpush1.bf16.msra.mxu0 %v2189
  %2210 = vmatprep.subr.bf16.mxu0 0
  %2211 = vmatpush1.bf16.msra.mxu0 %v2188
  %2212 = vmatprep.subr.bf16.mxu0 0
  %2213 = vmatpush2.bf16.msra.mxu0 0
  %2214 = vmatprep.subr.bf16.mxu0 0
  %2215 = vmatpush2.bf16.msra.mxu0 0
  %2216 = vmatprep.subr.bf16.mxu0 0
  %2217 = vmatpush2.bf16.msra.mxu0 0
  %2218 = vmatprep.subr.bf16.mxu0 0
  %2219 = vmatpush2.bf16.msra.mxu0 0
  %2220 = vmatprep.subr.bf16.mxu0 0
  %2221 = vmatpush2.bf16.msra.mxu0 0
  %2222 = vmatprep.subr.bf16.mxu0 0
  %2223 = vmatpush2.bf16.msra.mxu0 0
  %2224 = vmatprep.subr.bf16.mxu0 0
  %2225 = vmatpush2.bf16.msra.mxu0 0
  %2226 = vmatprep.subr.bf16.mxu0 0
  %2227 = vmatpush2.bf16.msra.mxu0 0
  %2228 = vmatprep.mubr.bf16.mxu0 0
  %2229 = vmatmul.mubr.bf16.gmra.mxu0 %v2079
  %v2230 = vpop.f32.mrf.mxu0
  %v2231 = vadd.f32 %v2170, %v2230
  %v2232 = vpop.f32.mrf.mxu0
  %v2233 = vpop.f32.mrf.mxu0
  %v2234 = vadd.f32 %v2170, %v2233
  %v2235 = vpop.f32.mrf.mxu0
  %2236 = vmatprep.mubr.bf16.mxu0 0
  %2237 = vmatmul.mubr.bf16.gmra.mxu0 %v2082
  %v2238 = vpop.f32.mrf.mxu0
  %v2239 = vadd.f32 %v2170, %v2238
  %v2240 = vpop.f32.mrf.mxu0
  %v2241 = vpop.f32.mrf.mxu0
  %v2242 = vadd.f32 %v2170, %v2241
  %v2243 = vpop.f32.mrf.mxu0
  %2244 = vmatprep.mubr.bf16.mxu0 0
  %2245 = vmatmul.mubr.bf16.gmra.mxu0 %v2085
  %v2246 = vpop.f32.mrf.mxu0
  %v2247 = vadd.f32 %v2170, %v2246
  %v2248 = vpop.f32.mrf.mxu0
  %v2249 = vpop.f32.mrf.mxu0
  %v2250 = vadd.f32 %v2170, %v2249
  %v2251 = vpop.f32.mrf.mxu0
  %2252 = vmatprep.mubr.bf16.mxu0 0
  %2253 = vmatmul.mubr.bf16.gmra.mxu0 %v2088
  %v2254 = vpop.f32.mrf.mxu0
  %v2255 = vadd.f32 %v2170, %v2254
  %v2256 = vpop.f32.mrf.mxu0
  %v2257 = vpop.f32.mrf.mxu0
  %v2258 = vadd.f32 %v2170, %v2257
  %v2259 = vpop.f32.mrf.mxu0
  %2260 = vdwg.mxu0
  %v2261 = vmul.f32 %v2231, %v624
  %v2262 = vmul.f32 %v2234, %v625
  %v2263 = vmul.f32 %v2239, %v626
  %v2264 = vmul.f32 %v2242, %v627
  %v2265 = vmul.f32 %v2247, %v628
  %v2266 = vmul.f32 %v2250, %v629
  %v2267 = vmul.f32 %v2255, %v630
  %v2268 = vmul.f32 %v2258, %v631
  %s2269 = scalar_lea.vmem %s13, 32
  %v2270 = vld [vmem:[%s2269] sm:$0xf]
  %v2271 = vld [vmem:[%s2269 + $0x4] sm:$0xf]
  %v2272 = vld [vmem:[%s2269 + $0x8] sm:$0xf]
  %v2273 = vld [vmem:[%s2269 + $0xc] sm:$0xf]
  %v2274 = vld [vmem:[%s2269 + $0x10] sm:$0xf]
  %v2275 = vld [vmem:[%s2269 + $0x14] sm:$0xf]
  %v2276 = vld [vmem:[%s2269 + $0x18] sm:$0xf]
  %v2277 = vld [vmem:[%s2269 + $0x1c] sm:$0xf]
  %s2278 = scalar_lea.vmem %s14, 1
  %v2279 = vld [vmem:[%s2278] sm:$0x1]
  %v2281 = vlaneseq
  %v2282 = vshrl.u32 %v2281, 7
  %v2283 = vsub.s32 0, %v2282
  %v2284 = vrot.slane %v2279, %v2283
  %v2294 = vunpack.c.l.b16 %v2270
  %v2295 = vunpack.c.l.b16 %v2271
  %v2296 = vunpack.c.l.b16 %v2272
  %v2297 = vunpack.c.l.b16 %v2273
  %v2298 = vunpack.c.l.b16 %v2274
  %v2299 = vunpack.c.l.b16 %v2275
  %v2300 = vunpack.c.l.b16 %v2276
  %v2301 = vunpack.c.l.b16 %v2277
  %v2302 = vpack.c.b16 %v2295, %v2294
  %v2303 = vpack.c.b16 %v2297, %v2296
  %v2304 = vpack.c.b16 %v2299, %v2298
  %v2305 = vpack.c.b16 %v2301, %v2300
  %2310 = vmatprep.subr.bf16.mxu0 0
  %2311 = vmatpush1.bf16.msra.mxu0 0
  %2312 = vmatprep.subr.bf16.mxu0 0
  %2313 = vmatpush1.bf16.msra.mxu0 0
  %2314 = vmatprep.subr.bf16.mxu0 0
  %2315 = vmatpush1.bf16.msra.mxu0 0
  %2316 = vmatprep.subr.bf16.mxu0 0
  %2317 = vmatpush1.bf16.msra.mxu0 0
  %2318 = vmatprep.subr.bf16.mxu0 0
  %2319 = vmatpush1.bf16.msra.mxu0 %v2305
  %2320 = vmatprep.subr.bf16.mxu0 0
  %2321 = vmatpush1.bf16.msra.mxu0 %v2304
  %2322 = vmatprep.subr.bf16.mxu0 0
  %2323 = vmatpush1.bf16.msra.mxu0 %v2303
  %2324 = vmatprep.subr.bf16.mxu0 0
  %2325 = vmatpush1.bf16.msra.mxu0 %v2302
  %2326 = vmatprep.subr.bf16.mxu0 0
  %2327 = vmatpush2.bf16.msra.mxu0 0
  %2328 = vmatprep.subr.bf16.mxu0 0
  %2329 = vmatpush2.bf16.msra.mxu0 0
  %2330 = vmatprep.subr.bf16.mxu0 0
  %2331 = vmatpush2.bf16.msra.mxu0 0
  %2332 = vmatprep.subr.bf16.mxu0 0
  %2333 = vmatpush2.bf16.msra.mxu0 0
  %2334 = vmatprep.subr.bf16.mxu0 0
  %2335 = vmatpush2.bf16.msra.mxu0 0
  %2336 = vmatprep.subr.bf16.mxu0 0
  %2337 = vmatpush2.bf16.msra.mxu0 0
  %2338 = vmatprep.subr.bf16.mxu0 0
  %2339 = vmatpush2.bf16.msra.mxu0 0
  %2340 = vmatprep.subr.bf16.mxu0 0
  %2341 = vmatpush2.bf16.msra.mxu0 0
  %2342 = vmatprep.mubr.bf16.mxu0 0
  %2343 = vmatmul.mubr.bf16.gmra.mxu0 %v2079
  %v2344 = vpop.f32.mrf.mxu0
  %v2345 = vadd.f32 %v2284, %v2344
  %v2346 = vpop.f32.mrf.mxu0
  %v2347 = vpop.f32.mrf.mxu0
  %v2348 = vadd.f32 %v2284, %v2347
  %v2349 = vpop.f32.mrf.mxu0
  %2350 = vmatprep.mubr.bf16.mxu0 0
  %2351 = vmatmul.mubr.bf16.gmra.mxu0 %v2082
  %v2352 = vpop.f32.mrf.mxu0
  %v2353 = vadd.f32 %v2284, %v2352
  %v2354 = vpop.f32.mrf.mxu0
  %v2355 = vpop.f32.mrf.mxu0
  %v2356 = vadd.f32 %v2284, %v2355
  %v2357 = vpop.f32.mrf.mxu0
  %2358 = vmatprep.mubr.bf16.mxu0 0
  %2359 = vmatmul.mubr.bf16.gmra.mxu0 %v2085
  %v2360 = vpop.f32.mrf.mxu0
  %v2361 = vadd.f32 %v2284, %v2360
  %v2362 = vpop.f32.mrf.mxu0
  %v2363 = vpop.f32.mrf.mxu0
  %v2364 = vadd.f32 %v2284, %v2363
  %v2365 = vpop.f32.mrf.mxu0
  %2366 = vmatprep.mubr.bf16.mxu0 0
  %2367 = vmatmul.mubr.bf16.gmra.mxu0 %v2088
  %v2368 = vpop.f32.mrf.mxu0
  %v2369 = vadd.f32 %v2284, %v2368
  %v2370 = vpop.f32.mrf.mxu0
  %v2371 = vpop.f32.mrf.mxu0
  %v2372 = vadd.f32 %v2284, %v2371
  %v2373 = vpop.f32.mrf.mxu0
  %2374 = vdwg.mxu0
  %v2375 = vmul.f32 %v2345, %v624
  %v2376 = vmul.f32 %v2348, %v625
  %v2377 = vmul.f32 %v2353, %v626
  %v2378 = vmul.f32 %v2356, %v627
  %v2379 = vmul.f32 %v2361, %v628
  %v2380 = vmul.f32 %v2364, %v629
  %v2381 = vmul.f32 %v2369, %v630
  %v2382 = vmul.f32 %v2372, %v631
  %v2383 = vpack.c.bf16 %v2128, %v2125
  %v2384 = vpack.c.bf16 %v2136, %v2133
  %v2385 = vpack.c.bf16 %v2144, %v2141
  %v2386 = vpack.c.bf16 %v2152, %v2149
  %v2387 = vpack.c.bf16 %v2262, %v2261
  %v2388 = vpack.c.bf16 %v2264, %v2263
  %v2389 = vpack.c.bf16 %v2266, %v2265
  %v2390 = vpack.c.bf16 %v2268, %v2267
  %v2392 = vsel %vm642, %v2383, 0
  %v2395 = vsel %vm642, %v2384, 0
  %v2398 = vsel %vm642, %v2385, 0
  %v2401 = vsel %vm642, %v2386, 0
  %v2404 = vsel %vm642, %v2387, 0
  %v2407 = vsel %vm642, %v2388, 0
  %v2410 = vsel %vm642, %v2389, 0
  %v2413 = vsel %vm642, %v2390, 0
  %2415 = vmatprep.subr.bf16.mxu0 0
  %2416 = vmatpush1.bf16.xpose.msra.mxu0 0
  %2417 = vmatprep.subr.bf16.mxu0 0
  %2418 = vmatpush1.bf16.xpose.msra.mxu0 0
  %2419 = vmatprep.subr.bf16.mxu0 0
  %2420 = vmatpush1.bf16.xpose.msra.mxu0 0
  %2421 = vmatprep.subr.bf16.mxu0 0
  %2422 = vmatpush1.bf16.xpose.msra.mxu0 0
  %2423 = vmatprep.subr.bf16.mxu0 0
  %2424 = vmatpush1.bf16.xpose.msra.mxu0 %v2413
  %2425 = vmatprep.subr.bf16.mxu0 0
  %2426 = vmatpush1.bf16.xpose.msra.mxu0 %v2410
  %2427 = vmatprep.subr.bf16.mxu0 0
  %2428 = vmatpush1.bf16.xpose.msra.mxu0 %v2407
  %2429 = vmatprep.subr.bf16.mxu0 0
  %2430 = vmatpush1.bf16.xpose.msra.mxu0 %v2404
  %2431 = vmatprep.subr.bf16.mxu0 0
  %2432 = vmatpush2.bf16.xpose.msra.mxu0 0
  %2433 = vmatprep.subr.bf16.mxu0 0
  %2434 = vmatpush2.bf16.xpose.msra.mxu0 0
  %2435 = vmatprep.subr.bf16.mxu0 0
  %2436 = vmatpush2.bf16.xpose.msra.mxu0 0
  %2437 = vmatprep.subr.bf16.mxu0 0
  %2438 = vmatpush2.bf16.xpose.msra.mxu0 0
  %2439 = vmatprep.subr.bf16.mxu0 0
  %2440 = vmatpush2.bf16.xpose.msra.mxu0 0
  %2441 = vmatprep.subr.bf16.mxu0 0
  %2442 = vmatpush2.bf16.xpose.msra.mxu0 0
  %2443 = vmatprep.subr.bf16.mxu0 0
  %2444 = vmatpush2.bf16.xpose.msra.mxu0 0
  %2445 = vmatprep.subr.bf16.mxu0 0
  %2446 = vmatpush2.bf16.xpose.msra.mxu0 0
  %2447 = vmatprep.mubr.bf16.mxu0 0
  %2448 = vmatmul.mubr.bf16.gmra.mxu0 %v2392
  %v2449 = vpop.f32.mrf.mxu0
  %v2450 = vadd.f32 %v632, %v2449
  %v2451 = vpop.f32.mrf.mxu0
  %v2452 = vpop.f32.mrf.mxu0
  %v2453 = vadd.f32 %v633, %v2452
  %v2454 = vpop.f32.mrf.mxu0
  %2455 = vmatprep.mubr.bf16.mxu0 0
  %2456 = vmatmul.mubr.bf16.gmra.mxu0 %v2395
  %v2457 = vpop.f32.mrf.mxu0
  %v2458 = vadd.f32 %v634, %v2457
  %v2459 = vpop.f32.mrf.mxu0
  %v2460 = vpop.f32.mrf.mxu0
  %v2461 = vadd.f32 %v635, %v2460
  %v2462 = vpop.f32.mrf.mxu0
  %2463 = vmatprep.mubr.bf16.mxu0 0
  %2464 = vmatmul.mubr.bf16.gmra.mxu0 %v2398
  %v2465 = vpop.f32.mrf.mxu0
  %v2466 = vadd.f32 %v636, %v2465
  %v2467 = vpop.f32.mrf.mxu0
  %v2468 = vpop.f32.mrf.mxu0
  %v2469 = vadd.f32 %v637, %v2468
  %v2470 = vpop.f32.mrf.mxu0
  %2471 = vmatprep.mubr.bf16.mxu0 0
  %2472 = vmatmul.mubr.bf16.gmra.mxu0 %v2401
  %v2473 = vpop.f32.mrf.mxu0
  %v2474 = vadd.f32 %v638, %v2473
  %v2475 = vpop.f32.mrf.mxu0
  %v2476 = vpop.f32.mrf.mxu0
  %v2477 = vadd.f32 %v639, %v2476
  %v2478 = vpop.f32.mrf.mxu0
  %2479 = vdwg.mxu0
  %v2480 = vsel %vm642, %v2450, -inf
  %2481 = vmax.xlane.f32.xlu0 %v2480
  %v2482 = vpop.xlane.xlu0 %2481
  %v2483 = vsel %vm642, %v2453, -inf
  %2484 = vmax.xlane.f32.xlu0 %v2483
  %v2485 = vpop.xlane.xlu0 %2484
  %v2486 = vsel %vm642, %v2458, -inf
  %2487 = vmax.xlane.f32.xlu0 %v2486
  %v2488 = vpop.xlane.xlu0 %2487
  %v2489 = vsel %vm642, %v2461, -inf
  %2490 = vmax.xlane.f32.xlu0 %v2489
  %v2491 = vpop.xlane.xlu0 %2490
  %v2492 = vsel %vm642, %v2466, -inf
  %2493 = vmax.xlane.f32.xlu0 %v2492
  %v2494 = vpop.xlane.xlu0 %2493
  %v2495 = vsel %vm642, %v2469, -inf
  %2496 = vmax.xlane.f32.xlu0 %v2495
  %v2497 = vpop.xlane.xlu0 %2496
  %v2498 = vsel %vm642, %v2474, -inf
  %2499 = vmax.xlane.f32.xlu0 %v2498
  %v2500 = vpop.xlane.xlu0 %2499
  %v2501 = vsel %vm642, %v2477, -inf
  %2502 = vmax.xlane.f32.xlu0 %v2501
  %v2503 = vpop.xlane.xlu0 %2502
  %v2504 = vsub.f32 %v2450, %v2482
  %v2505 = vsub.f32 %v2453, %v2485
  %v2506 = vsub.f32 %v2458, %v2488
  %v2507 = vsub.f32 %v2461, %v2491
  %v2508 = vsub.f32 %v2466, %v2494
  %v2509 = vsub.f32 %v2469, %v2497
  %v2510 = vsub.f32 %v2474, %v2500
  %v2511 = vsub.f32 %v2477, %v2503
  %v2512 = vmul.f32 %v2504, 1.442695
  %v2513 = vpow.pop %v2512
  %v2514 = vmul.f32 %v2505, 1.442695
  %v2515 = vpow.pop %v2514
  %v2516 = vmul.f32 %v2506, 1.442695
  %v2517 = vpow.pop %v2516
  %v2518 = vmul.f32 %v2507, 1.442695
  %v2519 = vpow.pop %v2518
  %v2520 = vmul.f32 %v2508, 1.442695
  %v2521 = vpow.pop %v2520
  %v2522 = vmul.f32 %v2509, 1.442695
  %v2523 = vpow.pop %v2522
  %v2524 = vmul.f32 %v2510, 1.442695
  %v2525 = vpow.pop %v2524
  %v2526 = vmul.f32 %v2511, 1.442695
  %v2527 = vpow.pop %v2526
  %v2528 = vsel %vm642, %v2513, 0.0
  %2529 = vadd.xlane.f32.xlu0 %v2528
  %v2530 = vpop.xlane.xlu0 %2529
  %v2531 = vsel %vm642, %v2515, 0.0
  %2532 = vadd.xlane.f32.xlu0 %v2531
  %v2533 = vpop.xlane.xlu0 %2532
  %v2534 = vsel %vm642, %v2517, 0.0
  %2535 = vadd.xlane.f32.xlu0 %v2534
  %v2536 = vpop.xlane.xlu0 %2535
  %v2537 = vsel %vm642, %v2519, 0.0
  %2538 = vadd.xlane.f32.xlu0 %v2537
  %v2539 = vpop.xlane.xlu0 %2538
  %v2540 = vsel %vm642, %v2521, 0.0
  %2541 = vadd.xlane.f32.xlu0 %v2540
  %v2542 = vpop.xlane.xlu0 %2541
  %v2543 = vsel %vm642, %v2523, 0.0
  %2544 = vadd.xlane.f32.xlu0 %v2543
  %v2545 = vpop.xlane.xlu0 %2544
  %v2546 = vsel %vm642, %v2525, 0.0
  %2547 = vadd.xlane.f32.xlu0 %v2546
  %v2548 = vpop.xlane.xlu0 %2547
  %v2549 = vsel %vm642, %v2527, 0.0
  %2550 = vadd.xlane.f32.xlu0 %v2549
  %v2551 = vpop.xlane.xlu0 %2550
  %v2552 = vrcp.pop %v2530
  %v2553 = vrcp.pop %v2533
  %v2554 = vrcp.pop %v2536
  %v2555 = vrcp.pop %v2539
  %v2556 = vrcp.pop %v2542
  %v2557 = vrcp.pop %v2545
  %v2558 = vrcp.pop %v2548
  %v2559 = vrcp.pop %v2551
  %v2560 = vmul.f32 %v2513, %v2552
  %v2561 = vmul.f32 %v2515, %v2553
  %v2562 = vmul.f32 %v2517, %v2554
  %v2563 = vmul.f32 %v2519, %v2555
  %v2564 = vmul.f32 %v2521, %v2556
  %v2565 = vmul.f32 %v2523, %v2557
  %v2566 = vmul.f32 %v2525, %v2558
  %v2567 = vmul.f32 %v2527, %v2559
  %v2568 = vpack.c.bf16 %v2561, %v2560
  %v2569 = vpack.c.bf16 %v2563, %v2562
  %v2570 = vpack.c.bf16 %v2565, %v2564
  %v2571 = vpack.c.bf16 %v2567, %v2566
  %v2572 = vpack.c.bf16 %v2376, %v2375
  %v2573 = vpack.c.bf16 %v2378, %v2377
  %v2574 = vpack.c.bf16 %v2380, %v2379
  %v2575 = vpack.c.bf16 %v2382, %v2381
  %v2577 = vsel %vm642, %v2568, 0
  %v2580 = vsel %vm642, %v2569, 0
  %v2583 = vsel %vm642, %v2570, 0
  %v2586 = vsel %vm642, %v2571, 0
  %2588 = vmatprep.subr.bf16.mxu0 0
  %2589 = vmatpush1.bf16.msra.mxu0 0
  %2590 = vmatprep.subr.bf16.mxu0 0
  %2591 = vmatpush1.bf16.msra.mxu0 0
  %2592 = vmatprep.subr.bf16.mxu0 0
  %2593 = vmatpush1.bf16.msra.mxu0 0
  %2594 = vmatprep.subr.bf16.mxu0 0
  %2595 = vmatpush1.bf16.msra.mxu0 0
  %2596 = vmatprep.subr.bf16.mxu0 0
  %2597 = vmatpush1.bf16.msra.mxu0 %v2575
  %2598 = vmatprep.subr.bf16.mxu0 0
  %2599 = vmatpush1.bf16.msra.mxu0 %v2574
  %2600 = vmatprep.subr.bf16.mxu0 0
  %2601 = vmatpush1.bf16.msra.mxu0 %v2573
  %2602 = vmatprep.subr.bf16.mxu0 0
  %2603 = vmatpush1.bf16.msra.mxu0 %v2572
  %2604 = vmatprep.subr.bf16.mxu0 0
  %2605 = vmatpush2.bf16.msra.mxu0 0
  %2606 = vmatprep.subr.bf16.mxu0 0
  %2607 = vmatpush2.bf16.msra.mxu0 0
  %2608 = vmatprep.subr.bf16.mxu0 0
  %2609 = vmatpush2.bf16.msra.mxu0 0
  %2610 = vmatprep.subr.bf16.mxu0 0
  %2611 = vmatpush2.bf16.msra.mxu0 0
  %2612 = vmatprep.subr.bf16.mxu0 0
  %2613 = vmatpush2.bf16.msra.mxu0 0
  %2614 = vmatprep.subr.bf16.mxu0 0
  %2615 = vmatpush2.bf16.msra.mxu0 0
  %2616 = vmatprep.subr.bf16.mxu0 0
  %2617 = vmatpush2.bf16.msra.mxu0 0
  %2618 = vmatprep.subr.bf16.mxu0 0
  %2619 = vmatpush2.bf16.msra.mxu0 0
  %2620 = vmatprep.mubr.bf16.mxu0 0
  %2621 = vmatmul.mubr.bf16.gmra.mxu0 %v2577
  %v2622 = vpop.f32.mrf.mxu0
  %v2623 = vadd.f32 0.0, %v2622
  %v2624 = vpop.f32.mrf.mxu0
  %v2625 = vpop.f32.mrf.mxu0
  %v2626 = vadd.f32 0.0, %v2625
  %v2627 = vpop.f32.mrf.mxu0
  %2628 = vmatprep.mubr.bf16.mxu0 0
  %2629 = vmatmul.mubr.bf16.gmra.mxu0 %v2580
  %v2630 = vpop.f32.mrf.mxu0
  %v2631 = vadd.f32 0.0, %v2630
  %v2632 = vpop.f32.mrf.mxu0
  %v2633 = vpop.f32.mrf.mxu0
  %v2634 = vadd.f32 0.0, %v2633
  %v2635 = vpop.f32.mrf.mxu0
  %2636 = vmatprep.mubr.bf16.mxu0 0
  %2637 = vmatmul.mubr.bf16.gmra.mxu0 %v2583
  %v2638 = vpop.f32.mrf.mxu0
  %v2639 = vadd.f32 0.0, %v2638
  %v2640 = vpop.f32.mrf.mxu0
  %v2641 = vpop.f32.mrf.mxu0
  %v2642 = vadd.f32 0.0, %v2641
  %v2643 = vpop.f32.mrf.mxu0
  %2644 = vmatprep.mubr.bf16.mxu0 0
  %2645 = vmatmul.mubr.bf16.gmra.mxu0 %v2586
  %v2646 = vpop.f32.mrf.mxu0
  %v2647 = vadd.f32 0.0, %v2646
  %v2648 = vpop.f32.mrf.mxu0
  %v2649 = vpop.f32.mrf.mxu0
  %v2650 = vadd.f32 0.0, %v2649
  %v2651 = vpop.f32.mrf.mxu0
  %2652 = vdwg.mxu0
  %v2653 = vpack.c.bf16 %v2626, %v2623
  %v2654 = vpack.c.bf16 %v2634, %v2631
  %v2655 = vpack.c.bf16 %v2642, %v2639
  %v2656 = vpack.c.bf16 %v2650, %v2647
  %2657 = vmatprep.subr.bf16.mxu0 0
  %2658 = vmatpush1.bf16.msra.mxu0 0
  %2659 = vmatprep.subr.bf16.mxu0 0
  %2660 = vmatpush1.bf16.msra.mxu0 0
  %2661 = vmatprep.subr.bf16.mxu0 0
  %2662 = vmatpush1.bf16.msra.mxu0 0
  %2663 = vmatprep.subr.bf16.mxu0 0
  %2664 = vmatpush1.bf16.msra.mxu0 0
  %2665 = vmatprep.subr.bf16.mxu0 0
  %2666 = vmatpush1.bf16.msra.mxu0 %v2656
  %2667 = vmatprep.subr.bf16.mxu0 0
  %2668 = vmatpush1.bf16.msra.mxu0 %v2655
  %2669 = vmatprep.subr.bf16.mxu0 0
  %2670 = vmatpush1.bf16.msra.mxu0 %v2654
  %2671 = vmatprep.subr.bf16.mxu0 0
  %2672 = vmatpush1.bf16.msra.mxu0 %v2653
  %2673 = vmatprep.subr.bf16.mxu0 0
  %2674 = vmatpush2.bf16.msra.mxu0 0
  %2675 = vmatprep.subr.bf16.mxu0 0
  %2676 = vmatpush2.bf16.msra.mxu0 0
  %2677 = vmatprep.subr.bf16.mxu0 0
  %2678 = vmatpush2.bf16.msra.mxu0 0
  %2679 = vmatprep.subr.bf16.mxu0 0
  %2680 = vmatpush2.bf16.msra.mxu0 0
  %2681 = vmatprep.subr.bf16.mxu0 0
  %2682 = vmatpush2.bf16.msra.mxu0 0
  %2683 = vmatprep.subr.bf16.mxu0 0
  %2684 = vmatpush2.bf16.msra.mxu0 0
  %2685 = vmatprep.subr.bf16.mxu0 0
  %2686 = vmatpush2.bf16.msra.mxu0 0
  %2687 = vmatprep.subr.bf16.mxu0 0
  %2688 = vmatpush2.bf16.msra.mxu0 0
  %2689 = vmatprep.mubr.bf16.mxu0 0
  %2690 = vmatmul.mubr.bf16.gmra.mxu0 %v1413
  %v2691 = vpop.f32.mrf.mxu0
  %v2692 = vadd.f32 0.0, %v2691
  %v2693 = vpop.f32.mrf.mxu0
  %v2694 = vpop.f32.mrf.mxu0
  %v2695 = vadd.f32 0.0, %v2694
  %v2696 = vpop.f32.mrf.mxu0
  %2697 = vdwg.mxu0
  %s2698 = scalar_lea.vmem %s15, 32
  %v2699 = vld [vmem:[%s2698] sm:$0xf]
  %v2700 = vld [vmem:[%s2698 + $0x4] sm:$0xf]
  %v2701 = vld [vmem:[%s2698 + $0x8] sm:$0xf]
  %v2702 = vld [vmem:[%s2698 + $0xc] sm:$0xf]
  %v2703 = vld [vmem:[%s2698 + $0x10] sm:$0xf]
  %v2704 = vld [vmem:[%s2698 + $0x14] sm:$0xf]
  %v2705 = vld [vmem:[%s2698 + $0x18] sm:$0xf]
  %v2706 = vld [vmem:[%s2698 + $0x1c] sm:$0xf]
  %v2707 = vpack.c.bf16 %v2695, %v2692
  %v2716 = vunpack.c.l.b16 %v2699
  %v2717 = vunpack.c.l.b16 %v2700
  %v2718 = vunpack.c.l.b16 %v2701
  %v2719 = vunpack.c.l.b16 %v2702
  %v2720 = vunpack.c.l.b16 %v2703
  %v2721 = vunpack.c.l.b16 %v2704
  %v2722 = vunpack.c.l.b16 %v2705
  %v2723 = vunpack.c.l.b16 %v2706
  %v2724 = vpack.c.b16 %v2717, %v2716
  %v2725 = vpack.c.b16 %v2719, %v2718
  %v2726 = vpack.c.b16 %v2721, %v2720
  %v2727 = vpack.c.b16 %v2723, %v2722
  %v2733 = vsel %vm642, %v2707, 0
  %2735 = vmatprep.subr.bf16.mxu0 0
  %2736 = vmatpush1.bf16.msra.mxu0 0
  %2737 = vmatprep.subr.bf16.mxu0 0
  %2738 = vmatpush1.bf16.msra.mxu0 0
  %2739 = vmatprep.subr.bf16.mxu0 0
  %2740 = vmatpush1.bf16.msra.mxu0 0
  %2741 = vmatprep.subr.bf16.mxu0 0
  %2742 = vmatpush1.bf16.msra.mxu0 0
  %2743 = vmatprep.subr.bf16.mxu0 0
  %2744 = vmatpush1.bf16.msra.mxu0 %v2727
  %2745 = vmatprep.subr.bf16.mxu0 0
  %2746 = vmatpush1.bf16.msra.mxu0 %v2726
  %2747 = vmatprep.subr.bf16.mxu0 0
  %2748 = vmatpush1.bf16.msra.mxu0 %v2725
  %2749 = vmatprep.subr.bf16.mxu0 0
  %2750 = vmatpush1.bf16.msra.mxu0 %v2724
  %2751 = vmatprep.subr.bf16.mxu0 0
  %2752 = vmatpush2.bf16.msra.mxu0 0
  %2753 = vmatprep.subr.bf16.mxu0 0
  %2754 = vmatpush2.bf16.msra.mxu0 0
  %2755 = vmatprep.subr.bf16.mxu0 0
  %2756 = vmatpush2.bf16.msra.mxu0 0
  %2757 = vmatprep.subr.bf16.mxu0 0
  %2758 = vmatpush2.bf16.msra.mxu0 0
  %2759 = vmatprep.subr.bf16.mxu0 0
  %2760 = vmatpush2.bf16.msra.mxu0 0
  %2761 = vmatprep.subr.bf16.mxu0 0
  %2762 = vmatpush2.bf16.msra.mxu0 0
  %2763 = vmatprep.subr.bf16.mxu0 0
  %2764 = vmatpush2.bf16.msra.mxu0 0
  %2765 = vmatprep.subr.bf16.mxu0 0
  %2766 = vmatpush2.bf16.msra.mxu0 0
  %2767 = vmatprep.mubr.bf16.mxu0 0
  %2768 = vmatmul.mubr.bf16.gmra.mxu0 %v2733
  %v2769 = vpop.f32.mrf.mxu0
  %v2770 = vadd.f32 0.0, %v2769
  %v2771 = vpop.f32.mrf.mxu0
  %v2772 = vpop.f32.mrf.mxu0
  %v2773 = vadd.f32 0.0, %v2772
  %v2774 = vpop.f32.mrf.mxu0
  %2775 = vdwg.mxu0
  %v2776 = vadd.f32 %v1915, %v2770
  %v2777 = vadd.f32 %v1916, %v2773
  %s2778 = scalar_lea.vmem %s16, 1
  %v2779 = vld [vmem:[%s2778] sm:$0x1]
  %v2781 = vlaneseq
  %v2782 = vshrl.u32 %v2781, 7
  %v2783 = vsub.s32 0, %v2782
  %v2784 = vrot.slane %v2779, %v2783
  %v2786 = vadd.f32 %v2776, %v2784
  %v2787 = vadd.f32 %v2777, %v2784
  %s2788 = scalar_lea.vmem %s17, 1
  %v2789 = vld [vmem:[%s2788] sm:$0x1]
  %s2790 = scalar_lea.vmem %s18, 1
  %v2791 = vld [vmem:[%s2790] sm:$0x1]
  %v2792 = vsel %vm642, %v2786, 0.0
  %2793 = vadd.xlane.f32.xlu0 %v2792
  %v2794 = vpop.xlane.xlu0 %2793
  %v2795 = vsel %vm642, %v2787, 0.0
  %2796 = vadd.xlane.f32.xlu0 %v2795
  %v2797 = vpop.xlane.xlu0 %2796
  %v2798 = vmul.f32 %v2794, %v649
  %v2799 = vmul.f32 %v2797, %v649
  %v2800 = vmul.f32 %v2786, %v2786
  %v2801 = vmul.f32 %v2787, %v2787
  %v2802 = vsel %vm642, %v2800, 0.0
  %2803 = vadd.xlane.f32.xlu0 %v2802
  %v2804 = vpop.xlane.xlu0 %2803
  %v2805 = vsel %vm642, %v2801, 0.0
  %2806 = vadd.xlane.f32.xlu0 %v2805
  %v2807 = vpop.xlane.xlu0 %2806
  %v2808 = vmul.f32 %v2804, %v649
  %v2809 = vmul.f32 %v2807, %v649
  %v2810 = vmul.f32 %v2798, %v2798
  %v2811 = vmul.f32 %v2799, %v2799
  %v2812 = vsub.f32 %v2808, %v2810
  %v2813 = vsub.f32 %v2809, %v2811
  %v2814 = vsub.f32 %v2786, %v2798
  %v2815 = vsub.f32 %v2787, %v2799
  %v2816 = vadd.f32 %v2812, 1e-06
  %v2817 = vadd.f32 %v2813, 1e-06
  %v2818 = vrsqrt.pop %v2816
  %v2819 = vrsqrt.pop %v2817
  %v2820 = vmul.f32 %v2814, %v2818
  %v2821 = vmul.f32 %v2815, %v2819
  %v2823 = vlaneseq
  %v2824 = vshrl.u32 %v2823, 7
  %v2825 = vsub.s32 0, %v2824
  %v2826 = vrot.slane %v2789, %v2825
  %v2828 = vmul.f32 %v2820, %v2826
  %v2829 = vmul.f32 %v2821, %v2826
  %v2831 = vlaneseq
  %v2832 = vshrl.u32 %v2831, 7
  %v2833 = vsub.s32 0, %v2832
  %v2834 = vrot.slane %v2791, %v2833
  %v2836 = vadd.f32 %v2828, %v2834
  %v2837 = vadd.f32 %v2829, %v2834
  %s2838 = scalar_lea.vmem %s19, 64
  %v2839 = vld [vmem:[%s2838] sm:$0xff]
  %v2840 = vld [vmem:[%s2838 + $0x8] sm:$0xff]
  %v2841 = vld [vmem:[%s2838 + $0x10] sm:$0xff]
  %v2842 = vld [vmem:[%s2838 + $0x18] sm:$0xff]
  %v2843 = vld [vmem:[%s2838 + $0x20] sm:$0xff]
  %v2844 = vld [vmem:[%s2838 + $0x28] sm:$0xff]
  %v2845 = vld [vmem:[%s2838 + $0x30] sm:$0xff]
  %v2846 = vld [vmem:[%s2838 + $0x38] sm:$0xff]
  %v2847 = vpack.c.bf16 %v2837, %v2836
  %s2848 = scalar_lea.vmem %s20, 2
  %v2849 = vld [vmem:[%s2848] sm:$0x3]
  %v2851 = vlaneseq
  %v2852 = vshrl.u32 %v2851, 7
  %v2853 = vsub.s32 0, %v2852
  %v2854 = vrot.slane %v2849, %v2853
  %v2855 = vlaneseq
  %v2856 = vshrl.u32 %v2855, 7
  %v2857 = vsub.s32 1, %v2856
  %v2858 = vrot.slane %v2849, %v2857
  %v2869 = vunpack.c.l.b16 %v2839
  %v2870 = vunpack.c.h.b16 %v2839
  %v2871 = vunpack.c.l.b16 %v2840
  %v2872 = vunpack.c.h.b16 %v2840
  %v2873 = vunpack.c.l.b16 %v2841
  %v2874 = vunpack.c.h.b16 %v2841
  %v2875 = vunpack.c.l.b16 %v2842
  %v2876 = vunpack.c.h.b16 %v2842
  %v2877 = vunpack.c.l.b16 %v2843
  %v2878 = vunpack.c.h.b16 %v2843
  %v2879 = vunpack.c.l.b16 %v2844
  %v2880 = vunpack.c.h.b16 %v2844
  %v2881 = vunpack.c.l.b16 %v2845
  %v2882 = vunpack.c.h.b16 %v2845
  %v2883 = vunpack.c.l.b16 %v2846
  %v2884 = vunpack.c.h.b16 %v2846
  %v2885 = vpack.c.b16 %v2871, %v2869
  %v2886 = vpack.c.b16 %v2872, %v2870
  %v2887 = vpack.c.b16 %v2875, %v2873
  %v2888 = vpack.c.b16 %v2876, %v2874
  %v2889 = vpack.c.b16 %v2879, %v2877
  %v2890 = vpack.c.b16 %v2880, %v2878
  %v2891 = vpack.c.b16 %v2883, %v2881
  %v2892 = vpack.c.b16 %v2884, %v2882
  %v2902 = vsel %vm642, %v2847, 0
  %2904 = vmatprep.subr.bf16.mxu0 0
  %2905 = vmatpush1.bf16.msra.mxu0 0
  %2906 = vmatprep.subr.bf16.mxu0 0
  %2907 = vmatpush1.bf16.msra.mxu0 0
  %2908 = vmatprep.subr.bf16.mxu0 0
  %2909 = vmatpush1.bf16.msra.mxu0 0
  %2910 = vmatprep.subr.bf16.mxu0 0
  %2911 = vmatpush1.bf16.msra.mxu0 0
  %2912 = vmatprep.subr.bf16.mxu0 %v2892
  %2913 = vmatpush1.bf16.msra.mxu0 %v2891
  %2914 = vmatprep.subr.bf16.mxu0 %v2890
  %2915 = vmatpush1.bf16.msra.mxu0 %v2889
  %2916 = vmatprep.subr.bf16.mxu0 %v2888
  %2917 = vmatpush1.bf16.msra.mxu0 %v2887
  %2918 = vmatprep.subr.bf16.mxu0 %v2886
  %2919 = vmatpush1.bf16.msra.mxu0 %v2885
  %2920 = vmatprep.subr.bf16.mxu0 0
  %2921 = vmatpush2.bf16.msra.mxu0 0
  %2922 = vmatprep.subr.bf16.mxu0 0
  %2923 = vmatpush2.bf16.msra.mxu0 0
  %2924 = vmatprep.subr.bf16.mxu0 0
  %2925 = vmatpush2.bf16.msra.mxu0 0
  %2926 = vmatprep.subr.bf16.mxu0 0
  %2927 = vmatpush2.bf16.msra.mxu0 0
  %2928 = vmatprep.subr.bf16.mxu0 0
  %2929 = vmatpush2.bf16.msra.mxu0 0
  %2930 = vmatprep.subr.bf16.mxu0 0
  %2931 = vmatpush2.bf16.msra.mxu0 0
  %2932 = vmatprep.subr.bf16.mxu0 0
  %2933 = vmatpush2.bf16.msra.mxu0 0
  %2934 = vmatprep.subr.bf16.mxu0 0
  %2935 = vmatpush2.bf16.msra.mxu0 0
  %2936 = vmatprep.mubr.bf16.mxu0 0
  %2937 = vmatmul.mubr.bf16.gmra.mxu0 %v2902
  %v2938 = vpop.f32.mrf.mxu0
  %v2939 = vadd.f32 %v2854, %v2938
  %v2940 = vpop.f32.mrf.mxu0
  %v2941 = vadd.f32 %v2858, %v2940
  %v2942 = vpop.f32.mrf.mxu0
  %v2943 = vadd.f32 %v2854, %v2942
  %v2944 = vpop.f32.mrf.mxu0
  %v2945 = vadd.f32 %v2858, %v2944
  %2946 = vdwg.mxu0
  %v2947 = vmul.f32 %v2939, 0.5
  %v2948 = vmul.f32 %v2941, 0.5
  %v2949 = vmul.f32 %v2943, 0.5
  %v2950 = vmul.f32 %v2945, 0.5
  %v2951 = vmul.f32 %v2939, 0.044715
  %v2952 = vmul.f32 %v2941, 0.044715
  %v2953 = vmul.f32 %v2943, 0.044715
  %v2954 = vmul.f32 %v2945, 0.044715
  %v2955 = vmul.f32 %v2951, %v2939
  %v2956 = vmul.f32 %v2952, %v2941
  %v2957 = vmul.f32 %v2953, %v2943
  %v2958 = vmul.f32 %v2954, %v2945
  %v2959 = vmul.f32 %v2955, %v2939
  %v2960 = vmul.f32 %v2956, %v2941
  %v2961 = vmul.f32 %v2957, %v2943
  %v2962 = vmul.f32 %v2958, %v2945
  %v2963 = vadd.f32 %v2939, %v2959
  %v2964 = vadd.f32 %v2941, %v2960
  %v2965 = vadd.f32 %v2943, %v2961
  %v2966 = vadd.f32 %v2945, %v2962
  %v2967 = vmul.f32 %v2963, 0.7978846
  %v2968 = vmul.f32 %v2964, 0.7978846
  %v2969 = vmul.f32 %v2965, 0.7978846
  %v2970 = vmul.f32 %v2966, 0.7978846
  %v2971 = vtanh.pop %v2967
  %v2972 = vtanh.pop %v2968
  %v2973 = vtanh.pop %v2969
  %v2974 = vtanh.pop %v2970
  %v2975 = vadd.f32 %v2971, 1.0
  %v2976 = vadd.f32 %v2972, 1.0
  %v2977 = vadd.f32 %v2973, 1.0
  %v2978 = vadd.f32 %v2974, 1.0
  %v2979 = vmul.f32 %v2947, %v2975
  %v2980 = vmul.f32 %v2948, %v2976
  %v2981 = vmul.f32 %v2949, %v2977
  %v2982 = vmul.f32 %v2950, %v2978
  %s2983 = scalar_lea.vmem %s21, 128
  %v2984 = vld [vmem:[%s2983] sm:$0xf]
  %v2985 = vld [vmem:[%s2983 + $0x4] sm:$0xf]
  %v2986 = vld [vmem:[%s2983 + $0x8] sm:$0xf]
  %v2987 = vld [vmem:[%s2983 + $0xc] sm:$0xf]
  %v2988 = vld [vmem:[%s2983 + $0x10] sm:$0xf]
  %v2989 = vld [vmem:[%s2983 + $0x14] sm:$0xf]
  %v2990 = vld [vmem:[%s2983 + $0x18] sm:$0xf]
  %v2991 = vld [vmem:[%s2983 + $0x1c] sm:$0xf]
  %v2992 = vld [vmem:[%s2983 + $0x20] sm:$0xf]
  %v2993 = vld [vmem:[%s2983 + $0x24] sm:$0xf]
  %v2994 = vld [vmem:[%s2983 + $0x28] sm:$0xf]
  %v2995 = vld [vmem:[%s2983 + $0x2c] sm:$0xf]
  %v2996 = vld [vmem:[%s2983 + $0x30] sm:$0xf]
  %v2997 = vld [vmem:[%s2983 + $0x34] sm:$0xf]
  %v2998 = vld [vmem:[%s2983 + $0x38] sm:$0xf]
  %v2999 = vld [vmem:[%s2983 + $0x3c] sm:$0xf]
  %v3000 = vld [vmem:[%s2983 + $0x40] sm:$0xf]
  %v3001 = vld [vmem:[%s2983 + $0x44] sm:$0xf]
  %v3002 = vld [vmem:[%s2983 + $0x48] sm:$0xf]
  %v3003 = vld [vmem:[%s2983 + $0x4c] sm:$0xf]
  %v3004 = vld [vmem:[%s2983 + $0x50] sm:$0xf]
  %v3005 = vld [vmem:[%s2983 + $0x54] sm:$0xf]
  %v3006 = vld [vmem:[%s2983 + $0x58] sm:$0xf]
  %v3007 = vld [vmem:[%s2983 + $0x5c] sm:$0xf]
  %v3008 = vld [vmem:[%s2983 + $0x60] sm:$0xf]
  %v3009 = vld [vmem:[%s2983 + $0x64] sm:$0xf]
  %v3010 = vld [vmem:[%s2983 + $0x68] sm:$0xf]
  %v3011 = vld [vmem:[%s2983 + $0x6c] sm:$0xf]
  %v3012 = vld [vmem:[%s2983 + $0x70] sm:$0xf]
  %v3013 = vld [vmem:[%s2983 + $0x74] sm:$0xf]
  %v3014 = vld [vmem:[%s2983 + $0x78] sm:$0xf]
  %v3015 = vld [vmem:[%s2983 + $0x7c] sm:$0xf]
  %v3016 = vpack.c.bf16 %v2981, %v2979
  %v3017 = vpack.c.bf16 %v2982, %v2980
  %v3050 = vunpack.c.l.b16 %v2984
  %v3051 = vunpack.c.l.b16 %v2985
  %v3052 = vunpack.c.l.b16 %v2986
  %v3053 = vunpack.c.l.b16 %v2987
  %v3054 = vunpack.c.l.b16 %v2988
  %v3055 = vunpack.c.l.b16 %v2989
  %v3056 = vunpack.c.l.b16 %v2990
  %v3057 = vunpack.c.l.b16 %v2991
  %v3058 = vunpack.c.l.b16 %v2992
  %v3059 = vunpack.c.l.b16 %v2993
  %v3060 = vunpack.c.l.b16 %v2994
  %v3061 = vunpack.c.l.b16 %v2995
  %v3062 = vunpack.c.l.b16 %v2996
  %v3063 = vunpack.c.l.b16 %v2997
  %v3064 = vunpack.c.l.b16 %v2998
  %v3065 = vunpack.c.l.b16 %v2999
  %v3066 = vunpack.c.l.b16 %v3000
  %v3067 = vunpack.c.l.b16 %v3001
  %v3068 = vunpack.c.l.b16 %v3002
  %v3069 = vunpack.c.l.b16 %v3003
  %v3070 = vunpack.c.l.b16 %v3004
  %v3071 = vunpack.c.l.b16 %v3005
  %v3072 = vunpack.c.l.b16 %v3006
  %v3073 = vunpack.c.l.b16 %v3007
  %v3074 = vunpack.c.l.b16 %v3008
  %v3075 = vunpack.c.l.b16 %v3009
  %v3076 = vunpack.c.l.b16 %v3010
  %v3077 = vunpack.c.l.b16 %v3011
  %v3078 = vunpack.c.l.b16 %v3012
  %v3079 = vunpack.c.l.b16 %v3013
  %v3080 = vunpack.c.l.b16 %v3014
  %v3081 = vunpack.c.l.b16 %v3015
  %v3082 = vpack.c.b16 %v3051, %v3050
  %v3083 = vpack.c.b16 %v3053, %v3052
  %v3084 = vpack.c.b16 %v3055, %v3054
  %v3085 = vpack.c.b16 %v3057, %v3056
  %v3086 = vpack.c.b16 %v3059, %v3058
  %v3087 = vpack.c.b16 %v3061, %v3060
  %v3088 = vpack.c.b16 %v3063, %v3062
  %v3089 = vpack.c.b16 %v3065, %v3064
  %v3090 = vpack.c.b16 %v3067, %v3066
  %v3091 = vpack.c.b16 %v3069, %v3068
  %v3092 = vpack.c.b16 %v3071, %v3070
  %v3093 = vpack.c.b16 %v3073, %v3072
  %v3094 = vpack.c.b16 %v3075, %v3074
  %v3095 = vpack.c.b16 %v3077, %v3076
  %v3096 = vpack.c.b16 %v3079, %v3078
  %v3097 = vpack.c.b16 %v3081, %v3080
  %3114 = vmatprep.subr.bf16.mxu0 0
  %3115 = vmatpush1.bf16.msra.mxu0 %v3089
  %3116 = vmatprep.subr.bf16.mxu0 0
  %3117 = vmatpush1.bf16.msra.mxu0 %v3088
  %3118 = vmatprep.subr.bf16.mxu0 0
  %3119 = vmatpush1.bf16.msra.mxu0 %v3087
  %3120 = vmatprep.subr.bf16.mxu0 0
  %3121 = vmatpush1.bf16.msra.mxu0 %v3086
  %3122 = vmatprep.subr.bf16.mxu0 0
  %3123 = vmatpush1.bf16.msra.mxu0 %v3085
  %3124 = vmatprep.subr.bf16.mxu0 0
  %3125 = vmatpush1.bf16.msra.mxu0 %v3084
  %3126 = vmatprep.subr.bf16.mxu0 0
  %3127 = vmatpush1.bf16.msra.mxu0 %v3083
  %3128 = vmatprep.subr.bf16.mxu0 0
  %3129 = vmatpush1.bf16.msra.mxu0 %v3082
  %3130 = vmatprep.subr.bf16.mxu0 0
  %3131 = vmatpush2.bf16.msra.mxu0 %v3097
  %3132 = vmatprep.subr.bf16.mxu0 0
  %3133 = vmatpush2.bf16.msra.mxu0 %v3096
  %3134 = vmatprep.subr.bf16.mxu0 0
  %3135 = vmatpush2.bf16.msra.mxu0 %v3095
  %3136 = vmatprep.subr.bf16.mxu0 0
  %3137 = vmatpush2.bf16.msra.mxu0 %v3094
  %3138 = vmatprep.subr.bf16.mxu0 0
  %3139 = vmatpush2.bf16.msra.mxu0 %v3093
  %3140 = vmatprep.subr.bf16.mxu0 0
  %3141 = vmatpush2.bf16.msra.mxu0 %v3092
  %3142 = vmatprep.subr.bf16.mxu0 0
  %3143 = vmatpush2.bf16.msra.mxu0 %v3091
  %3144 = vmatprep.subr.bf16.mxu0 0
  %3145 = vmatpush2.bf16.msra.mxu0 %v3090
  %3146 = vmatprep.mubr.bf16.mxu0 %v3017
  %3147 = vmatmul.mubr.bf16.gmra.mxu0 %v3016
  %v3148 = vpop.f32.mrf.mxu0
  %v3149 = vadd.f32 0.0, %v3148
  %v3150 = vpop.f32.mrf.mxu0
  %v3151 = vpop.f32.mrf.mxu0
  %v3152 = vadd.f32 0.0, %v3151
  %v3153 = vpop.f32.mrf.mxu0
  %3154 = vdwg.mxu0
  %v3155 = vadd.f32 %v2786, %v3149
  %v3156 = vadd.f32 %v2787, %v3152
  %s3157 = scalar_lea.vmem %s22, 1
  %v3158 = vld [vmem:[%s3157] sm:$0x1]
  %v3160 = vlaneseq
  %v3161 = vshrl.u32 %v3160, 7
  %v3162 = vsub.s32 0, %v3161
  %v3163 = vrot.slane %v3158, %v3162
  %v3165 = vadd.f32 %v3155, %v3163
  %v3166 = vadd.f32 %v3156, %v3163
  %v3167 = vld [vmem:[%s23] sm:$0x1]
  %v3168 = vld [vmem:[%s24] sm:$0x1]
  %v3169 = vsel %vm642, %v3165, 0.0
  %3170 = vadd.xlane.f32.xlu0 %v3169
  %v3171 = vpop.xlane.xlu0 %3170
  %v3172 = vsel %vm642, %v3166, 0.0
  %3173 = vadd.xlane.f32.xlu0 %v3172
  %v3174 = vpop.xlane.xlu0 %3173
  %v3175 = vmul.f32 %v3171, %v649
  %v3176 = vmul.f32 %v3174, %v649
  %v3177 = vmul.f32 %v3165, %v3165
  %v3178 = vmul.f32 %v3166, %v3166
  %v3179 = vsel %vm642, %v3177, 0.0
  %3180 = vadd.xlane.f32.xlu0 %v3179
  %v3181 = vpop.xlane.xlu0 %3180
  %v3182 = vsel %vm642, %v3178, 0.0
  %3183 = vadd.xlane.f32.xlu0 %v3182
  %v3184 = vpop.xlane.xlu0 %3183
  %v3185 = vmul.f32 %v3181, %v649
  %v3186 = vmul.f32 %v3184, %v649
  %v3187 = vmul.f32 %v3175, %v3175
  %v3188 = vmul.f32 %v3176, %v3176
  %v3189 = vsub.f32 %v3185, %v3187
  %v3190 = vsub.f32 %v3186, %v3188
  %v3191 = vsub.f32 %v3165, %v3175
  %v3192 = vsub.f32 %v3166, %v3176
  %v3193 = vadd.f32 %v3189, 1e-06
  %v3194 = vadd.f32 %v3190, 1e-06
  %v3195 = vrsqrt.pop %v3193
  %v3196 = vrsqrt.pop %v3194
  %v3197 = vmul.f32 %v3191, %v3195
  %v3198 = vmul.f32 %v3192, %v3196
  %v3200 = vlaneseq
  %v3201 = vshrl.u32 %v3200, 7
  %v3202 = vsub.s32 0, %v3201
  %v3203 = vrot.slane %v3167, %v3202
  %v3205 = vmul.f32 %v3197, %v3203
  %v3206 = vmul.f32 %v3198, %v3203
  %v3208 = vlaneseq
  %v3209 = vshrl.u32 %v3208, 7
  %v3210 = vsub.s32 0, %v3209
  %v3211 = vrot.slane %v3168, %v3210
  %v3213 = vadd.f32 %v3205, %v3211
  %v3214 = vadd.f32 %v3206, %v3211
  %v3215 = vld [vmem:[%s25] sm:$0xf]
  %v3216 = vld [vmem:[%s25 + $0x4] sm:$0xf]
  %v3217 = vld [vmem:[%s25 + $0x8] sm:$0xf]
  %v3218 = vld [vmem:[%s25 + $0xc] sm:$0xf]
  %v3219 = vld [vmem:[%s25 + $0x10] sm:$0xf]
  %v3220 = vld [vmem:[%s25 + $0x14] sm:$0xf]
  %v3221 = vld [vmem:[%s25 + $0x18] sm:$0xf]
  %v3222 = vld [vmem:[%s25 + $0x1c] sm:$0xf]
  %v3223 = vpack.c.bf16 %v3214, %v3213
  %v3224 = vld [vmem:[%s26] sm:$0x1]
  %v3226 = vlaneseq
  %v3227 = vshrl.u32 %v3226, 7
  %v3228 = vsub.s32 0, %v3227
  %v3229 = vrot.slane %v3224, %v3228
  %v3239 = vunpack.c.l.b16 %v3215
  %v3240 = vunpack.c.l.b16 %v3216
  %v3241 = vunpack.c.l.b16 %v3217
  %v3242 = vunpack.c.l.b16 %v3218
  %v3243 = vunpack.c.l.b16 %v3219
  %v3244 = vunpack.c.l.b16 %v3220
  %v3245 = vunpack.c.l.b16 %v3221
  %v3246 = vunpack.c.l.b16 %v3222
  %v3247 = vpack.c.b16 %v3240, %v3239
  %v3248 = vpack.c.b16 %v3242, %v3241
  %v3249 = vpack.c.b16 %v3244, %v3243
  %v3250 = vpack.c.b16 %v3246, %v3245
  %v3256 = vsel %vm642, %v3223, 0
  %3258 = vmatprep.subr.bf16.mxu0 0
  %3259 = vmatpush1.bf16.msra.mxu0 0
  %3260 = vmatprep.subr.bf16.mxu0 0
  %3261 = vmatpush1.bf16.msra.mxu0 0
  %3262 = vmatprep.subr.bf16.mxu0 0
  %3263 = vmatpush1.bf16.msra.mxu0 0
  %3264 = vmatprep.subr.bf16.mxu0 0
  %3265 = vmatpush1.bf16.msra.mxu0 0
  %3266 = vmatprep.subr.bf16.mxu0 0
  %3267 = vmatpush1.bf16.msra.mxu0 %v3250
  %3268 = vmatprep.subr.bf16.mxu0 0
  %3269 = vmatpush1.bf16.msra.mxu0 %v3249
  %3270 = vmatprep.subr.bf16.mxu0 0
  %3271 = vmatpush1.bf16.msra.mxu0 %v3248
  %3272 = vmatprep.subr.bf16.mxu0 0
  %3273 = vmatpush1.bf16.msra.mxu0 %v3247
  %3274 = vmatprep.subr.bf16.mxu0 0
  %3275 = vmatpush2.bf16.msra.mxu0 0
  %3276 = vmatprep.subr.bf16.mxu0 0
  %3277 = vmatpush2.bf16.msra.mxu0 0
  %3278 = vmatprep.subr.bf16.mxu0 0
  %3279 = vmatpush2.bf16.msra.mxu0 0
  %3280 = vmatprep.subr.bf16.mxu0 0
  %3281 = vmatpush2.bf16.msra.mxu0 0
  %3282 = vmatprep.subr.bf16.mxu0 0
  %3283 = vmatpush2.bf16.msra.mxu0 0
  %3284 = vmatprep.subr.bf16.mxu0 0
  %3285 = vmatpush2.bf16.msra.mxu0 0
  %3286 = vmatprep.subr.bf16.mxu0 0
  %3287 = vmatpush2.bf16.msra.mxu0 0
  %3288 = vmatprep.subr.bf16.mxu0 0
  %3289 = vmatpush2.bf16.msra.mxu0 0
  %3290 = vmatprep.mubr.bf16.mxu0 0
  %3291 = vmatmul.mubr.bf16.gmra.mxu0 %v3256
  %v3292 = vpop.f32.mrf.mxu0
  %v3293 = vadd.f32 %v3229, %v3292
  %v3294 = vpop.f32.mrf.mxu0
  %v3295 = vpop.f32.mrf.mxu0
  %v3296 = vadd.f32 %v3229, %v3295
  %v3297 = vpop.f32.mrf.mxu0
  %3298 = vdwg.mxu0
  %3299 = vst [vmem:[%s27] sm:$0xff] %v3293
  %3300 = vst [vmem:[%s27 + $0x8] sm:$0xff] %v3296
  // Predicated region
  $region110: #{vit_forward.1} parent=0 // pred_check
    _
  $region111: #{vit_forward.1} parent=0 // pred_check_branch
    %3302 = sbr.rel (0) target = $region113
  $region112: #{vit_forward.1} parent=0 // pred_region
    _
  $region113: #{vit_forward.1} parent=0 // pred_fallthru
    _
  // Predicated region
  $region114: #{vit_forward.1} parent=0 // pred_check
    _
  $region115: #{vit_forward.1} parent=0 // pred_check_branch
    %3304 = sbr.rel (0) target = $region117
  $region116: #{vit_forward.1} parent=0 // pred_region
    _
  $region117: #{vit_forward.1} parent=0 // pred_fallthru
    _

</llo_original>
